<compile_context>
chip_gen: v5e
topology: v5e:2x2
jax: 0.10.0
libtpu: 0.0.40
codegen_flags: <defaults>
</compile_context>

<pallas_src>
import functools

import jax
import jax.numpy as jnp
from jax.experimental import pallas as pl
from jax.experimental.pallas import tpu as pltpu


# ----------------------------- fused Pallas kernel ---------------------------
def _stacked_blocks_kernel(x_ref, w_ref, o_ref, pf_ref, *,
                           n_blocks, CB, W, K, pad, Wp, Q):
    """Whole StackedBlocks forward for one batch group, VMEM/vreg-resident.

    x_ref : (1, CB, PF)      zero-bordered padded-flat images (row stride Wp),
                             CB = (group_size * C) rounded up to 8 sublanes.
    w_ref : (L, CB, 9*CB+8)  block-diagonal im2col weights, BN scale folded in;
                             last 8 columns carry the folded-BN bias.
    o_ref : (1, CB, Q)       block output in q-layout (wrapper drops stride cols).
    pf_ref: (CB, PF)         persistent padded-flat activation scratch.
    """
    # Load the input slab once; the zero border of the scratch is never touched
    # again, so between-layer re-padding is a single interior store.
    pf_ref[...] = x_ref[0].astype(jnp.float32)

    # Validity mask in q-layout, generated in-kernel (no mask input / DMA).
    col = jax.lax.broadcasted_iota(jnp.int32, (CB, Q), 1)
    valid = (col % Wp) < W

    # Constant patch block whose first row is all-ones: the folded-BN bias rides
    # the conv matmul, so there is no separate bias input or broadcast add.
    ones_blk = (jax.lax.broadcasted_iota(jnp.int32, (8, Q), 0) == 0
                ).astype(jnp.float32)

    off0 = pad * (Wp + 1)                       # pf offset of interior pixel (0, 0)

    def conv_bn(layer):
        # im2col: K*K sublane-aligned (CB-row) tap slices + bias block ->
        # one (CB, 9*CB+8) @ (9*CB+8, Q) MXU matmul per conv layer.
        taps = [pf_ref[:, kh * Wp + kw: kh * Wp + kw + Q]
                for kh in range(K) for kw in range(K)]
        patches = jnp.concatenate(taps + [ones_blk], axis=0)
        return jnp.dot(w_ref[layer], patches,
                       preferred_element_type=jnp.float32,
                       precision=jax.lax.Precision.HIGHEST)

    out_q = None
    for blk in range(n_blocks):
        skip = pf_ref[:, off0:off0 + Q]                        # block input (q-layout)
        a1 = jnp.maximum(conv_bn(2 * blk), 0.0)                # Conv + BN + ReLU
        pf_ref[:, off0:off0 + Q] = jnp.where(valid, a1, 0.0)   # in-place re-pad
        out_q = conv_bn(2 * blk + 1) + skip                    # Conv + BN + residual
        if blk < n_blocks - 1:
            pf_ref[:, off0:off0 + Q] = jnp.where(valid, out_q, 0.0)

    # Lane-dense store of the whole tile; the wrapper un-pads the stride columns.
    o_ref[0] = out_q.astype(o_ref.dtype)


# ------------------------------ parameter prep --------------------------------
def _prep_fused_params(params, C, K, NG, CB):
    """Per-layer (CB, K*K*CB + 8) matmul weights.

    Block-diagonal over the NG images in a batch group, BN scale folded into the
    weights, folded-BN bias in column 0 of the trailing 8-column block (which the
    kernel multiplies against a constant ones patch row)."""
    eye = jnp.eye(NG, dtype=jnp.float32)
    mats = []
    for p in params:
        for w, s, b in ((p["w1"], p["s1"], p["b1"]),
                        (p["w2"], p["s2"], p["b2"])):
            assert w.shape == (K, K, C, C), w.shape
            wf = w * s                                                   # fold BN scale
            blk = jnp.transpose(wf, (0, 1, 3, 2)).reshape(K * K, C, C)   # (tap, co, ci)
            big = jnp.einsum("nm,tij->tnimj", eye, blk)                  # block-diag
            big = big.reshape(K * K, NG * C, NG * C)
            big = jnp.pad(big, ((0, 0), (0, CB - NG * C), (0, CB - NG * C)))
            wmat = jnp.transpose(big, (1, 0, 2)).reshape(CB, K * K * CB)
            bias = jnp.pad(jnp.tile(b, NG), (0, CB - NG * C))            # (CB,)
            bias_blk = jnp.pad(bias[:, None], ((0, 0), (0, 7)))          # (CB, 8)
            mats.append(jnp.concatenate([wmat, bias_blk], axis=1))
    return jnp.stack(mats)                                               # (L, CB, 9*CB+8)


# --------------------------------- wrapper -------------------------------------
def _default_batch_groups(n):
    """1 fused grid step on single-TensorCore chips (v5e/v6e); split the batch
    across 2 'parallel' grid steps on dual-TensorCore v7x so both cores get work."""
    try:
        kind = jax.devices()[0].device_kind.lower()
    except Exception:
        kind = ""
    if ("v7" in kind or "7x" in kind) and n % 2 == 0:
        return 2
    return 1


@functools.partial(jax.jit, static_argnames=("padding", "batch_groups"))
def _stacked_blocks_impl(x_nchw, params, padding, batch_groups):
    N, C, H, W = x_nchw.shape
    K = params[0]["w1"].shape[0]
    # Residual add (and the fused layout) require shape-preserving convs.
    assert 2 * padding == K - 1, (padding, K)
    assert N % batch_groups == 0, (N, batch_groups)
    G = batch_groups
    NG = N // G                                      # images fused per grid step
    CB = ((NG * C + 7) // 8) * 8                     # sublane-aligned channel rows
    n_blocks = len(params)
    L = 2 * n_blocks
    Hp, Wp = H + 2 * padding, W + 2 * padding
    Q = H * Wp                                       # q-layout length per image
    need = max(Hp * Wp, (K - 1) * Wp + (K - 1) + Q)
    PF = ((need + 127) // 128) * 128                 # lane-aligned padded-flat length
    KW = K * K * CB + 8

    wmats = _prep_fused_params(params, C, K, NG, CB)

    # Pad ONCE for the whole stack, flatten, group the batch into sublane rows.
    xpad = jnp.pad(x_nchw, ((0, 0), (0, 0),
                            (padding, padding), (padding, padding)))
    x_pf = jnp.pad(xpad.reshape(N, C, Hp * Wp),
                   ((0, 0), (0, 0), (0, PF - Hp * Wp)))
    x_pf = jnp.pad(x_pf.reshape(G, NG * C, PF),
                   ((0, 0), (0, CB - NG * C), (0, 0)))          # (G, CB, PF)

    kernel = functools.partial(
        _stacked_blocks_kernel, n_blocks=n_blocks, CB=CB, W=W, K=K,
        pad=padding, Wp=Wp, Q=Q)

    out_q = pl.pallas_call(
        kernel,
        out_shape=jax.ShapeDtypeStruct((G, CB, Q), x_nchw.dtype),
        grid=(G,),
        in_specs=[
            pl.BlockSpec((1, CB, PF), lambda g: (g, 0, 0)),
            pl.BlockSpec((L, CB, KW), lambda g: (0, 0, 0)),
        ],
        out_specs=pl.BlockSpec((1, CB, Q), lambda g: (g, 0, 0)),
        scratch_shapes=[pltpu.VMEM((CB, PF), jnp.float32)],
        compiler_params=pltpu.CompilerParams(
            dimension_semantics=("parallel",)),
    )(x_pf, wmats)

    # Drop padded channel rows and the Wp-W stride columns here (cheap XLA slice)
    # instead of a 16-way lane gather in-kernel.
    return out_q[:, :NG * C, :].reshape(N, C, H, Wp)[..., :W]


def stacked_blocks_forward(x_nchw, params, padding=1, batch_groups=None):
    """Fused Pallas implementation. x_nchw: (N, C, H, W) -> (N, C, H, W)."""
    if batch_groups is None:
        batch_groups = _default_batch_groups(x_nchw.shape[0])
    return _stacked_blocks_impl(x_nchw, params, padding, batch_groups)


# -------------------------- parameter construction ---------------------------
def _fold_bn(gamma, beta, mean, var, eps=1e-5):
    scale = gamma / jnp.sqrt(var + eps)
    bias = beta - mean * scale
    return scale, bias


def make_residual_block_params(key, cin, cout, k):
    ks = jax.random.split(key, 10)

    def bn_params(k0, k1, k2, k3, c):
        gamma = 1.0 + 0.1 * jax.random.normal(k0, (c,), jnp.float32)
        beta = 0.1 * jax.random.normal(k1, (c,), jnp.float32)
        mean = 0.05 * jax.random.normal(k2, (c,), jnp.float32)
        var = 1.0 + 0.1 * jnp.abs(jax.random.normal(k3, (c,), jnp.float32))
        return _fold_bn(gamma, beta, mean, var)

    w1 = 0.2 * jax.random.normal(ks[0], (k, k, cin, cout), jnp.float32)
    s1, b1 = bn_params(ks[1], ks[2], ks[3], ks[4], cout)
    w2 = 0.2 * jax.random.normal(ks[5], (k, k, cout, cout), jnp.float32)
    s2, b2 = bn_params(ks[6], ks[7], ks[8], ks[9], cout)
    return dict(w1=w1, s1=s1, b1=b1, w2=w2, s2=s2, b2=b2)


# ------------------------------ reference -------------------------------------
def _conv_bn_ref(x_nchw, w, scale, bias, relu, skip=None, padding=1):
    # Precision.HIGHEST on both the reference conv and the in-kernel MXU dots so the
    # folded-scale kernel weights and the unfolded reference agree to ~1e-5.
    y = jax.lax.conv_general_dilated(
        x_nchw, w, window_strides=(1, 1),
        padding=[(padding, padding), (padding, padding)],
        dimension_numbers=("NCHW", "HWIO", "NCHW"),
        precision=jax.lax.Precision.HIGHEST)
    y = y * scale.reshape(1, -1, 1, 1) + bias.reshape(1, -1, 1, 1)
    if relu:
        y = jnp.maximum(y, 0.0)
    if skip is not None:
        y = y + skip
    return y


def stacked_blocks_ref(x_nchw, params, padding=1):
    x = x_nchw
    for p in params:
        y = _conv_bn_ref(x, p["w1"], p["s1"], p["b1"], True, padding=padding)
        x = _conv_bn_ref(y, p["w2"], p["s2"], p["b2"], False, skip=x,
                         padding=padding)
    return x


# ----------------------------------- main --------------------------------------
if __name__ == "__main__":
    # StackedBlocks(n_blocks=2, in_channels=4, out_channels=4, kernel_size=3,
    #               stride=1, padding=1, dilation=1)  -> downsample=False
    n_blocks, C, H, W, N, K, PAD = 2, 4, 16, 16, 2, 3, 1

    key = jax.random.PRNGKey(0)
    kx, *kblocks = jax.random.split(key, 1 + n_blocks)

    x = jax.random.normal(kx, (N, C, H, W), jnp.float32)       # NCHW input
    params = [make_residual_block_params(kblocks[i], C, C, K)
              for i in range(n_blocks)]

    out = stacked_blocks_forward(x, params, padding=PAD)
    out = jax.block_until_ready(out)

    ref = stacked_blocks_ref(x, params, padding=PAD)
    assert out.shape == (N, C, H, W)
    # 1e-3 budget covers differing multi-pass MXU decompositions vs. the XLA conv;
    # a genuine structural/layout bug produces O(1) errors and still fails.
    err = float(jnp.max(jnp.abs(out - ref)))
    assert jnp.allclose(out, ref, atol=1e-3, rtol=1e-3), err

    print("KERNEL_OK")
</pallas_src>

<mosaic_0001>
module attributes {stable_mosaic.version = 11 : i64} {
  func.func @_stacked_blocks_kernel(%arg0: i32, %arg1: memref<1x8x384xf32, #tpu.memory_space<vmem>>, %arg2: memref<4x8x80xf32, #tpu.memory_space<vmem>>, %arg3: memref<1x8x288xf32, #tpu.memory_space<vmem>>, %arg4: memref<8x384xf32, #tpu.memory_space<vmem>>) attributes {dimension_semantics = [#tpu.dimension_semantics<parallel>], iteration_bounds = array<i64: 1>, scalar_prefetch = 0 : i64, scratch_operands = 1 : i64, tpu.core_type = #tpu.core_type<tc>, window_params = [{transform_indices = @transform_0, window_bounds = array<i64: 1, 8, 384>}, {pipeline_mode = #tpu.pipeline_mode<synchronous>, transform_indices = @transform_1, window_bounds = array<i64: 4, 8, 80>}, {transform_indices = @transform_2, window_bounds = array<i64: 1, 8, 288>}]} {
    %c0 = arith.constant 0 : index
    %c0_0 = arith.constant 0 : index
    %c0_1 = arith.constant 0 : index
    %0 = vector.load %arg1[%c0, %c0_0, %c0_1] : memref<1x8x384xf32, #tpu.memory_space<vmem>>, vector<1x8x384xf32>
    %1 = vector.shape_cast %0 : vector<1x8x384xf32> to vector<8x384xf32>
    %c0_2 = arith.constant 0 : index
    %c0_3 = arith.constant 0 : index
    %2 = vector.load %arg4[%c0_2, %c0_3] : memref<8x384xf32, #tpu.memory_space<vmem>>, vector<8x384xf32>
    tpu.vector_store %arg4[%c0_2, %c0_3], %1 {strides = array<i32>} : memref<8x384xf32, #tpu.memory_space<vmem>>, vector<8x384xf32>,
    %3 = tpu.iota {dimensions = array<i32: 1>} : vector<8x288xi32>
    %c18_i32 = arith.constant 18 : i32
    %c0_i32 = arith.constant 0 : i32
    %4 = arith.cmpi eq, %c18_i32, %c0_i32 : i32
    %c1_i32 = arith.constant 1 : i32
    %5 = arith.select %4, %c1_i32, %c18_i32 : i32
    %6 = vector.broadcast %5 : i32 to vector<8x288xi32>
    %7 = arith.remsi %3, %6 : vector<8x288xi32>
    %c0_i32_4 = arith.constant 0 : i32
    %8 = vector.broadcast %c0_i32_4 : i32 to vector<8x288xi32>
    %9 = arith.cmpi ne, %7, %8 : vector<8x288xi32>
    %c0_i32_5 = arith.constant 0 : i32
    %10 = vector.broadcast %c0_i32_5 : i32 to vector<8x288xi32>
    %11 = arith.cmpi slt, %7, %10 : vector<8x288xi32>
    %c0_i32_6 = arith.constant 0 : i32
    %12 = arith.cmpi slt, %5, %c0_i32_6 : i32
    %13 = vector.broadcast %12 : i1 to vector<8x288xi1>
    %14 = vector.broadcast %13 : vector<8x288xi1> to vector<8x288xi1>
    %15 = arith.xori %11, %14 : vector<8x288xi1>
    %16 = arith.andi %15, %9 : vector<8x288xi1>
    %17 = vector.broadcast %5 : i32 to vector<8x288xi32>
    %18 = arith.addi %7, %17 : vector<8x288xi32>
    %19 = arith.select %16, %18, %7 : vector<8x288xi1>, vector<8x288xi32>
    %c16_i32 = arith.constant 16 : i32
    %20 = vector.broadcast %c16_i32 : i32 to vector<8x288xi32>
    %21 = arith.cmpi slt, %19, %20 : vector<8x288xi32>
    %22 = tpu.iota {dimensions = array<i32: 0>} : vector<8x288xi32>
    %c0_i32_7 = arith.constant 0 : i32
    %23 = vector.broadcast %c0_i32_7 : i32 to vector<8x288xi32>
    %24 = arith.cmpi eq, %22, %23 : vector<8x288xi32>
    %25 = arith.extui %24 : vector<8x288xi1> to vector<8x288xi32>
    %26 = arith.sitofp %25 : vector<8x288xi32> to vector<8x288xf32>
    %c0_8 = arith.constant 0 : index
    %c19 = arith.constant 19 : index
    %27 = vector.load %arg4[%c0_8, %c19] : memref<8x384xf32, #tpu.memory_space<vmem>>, vector<8x288xf32>
    %c0_9 = arith.constant 0 : index
    %c0_10 = arith.constant 0 : index
    %28 = vector.load %arg4[%c0_9, %c0_10] : memref<8x384xf32, #tpu.memory_space<vmem>>, vector<8x288xf32>
    %c0_11 = arith.constant 0 : index
    %c1 = arith.constant 1 : index
    %29 = vector.load %arg4[%c0_11, %c1] : memref<8x384xf32, #tpu.memory_space<vmem>>, vector<8x288xf32>
    %c0_12 = arith.constant 0 : index
    %c2 = arith.constant 2 : index
    %30 = vector.load %arg4[%c0_12, %c2] : memref<8x384xf32, #tpu.memory_space<vmem>>, vector<8x288xf32>
    %c0_13 = arith.constant 0 : index
    %c18 = arith.constant 18 : index
    %31 = vector.load %arg4[%c0_13, %c18] : memref<8x384xf32, #tpu.memory_space<vmem>>, vector<8x288xf32>
    %c0_14 = arith.constant 0 : index
    %c19_15 = arith.constant 19 : index
    %32 = vector.load %arg4[%c0_14, %c19_15] : memref<8x384xf32, #tpu.memory_space<vmem>>, vector<8x288xf32>
    %c0_16 = arith.constant 0 : index
    %c20 = arith.constant 20 : index
    %33 = vector.load %arg4[%c0_16, %c20] : memref<8x384xf32, #tpu.memory_space<vmem>>, vector<8x288xf32>
    %c0_17 = arith.constant 0 : index
    %c36 = arith.constant 36 : index
    %34 = vector.load %arg4[%c0_17, %c36] : memref<8x384xf32, #tpu.memory_space<vmem>>, vector<8x288xf32>
    %c0_18 = arith.constant 0 : index
    %c37 = arith.constant 37 : index
    %35 = vector.load %arg4[%c0_18, %c37] : memref<8x384xf32, #tpu.memory_space<vmem>>, vector<8x288xf32>
    %c0_19 = arith.constant 0 : index
    %c38 = arith.constant 38 : index
    %36 = vector.load %arg4[%c0_19, %c38] : memref<8x384xf32, #tpu.memory_space<vmem>>, vector<8x288xf32>
    %37 = tpu.concatenate %28, %29, %30, %31, %32, %33, %34, %35, %36, %26 in 0 : vector<8x288xf32>, vector<8x288xf32>, vector<8x288xf32>, vector<8x288xf32>, vector<8x288xf32>, vector<8x288xf32>, vector<8x288xf32>, vector<8x288xf32>, vector<8x288xf32>, vector<8x288xf32> -> vector<80x288xf32>
    %c0_20 = arith.constant 0 : index
    %c0_21 = arith.constant 0 : index
    %c0_22 = arith.constant 0 : index
    %38 = vector.load %arg2[%c0_20, %c0_21, %c0_22] : memref<4x8x80xf32, #tpu.memory_space<vmem>>, vector<1x8x80xf32>
    %39 = vector.shape_cast %38 : vector<1x8x80xf32> to vector<8x80xf32>
    %cst = arith.constant dense<0.000000e+00> : vector<8x288xf32>
    %40 = tpu.matmul %39, %37, %cst {dimension_numbers = #tpu.dot_dimension_numbers<[1], [0], [0], [1], [0, 0, 1, 1], [], []>, precision = #tpu.contract_precision<fp32>} : vector<8x80xf32>, vector<80x288xf32>, vector<8x288xf32> -> vector<8x288xf32>
    %cst_23 = arith.constant 0.000000e+00 : f32
    %41 = vector.broadcast %cst_23 : f32 to vector<8x288xf32>
    %42 = arith.maximumf %40, %41 : vector<8x288xf32>
    %cst_24 = arith.constant 0.000000e+00 : f32
    %43 = vector.broadcast %cst_24 : f32 to vector<8x288xf32>
    %44 = arith.select %21, %42, %43 : vector<8x288xi1>, vector<8x288xf32>
    %c0_25 = arith.constant 0 : index
    %c19_26 = arith.constant 19 : index
    %45 = vector.load %arg4[%c0_25, %c19_26] : memref<8x384xf32, #tpu.memory_space<vmem>>, vector<8x288xf32>
    tpu.vector_store %arg4[%c0_25, %c19_26], %44 {strides = array<i32>} : memref<8x384xf32, #tpu.memory_space<vmem>>, vector<8x288xf32>,
    %c0_27 = arith.constant 0 : index
    %c0_28 = arith.constant 0 : index
    %46 = vector.load %arg4[%c0_27, %c0_28] : memref<8x384xf32, #tpu.memory_space<vmem>>, vector<8x288xf32>
    %c0_29 = arith.constant 0 : index
    %c1_30 = arith.constant 1 : index
    %47 = vector.load %arg4[%c0_29, %c1_30] : memref<8x384xf32, #tpu.memory_space<vmem>>, vector<8x288xf32>
    %c0_31 = arith.constant 0 : index
    %c2_32 = arith.constant 2 : index
    %48 = vector.load %arg4[%c0_31, %c2_32] : memref<8x384xf32, #tpu.memory_space<vmem>>, vector<8x288xf32>
    %c0_33 = arith.constant 0 : index
    %c18_34 = arith.constant 18 : index
    %49 = vector.load %arg4[%c0_33, %c18_34] : memref<8x384xf32, #tpu.memory_space<vmem>>, vector<8x288xf32>
    %c0_35 = arith.constant 0 : index
    %c19_36 = arith.constant 19 : index
    %50 = vector.load %arg4[%c0_35, %c19_36] : memref<8x384xf32, #tpu.memory_space<vmem>>, vector<8x288xf32>
    %c0_37 = arith.constant 0 : index
    %c20_38 = arith.constant 20 : index
    %51 = vector.load %arg4[%c0_37, %c20_38] : memref<8x384xf32, #tpu.memory_space<vmem>>, vector<8x288xf32>
    %c0_39 = arith.constant 0 : index
    %c36_40 = arith.constant 36 : index
    %52 = vector.load %arg4[%c0_39, %c36_40] : memref<8x384xf32, #tpu.memory_space<vmem>>, vector<8x288xf32>
    %c0_41 = arith.constant 0 : index
    %c37_42 = arith.constant 37 : index
    %53 = vector.load %arg4[%c0_41, %c37_42] : memref<8x384xf32, #tpu.memory_space<vmem>>, vector<8x288xf32>
    %c0_43 = arith.constant 0 : index
    %c38_44 = arith.constant 38 : index
    %54 = vector.load %arg4[%c0_43, %c38_44] : memref<8x384xf32, #tpu.memory_space<vmem>>, vector<8x288xf32>
    %55 = tpu.concatenate %46, %47, %48, %49, %50, %51, %52, %53, %54, %26 in 0 : vector<8x288xf32>, vector<8x288xf32>, vector<8x288xf32>, vector<8x288xf32>, vector<8x288xf32>, vector<8x288xf32>, vector<8x288xf32>, vector<8x288xf32>, vector<8x288xf32>, vector<8x288xf32> -> vector<80x288xf32>
    %c1_45 = arith.constant 1 : index
    %c0_46 = arith.constant 0 : index
    %c0_47 = arith.constant 0 : index
    %56 = vector.load %arg2[%c1_45, %c0_46, %c0_47] : memref<4x8x80xf32, #tpu.memory_space<vmem>>, vector<1x8x80xf32>
    %57 = vector.shape_cast %56 : vector<1x8x80xf32> to vector<8x80xf32>
    %cst_48 = arith.constant dense<0.000000e+00> : vector<8x288xf32>
    %58 = tpu.matmul %57, %55, %cst_48 {dimension_numbers = #tpu.dot_dimension_numbers<[1], [0], [0], [1], [0, 0, 1, 1], [], []>, precision = #tpu.contract_precision<fp32>} : vector<8x80xf32>, vector<80x288xf32>, vector<8x288xf32> -> vector<8x288xf32>
    %59 = arith.addf %58, %27 : vector<8x288xf32>
    %cst_49 = arith.constant 0.000000e+00 : f32
    %60 = vector.broadcast %cst_49 : f32 to vector<8x288xf32>
    %61 = arith.select %21, %59, %60 : vector<8x288xi1>, vector<8x288xf32>
    %c0_50 = arith.constant 0 : index
    %c19_51 = arith.constant 19 : index
    %62 = vector.load %arg4[%c0_50, %c19_51] : memref<8x384xf32, #tpu.memory_space<vmem>>, vector<8x288xf32>
    tpu.vector_store %arg4[%c0_50, %c19_51], %61 {strides = array<i32>} : memref<8x384xf32, #tpu.memory_space<vmem>>, vector<8x288xf32>,
    %c0_52 = arith.constant 0 : index
    %c19_53 = arith.constant 19 : index
    %63 = vector.load %arg4[%c0_52, %c19_53] : memref<8x384xf32, #tpu.memory_space<vmem>>, vector<8x288xf32>
    %c0_54 = arith.constant 0 : index
    %c0_55 = arith.constant 0 : index
    %64 = vector.load %arg4[%c0_54, %c0_55] : memref<8x384xf32, #tpu.memory_space<vmem>>, vector<8x288xf32>
    %c0_56 = arith.constant 0 : index
    %c1_57 = arith.constant 1 : index
    %65 = vector.load %arg4[%c0_56, %c1_57] : memref<8x384xf32, #tpu.memory_space<vmem>>, vector<8x288xf32>
    %c0_58 = arith.constant 0 : index
    %c2_59 = arith.constant 2 : index
    %66 = vector.load %arg4[%c0_58, %c2_59] : memref<8x384xf32, #tpu.memory_space<vmem>>, vector<8x288xf32>
    %c0_60 = arith.constant 0 : index
    %c18_61 = arith.constant 18 : index
    %67 = vector.load %arg4[%c0_60, %c18_61] : memref<8x384xf32, #tpu.memory_space<vmem>>, vector<8x288xf32>
    %c0_62 = arith.constant 0 : index
    %c19_63 = arith.constant 19 : index
    %68 = vector.load %arg4[%c0_62, %c19_63] : memref<8x384xf32, #tpu.memory_space<vmem>>, vector<8x288xf32>
    %c0_64 = arith.constant 0 : index
    %c20_65 = arith.constant 20 : index
    %69 = vector.load %arg4[%c0_64, %c20_65] : memref<8x384xf32, #tpu.memory_space<vmem>>, vector<8x288xf32>
    %c0_66 = arith.constant 0 : index
    %c36_67 = arith.constant 36 : index
    %70 = vector.load %arg4[%c0_66, %c36_67] : memref<8x384xf32, #tpu.memory_space<vmem>>, vector<8x288xf32>
    %c0_68 = arith.constant 0 : index
    %c37_69 = arith.constant 37 : index
    %71 = vector.load %arg4[%c0_68, %c37_69] : memref<8x384xf32, #tpu.memory_space<vmem>>, vector<8x288xf32>
    %c0_70 = arith.constant 0 : index
    %c38_71 = arith.constant 38 : index
    %72 = vector.load %arg4[%c0_70, %c38_71] : memref<8x384xf32, #tpu.memory_space<vmem>>, vector<8x288xf32>
    %73 = tpu.concatenate %64, %65, %66, %67, %68, %69, %70, %71, %72, %26 in 0 : vector<8x288xf32>, vector<8x288xf32>, vector<8x288xf32>, vector<8x288xf32>, vector<8x288xf32>, vector<8x288xf32>, vector<8x288xf32>, vector<8x288xf32>, vector<8x288xf32>, vector<8x288xf32> -> vector<80x288xf32>
    %c2_72 = arith.constant 2 : index
    %c0_73 = arith.constant 0 : index
    %c0_74 = arith.constant 0 : index
    %74 = vector.load %arg2[%c2_72, %c0_73, %c0_74] : memref<4x8x80xf32, #tpu.memory_space<vmem>>, vector<1x8x80xf32>
    %75 = vector.shape_cast %74 : vector<1x8x80xf32> to vector<8x80xf32>
    %cst_75 = arith.constant dense<0.000000e+00> : vector<8x288xf32>
    %76 = tpu.matmul %75, %73, %cst_75 {dimension_numbers = #tpu.dot_dimension_numbers<[1], [0], [0], [1], [0, 0, 1, 1], [], []>, precision = #tpu.contract_precision<fp32>} : vector<8x80xf32>, vector<80x288xf32>, vector<8x288xf32> -> vector<8x288xf32>
    %cst_76 = arith.constant 0.000000e+00 : f32
    %77 = vector.broadcast %cst_76 : f32 to vector<8x288xf32>
    %78 = arith.maximumf %76, %77 : vector<8x288xf32>
    %cst_77 = arith.constant 0.000000e+00 : f32
    %79 = vector.broadcast %cst_77 : f32 to vector<8x288xf32>
    %80 = arith.select %21, %78, %79 : vector<8x288xi1>, vector<8x288xf32>
    %c0_78 = arith.constant 0 : index
    %c19_79 = arith.constant 19 : index
    %81 = vector.load %arg4[%c0_78, %c19_79] : memref<8x384xf32, #tpu.memory_space<vmem>>, vector<8x288xf32>
    tpu.vector_store %arg4[%c0_78, %c19_79], %80 {strides = array<i32>} : memref<8x384xf32, #tpu.memory_space<vmem>>, vector<8x288xf32>,
    %c0_80 = arith.constant 0 : index
    %c0_81 = arith.constant 0 : index
    %82 = vector.load %arg4[%c0_80, %c0_81] : memref<8x384xf32, #tpu.memory_space<vmem>>, vector<8x288xf32>
    %c0_82 = arith.constant 0 : index
    %c1_83 = arith.constant 1 : index
    %83 = vector.load %arg4[%c0_82, %c1_83] : memref<8x384xf32, #tpu.memory_space<vmem>>, vector<8x288xf32>
    %c0_84 = arith.constant 0 : index
    %c2_85 = arith.constant 2 : index
    %84 = vector.load %arg4[%c0_84, %c2_85] : memref<8x384xf32, #tpu.memory_space<vmem>>, vector<8x288xf32>
    %c0_86 = arith.constant 0 : index
    %c18_87 = arith.constant 18 : index
    %85 = vector.load %arg4[%c0_86, %c18_87] : memref<8x384xf32, #tpu.memory_space<vmem>>, vector<8x288xf32>
    %c0_88 = arith.constant 0 : index
    %c19_89 = arith.constant 19 : index
    %86 = vector.load %arg4[%c0_88, %c19_89] : memref<8x384xf32, #tpu.memory_space<vmem>>, vector<8x288xf32>
    %c0_90 = arith.constant 0 : index
    %c20_91 = arith.constant 20 : index
    %87 = vector.load %arg4[%c0_90, %c20_91] : memref<8x384xf32, #tpu.memory_space<vmem>>, vector<8x288xf32>
    %c0_92 = arith.constant 0 : index
    %c36_93 = arith.constant 36 : index
    %88 = vector.load %arg4[%c0_92, %c36_93] : memref<8x384xf32, #tpu.memory_space<vmem>>, vector<8x288xf32>
    %c0_94 = arith.constant 0 : index
    %c37_95 = arith.constant 37 : index
    %89 = vector.load %arg4[%c0_94, %c37_95] : memref<8x384xf32, #tpu.memory_space<vmem>>, vector<8x288xf32>
    %c0_96 = arith.constant 0 : index
    %c38_97 = arith.constant 38 : index
    %90 = vector.load %arg4[%c0_96, %c38_97] : memref<8x384xf32, #tpu.memory_space<vmem>>, vector<8x288xf32>
    %91 = tpu.concatenate %82, %83, %84, %85, %86, %87, %88, %89, %90, %26 in 0 : vector<8x288xf32>, vector<8x288xf32>, vector<8x288xf32>, vector<8x288xf32>, vector<8x288xf32>, vector<8x288xf32>, vector<8x288xf32>, vector<8x288xf32>, vector<8x288xf32>, vector<8x288xf32> -> vector<80x288xf32>
    %c3 = arith.constant 3 : index
    %c0_98 = arith.constant 0 : index
    %c0_99 = arith.constant 0 : index
    %92 = vector.load %arg2[%c3, %c0_98, %c0_99] : memref<4x8x80xf32, #tpu.memory_space<vmem>>, vector<1x8x80xf32>
    %93 = vector.shape_cast %92 : vector<1x8x80xf32> to vector<8x80xf32>
    %cst_100 = arith.constant dense<0.000000e+00> : vector<8x288xf32>
    %94 = tpu.matmul %93, %91, %cst_100 {dimension_numbers = #tpu.dot_dimension_numbers<[1], [0], [0], [1], [0, 0, 1, 1], [], []>, precision = #tpu.contract_precision<fp32>} : vector<8x80xf32>, vector<80x288xf32>, vector<8x288xf32> -> vector<8x288xf32>
    %95 = arith.addf %94, %63 : vector<8x288xf32>
    %c0_101 = arith.constant 0 : index
    %c0_102 = arith.constant 0 : index
    %c0_103 = arith.constant 0 : index
    %96 = vector.load %arg3[%c0_101, %c0_102, %c0_103] : memref<1x8x288xf32, #tpu.memory_space<vmem>>, vector<1x8x288xf32>
    %97 = vector.shape_cast %96 : vector<1x8x288xf32> to vector<8x288xf32>
    %98 = vector.shape_cast %95 : vector<8x288xf32> to vector<1x8x288xf32>
    tpu.vector_store %arg3[%c0_101, %c0_102, %c0_103], %98 {strides = array<i32>} : memref<1x8x288xf32, #tpu.memory_space<vmem>>, vector<1x8x288xf32>,
    return
  }
  func.func @transform_0(%arg0: i32) -> (i32, i32, i32) {
    %c0_i32 = arith.constant 0 : i32
    %c0_i32_0 = arith.constant 0 : i32
    %c0_i32_1 = arith.constant 0 : i32
    return %arg0, %c0_i32, %c0_i32_0 : i32, i32, i32
  }
  func.func @transform_1(%arg0: i32) -> (i32, i32, i32) {
    %c0_i32 = arith.constant 0 : i32
    %c0_i32_0 = arith.constant 0 : i32
    %c0_i32_1 = arith.constant 0 : i32
    %c0_i32_2 = arith.constant 0 : i32
    return %c0_i32, %c0_i32_0, %c0_i32_1 : i32, i32, i32
  }
  func.func @transform_2(%arg0: i32) -> (i32, i32, i32) {
    %c0_i32 = arith.constant 0 : i32
    %c0_i32_0 = arith.constant 0 : i32
    %c0_i32_1 = arith.constant 0 : i32
    return %arg0, %c0_i32, %c0_i32_0 : i32, i32, i32
  }
}

</mosaic_0001>

<llo_original>
// kernel: tile.38
$region0: #{tile.38}
  #allocation0 [shape = 's32[1]{0}', space=sflag, size = 0x4, scoped, tag = 'scoped memory for tile.38']
  %s0 = inlined_call_operand.vmem [shape: f32[4], index: 0, kind: input, shape index: {}]
  %s1 = inlined_call_operand.vmem [shape: f32[2,4], index: 1, kind: output, shape index: {}]
  // Predicated region
  $region2: #{tile.38} parent=0 // pred_check
    _
  $region3: #{tile.38} parent=0 // pred_check_branch
    %3 = sbr.rel (0) target = $region5
  $region4: #{tile.38} parent=0 // pred_region
    _
  $region5: #{tile.38} parent=0 // pred_fallthru
    _
  %v4 = vld [vmem:[%s0] ss:$0 sm:$0xff]
  %5 = vst [vmem:[%s1] sm:$0x3] %v4

// kernel: _stacked_blocks_impl.1
$region0: #{_stacked_blocks_impl.1}
  #allocation0 [shape = 'u32[]', space=smem, size = 0x4, offset = 0x4, fixed_abs, tag = 'smem constant byte address 0x4 - core index']
  #allocation1 [shape = 'u32[72,128]{1,0:T(1,128)}', space=vmem, size = 0x9000, scoped, tag = 'internal scratch']
  #allocation2 [shape = 'f32[8,384]{1,0:T(8,128)}', space=vmem, size = 0x3000, scoped, tag = 'scratch operand']
  %s0 = inlined_call_operand.vmem [shape: f32[1,8,384], index: 0, kind: input, shape index: {}]
  %s1 = inlined_call_operand.vmem [shape: f32[4,8,80], index: 1, kind: input, shape index: {}]
  %s2 = inlined_call_operand.vmem [shape: f32[1,8,288], index: 2, kind: output, shape index: {}]
  %s3 = sld [smem:[#allocation0]]
  $region18: #{_stacked_blocks_impl.1} parent=0
    _
  %s5 = ssub.s32 1, %s3
  %s6 = scalar_select 0, %s5, %s3
  // Predicated region
  $region2: #{_stacked_blocks_impl.1} parent=0 // pred_check
    _
  $region3: #{_stacked_blocks_impl.1} parent=0 // pred_check_branch
    %8 = sbr.rel (0) target = $region5
  $region4: #{_stacked_blocks_impl.1} parent=0 // pred_region
    _
  $region5: #{_stacked_blocks_impl.1} parent=0 // pred_fallthru
    _
  // Predicated region
  $region6: #{_stacked_blocks_impl.1} parent=0 // pred_check
    _
  $region7: #{_stacked_blocks_impl.1} parent=0 // pred_check_branch
    %10 = sbr.rel (0) target = $region9
  $region8: #{_stacked_blocks_impl.1} parent=0 // pred_region
    _
  $region9: #{_stacked_blocks_impl.1} parent=0 // pred_fallthru
    _
  %v11 = vld [vmem:[%s0] sm:$0xff]
  %v12 = vld [vmem:[%s0 + $0x8] sm:$0xff]
  %v13 = vld [vmem:[%s0 + $0x10] sm:$0xff]
  %14 = vst [vmem:[#allocation2] sm:$0xff] %v11
  %15 = vst [vmem:[#allocation2 + $0x8] sm:$0xff] %v12
  %16 = vst [vmem:[#allocation2 + $0x10] sm:$0xff] %v13
  %v17 = vlaneseq
  %v18 = vand.u32 %v17, 127
  %v19 = vadd.s32 %v18, 128
  %v20 = vadd.s32 %v18, 256
  %vm21 = vcmp.lt.s32.totalorder %v18, 0
  %v22 = vsub.s32 0, %v18
  %v23 = vsel %vm21, %v22, %v18
  %v24 = vand.u32 %v23, 65535
  %v25 = vshrl.u32 %v23, 16
  %v27 = vmul.u32 %v24, 14564
  %v28 = vmul.u32 %v24, 58254
  %v29 = vmul.u32 %v25, 14564
  %v30 = vmul.u32 %v25, 58254
  %v31 = vshll.u32 %v28, 16
  %v32 = vshrl.u32 %v28, 16
  %v33 = vshll.u32 %v29, 16
  %v34 = vshrl.u32 %v29, 16
  %vm35 = vc.u32 %v27, %v31
  %v36 = vsel %vm35, 1, 0
  %v37 = vadd.s32 %v27, %v31
  %v38 = vadd.s32 %v30, %v36
  %vm39 = vc.u32 %v37, %v33
  %v40 = vsel %vm39, 1, 0
  %v41 = vadd.s32 %v37, %v33
  %v42 = vadd.s32 %v38, %v40
  %v43 = vadd.s32 %v42, %v32
  %v44 = vadd.s32 %v43, %v34
  %v45 = vshrl.u32 %v44, 4
  %v46 = vmul.u32 %v45, 18
  %v47 = vsub.s32 %v23, %v46
  %v48 = vsub.s32 0, %v47
  %v49 = vsel %vm21, %v48, %v47
  %vm50 = vcmp.lt.s32.totalorder %v19, 0
  %v51 = vsub.s32 0, %v19
  %v52 = vsel %vm50, %v51, %v19
  %v53 = vand.u32 %v52, 65535
  %v54 = vshrl.u32 %v52, 16
  %v56 = vmul.u32 %v53, 14564
  %v57 = vmul.u32 %v53, 58254
  %v58 = vmul.u32 %v54, 14564
  %v59 = vmul.u32 %v54, 58254
  %v60 = vshll.u32 %v57, 16
  %v61 = vshrl.u32 %v57, 16
  %v62 = vshll.u32 %v58, 16
  %v63 = vshrl.u32 %v58, 16
  %vm64 = vc.u32 %v56, %v60
  %v65 = vsel %vm64, 1, 0
  %v66 = vadd.s32 %v56, %v60
  %v67 = vadd.s32 %v59, %v65
  %vm68 = vc.u32 %v66, %v62
  %v69 = vsel %vm68, 1, 0
  %v70 = vadd.s32 %v66, %v62
  %v71 = vadd.s32 %v67, %v69
  %v72 = vadd.s32 %v71, %v61
  %v73 = vadd.s32 %v72, %v63
  %v74 = vshrl.u32 %v73, 4
  %v75 = vmul.u32 %v74, 18
  %v76 = vsub.s32 %v52, %v75
  %v77 = vsub.s32 0, %v76
  %v78 = vsel %vm50, %v77, %v76
  %vm79 = vcmp.lt.s32.totalorder %v20, 0
  %v80 = vsub.s32 0, %v20
  %v81 = vsel %vm79, %v80, %v20
  %v82 = vand.u32 %v81, 65535
  %v83 = vshrl.u32 %v81, 16
  %v85 = vmul.u32 %v82, 14564
  %v86 = vmul.u32 %v82, 58254
  %v87 = vmul.u32 %v83, 14564
  %v88 = vmul.u32 %v83, 58254
  %v89 = vshll.u32 %v86, 16
  %v90 = vshrl.u32 %v86, 16
  %v91 = vshll.u32 %v87, 16
  %v92 = vshrl.u32 %v87, 16
  %vm93 = vc.u32 %v85, %v89
  %v94 = vsel %vm93, 1, 0
  %v95 = vadd.s32 %v85, %v89
  %v96 = vadd.s32 %v88, %v94
  %vm97 = vc.u32 %v95, %v91
  %v98 = vsel %vm97, 1, 0
  %v99 = vadd.s32 %v95, %v91
  %v100 = vadd.s32 %v96, %v98
  %v101 = vadd.s32 %v100, %v90
  %v102 = vadd.s32 %v101, %v92
  %v103 = vshrl.u32 %v102, 4
  %v104 = vmul.u32 %v103, 18
  %v105 = vsub.s32 %v81, %v104
  %v106 = vsub.s32 0, %v105
  %v107 = vsel %vm79, %v106, %v105
  %vm108 = vcmp.ne.s32.totalorder %v49, 0
  %vm109 = vcmp.ne.s32.totalorder %v78, 0
  %vm110 = vcmp.ne.s32.totalorder %v107, 0
  %vm111 = vcmp.lt.s32.totalorder %v49, 0
  %vm112 = vcmp.lt.s32.totalorder %v78, 0
  %vm113 = vcmp.lt.s32.totalorder %v107, 0
  %vm114 = vmand %vm111, %vm108
  %vm115 = vmand %vm112, %vm109
  %vm116 = vmand %vm113, %vm110
  %v117 = vadd.s32 %v49, 18
  %v118 = vadd.s32 %v78, 18
  %v119 = vadd.s32 %v107, 18
  %v120 = vsel %vm114, %v117, %v49
  %v121 = vsel %vm115, %v118, %v78
  %v122 = vsel %vm116, %v119, %v107
  %vm123 = vcmp.lt.s32.totalorder %v120, 16
  %vm124 = vcmp.lt.s32.totalorder %v121, 16
  %vm125 = vcmp.lt.s32.totalorder %v122, 16
  %v126 = vlaneseq
  %v127 = vshrl.u32 %v126, 7
  %vm128 = vcmp.eq.s32.totalorder %v127, 0
  %v129 = vsel %vm128, 1, 0
  %v130 = vcvt.s32.f32 %v129
  %v131 = vld [vmem:[#allocation2] sm:$0xff]
  %v132 = vld [vmem:[#allocation2 + $0x8] sm:$0xff]
  %v133 = vld [vmem:[#allocation2 + $0x10] sm:$0xff]
  %137 = vrot.lane.b32.xlu0 %v131, 127
  %v138 = vpop.permute.xlu0 %137
  %139 = vrot.lane.b32.xlu0 %v132, 127
  %v140 = vpop.permute.xlu0 %139
  %141 = vrot.lane.b32.xlu0 %v133, 127
  %v142 = vpop.permute.xlu0 %141
  %vm143 = vcmask 1039360
  %v144 = vsel %vm143, %v138, %v140
  %v145 = vsel %vm143, %v140, %v142
  %149 = vrot.lane.b32.xlu0 %v131, 126
  %v150 = vpop.permute.xlu0 %149
  %151 = vrot.lane.b32.xlu0 %v132, 126
  %v152 = vpop.permute.xlu0 %151
  %153 = vrot.lane.b32.xlu0 %v133, 126
  %v154 = vpop.permute.xlu0 %153
  %vm155 = vcmask 1031168
  %v156 = vsel %vm155, %v150, %v152
  %v157 = vsel %vm155, %v152, %v154
  %161 = vrot.lane.b32.xlu0 %v131, 110
  %v162 = vpop.permute.xlu0 %161
  %163 = vrot.lane.b32.xlu0 %v132, 110
  %v164 = vpop.permute.xlu0 %163
  %165 = vrot.lane.b32.xlu0 %v133, 110
  %v166 = vpop.permute.xlu0 %165
  %vm167 = vcmask 900096
  %v168 = vsel %vm167, %v162, %v164
  %v169 = vsel %vm167, %v164, %v166
  %173 = vrot.lane.b32.xlu0 %v131, 109
  %v174 = vpop.permute.xlu0 %173
  %175 = vrot.lane.b32.xlu0 %v132, 109
  %v176 = vpop.permute.xlu0 %175
  %177 = vrot.lane.b32.xlu0 %v133, 109
  %v178 = vpop.permute.xlu0 %177
  %vm179 = vcmask 891904
  %v180 = vsel %vm179, %v174, %v176
  %v181 = vsel %vm179, %v176, %v178
  %185 = vrot.lane.b32.xlu0 %v131, 108
  %v186 = vpop.permute.xlu0 %185
  %187 = vrot.lane.b32.xlu0 %v132, 108
  %v188 = vpop.permute.xlu0 %187
  %189 = vrot.lane.b32.xlu0 %v133, 108
  %v190 = vpop.permute.xlu0 %189
  %vm191 = vcmask 883712
  %v192 = vsel %vm191, %v186, %v188
  %v193 = vsel %vm191, %v188, %v190
  %197 = vrot.lane.b32.xlu0 %v131, 92
  %v198 = vpop.permute.xlu0 %197
  %199 = vrot.lane.b32.xlu0 %v132, 92
  %v200 = vpop.permute.xlu0 %199
  %201 = vrot.lane.b32.xlu0 %v133, 92
  %v202 = vpop.permute.xlu0 %201
  %vm203 = vcmask 752640
  %v204 = vsel %vm203, %v198, %v200
  %v205 = vsel %vm203, %v200, %v202
  %209 = vrot.lane.b32.xlu0 %v131, 91
  %v210 = vpop.permute.xlu0 %209
  %211 = vrot.lane.b32.xlu0 %v132, 91
  %v212 = vpop.permute.xlu0 %211
  %213 = vrot.lane.b32.xlu0 %v133, 91
  %v214 = vpop.permute.xlu0 %213
  %vm215 = vcmask 744448
  %v216 = vsel %vm215, %v210, %v212
  %v217 = vsel %vm215, %v212, %v214
  %221 = vrot.lane.b32.xlu0 %v131, 90
  %v222 = vpop.permute.xlu0 %221
  %223 = vrot.lane.b32.xlu0 %v132, 90
  %v224 = vpop.permute.xlu0 %223
  %225 = vrot.lane.b32.xlu0 %v133, 90
  %v226 = vpop.permute.xlu0 %225
  %vm227 = vcmask 736256
  %v228 = vsel %vm227, %v222, %v224
  %v229 = vsel %vm227, %v224, %v226
  %v233 = vld [vmem:[%s1] sm:$0xff]
  %vm234 = vcmask 654336
  %v236 = vsel %vm234, %v233, 0
  %238 = vmatpush.msra.mxu0 0.0
  %239 = vmatpush.msra.mxu0 0.0
  %240 = vmatpush.msra.mxu0 0.0
  %241 = vmatpush.msra.mxu0 0.0
  %242 = vmatpush.msra.mxu0 0.0
  %243 = vmatpush.msra.mxu0 0.0
  %v244 = vand.u32 %v130, 4294901760
  %245 = vmatpush.msra.mxu0 %v244
  %v246 = vand.u32 %v228, 4294901760
  %247 = vmatpush.msra.mxu0 %v246
  %v248 = vand.u32 %v216, 4294901760
  %249 = vmatpush.msra.mxu0 %v248
  %v250 = vand.u32 %v204, 4294901760
  %251 = vmatpush.msra.mxu0 %v250
  %v252 = vand.u32 %v192, 4294901760
  %253 = vmatpush.msra.mxu0 %v252
  %v254 = vand.u32 %v180, 4294901760
  %255 = vmatpush.msra.mxu0 %v254
  %v256 = vand.u32 %v168, 4294901760
  %257 = vmatpush.msra.mxu0 %v256
  %v258 = vand.u32 %v156, 4294901760
  %259 = vmatpush.msra.mxu0 %v258
  %v260 = vand.u32 %v144, 4294901760
  %261 = vmatpush.msra.mxu0 %v260
  %v262 = vand.u32 %v131, 4294901760
  %263 = vmatpush.msra.mxu0 %v262
  %v264 = vand.u32 %v236, 4294901760
  %v265 = vsub.f32 %v236, %v264
  %v266 = vand.u32 %v265, 4294901760
  %v267 = vsub.f32 %v265, %v266
  %v268 = vand.u32 %v267, 4294901760
  %269 = vmatmul.f32.gmra.mxu0 %v268
  %v270 = vpop.f32.mrf.mxu0
  %v271 = vadd.f32 0.0, %v270
  %272 = vdwg.mxu0
  %273 = vmatpush.msra.mxu0 0.0
  %274 = vmatpush.msra.mxu0 0.0
  %275 = vmatpush.msra.mxu0 0.0
  %276 = vmatpush.msra.mxu0 0.0
  %277 = vmatpush.msra.mxu0 0.0
  %278 = vmatpush.msra.mxu0 0.0
  %v279 = vand.u32 %v130, 4294901760
  %v280 = vsub.f32 %v130, %v279
  %v281 = vand.u32 %v280, 4294901760
  %v282 = vsub.f32 %v280, %v281
  %v283 = vand.u32 %v282, 4294901760
  %284 = vmatpush.msra.mxu0 %v283
  %v285 = vand.u32 %v228, 4294901760
  %v286 = vsub.f32 %v228, %v285
  %v287 = vand.u32 %v286, 4294901760
  %v288 = vsub.f32 %v286, %v287
  %v289 = vand.u32 %v288, 4294901760
  %290 = vmatpush.msra.mxu0 %v289
  %v291 = vand.u32 %v216, 4294901760
  %v292 = vsub.f32 %v216, %v291
  %v293 = vand.u32 %v292, 4294901760
  %v294 = vsub.f32 %v292, %v293
  %v295 = vand.u32 %v294, 4294901760
  %296 = vmatpush.msra.mxu0 %v295
  %v297 = vand.u32 %v204, 4294901760
  %v298 = vsub.f32 %v204, %v297
  %v299 = vand.u32 %v298, 4294901760
  %v300 = vsub.f32 %v298, %v299
  %v301 = vand.u32 %v300, 4294901760
  %302 = vmatpush.msra.mxu0 %v301
  %v303 = vand.u32 %v192, 4294901760
  %v304 = vsub.f32 %v192, %v303
  %v305 = vand.u32 %v304, 4294901760
  %v306 = vsub.f32 %v304, %v305
  %v307 = vand.u32 %v306, 4294901760
  %308 = vmatpush.msra.mxu0 %v307
  %v309 = vand.u32 %v180, 4294901760
  %v310 = vsub.f32 %v180, %v309
  %v311 = vand.u32 %v310, 4294901760
  %v312 = vsub.f32 %v310, %v311
  %v313 = vand.u32 %v312, 4294901760
  %314 = vmatpush.msra.mxu0 %v313
  %v315 = vand.u32 %v168, 4294901760
  %v316 = vsub.f32 %v168, %v315
  %v317 = vand.u32 %v316, 4294901760
  %v318 = vsub.f32 %v316, %v317
  %v319 = vand.u32 %v318, 4294901760
  %320 = vmatpush.msra.mxu0 %v319
  %v321 = vand.u32 %v156, 4294901760
  %v322 = vsub.f32 %v156, %v321
  %v323 = vand.u32 %v322, 4294901760
  %v324 = vsub.f32 %v322, %v323
  %v325 = vand.u32 %v324, 4294901760
  %326 = vmatpush.msra.mxu0 %v325
  %v327 = vand.u32 %v144, 4294901760
  %v328 = vsub.f32 %v144, %v327
  %v329 = vand.u32 %v328, 4294901760
  %v330 = vsub.f32 %v328, %v329
  %v331 = vand.u32 %v330, 4294901760
  %332 = vmatpush.msra.mxu0 %v331
  %v333 = vand.u32 %v131, 4294901760
  %v334 = vsub.f32 %v131, %v333
  %v335 = vand.u32 %v334, 4294901760
  %v336 = vsub.f32 %v334, %v335
  %v337 = vand.u32 %v336, 4294901760
  %338 = vmatpush.msra.mxu0 %v337
  %v339 = vand.u32 %v236, 4294901760
  %340 = vmatmul.f32.gmra.mxu0 %v339
  %v341 = vpop.f32.mrf.mxu0
  %v342 = vadd.f32 %v271, %v341
  %343 = vdwg.mxu0
  %344 = vmatpush.msra.mxu0 0.0
  %345 = vmatpush.msra.mxu0 0.0
  %346 = vmatpush.msra.mxu0 0.0
  %347 = vmatpush.msra.mxu0 0.0
  %348 = vmatpush.msra.mxu0 0.0
  %349 = vmatpush.msra.mxu0 0.0
  %v350 = vand.u32 %v130, 4294901760
  %v351 = vsub.f32 %v130, %v350
  %352 = vmatpush.msra.mxu0 %v351
  %v353 = vand.u32 %v228, 4294901760
  %v354 = vsub.f32 %v228, %v353
  %355 = vmatpush.msra.mxu0 %v354
  %v356 = vand.u32 %v216, 4294901760
  %v357 = vsub.f32 %v216, %v356
  %358 = vmatpush.msra.mxu0 %v357
  %v359 = vand.u32 %v204, 4294901760
  %v360 = vsub.f32 %v204, %v359
  %361 = vmatpush.msra.mxu0 %v360
  %v362 = vand.u32 %v192, 4294901760
  %v363 = vsub.f32 %v192, %v362
  %364 = vmatpush.msra.mxu0 %v363
  %v365 = vand.u32 %v180, 4294901760
  %v366 = vsub.f32 %v180, %v365
  %367 = vmatpush.msra.mxu0 %v366
  %v368 = vand.u32 %v168, 4294901760
  %v369 = vsub.f32 %v168, %v368
  %370 = vmatpush.msra.mxu0 %v369
  %v371 = vand.u32 %v156, 4294901760
  %v372 = vsub.f32 %v156, %v371
  %373 = vmatpush.msra.mxu0 %v372
  %v374 = vand.u32 %v144, 4294901760
  %v375 = vsub.f32 %v144, %v374
  %376 = vmatpush.msra.mxu0 %v375
  %v377 = vand.u32 %v131, 4294901760
  %v378 = vsub.f32 %v131, %v377
  %379 = vmatpush.msra.mxu0 %v378
  %v380 = vand.u32 %v236, 4294901760
  %v381 = vsub.f32 %v236, %v380
  %382 = vmatmul.f32.gmra.mxu0 %v381
  %v383 = vpop.f32.mrf.mxu0
  %v384 = vadd.f32 %v342, %v383
  %385 = vdwg.mxu0
  %386 = vmatpush.msra.mxu0 0.0
  %387 = vmatpush.msra.mxu0 0.0
  %388 = vmatpush.msra.mxu0 0.0
  %389 = vmatpush.msra.mxu0 0.0
  %390 = vmatpush.msra.mxu0 0.0
  %391 = vmatpush.msra.mxu0 0.0
  %v392 = vand.u32 %v130, 4294901760
  %393 = vmatpush.msra.mxu0 %v392
  %v394 = vand.u32 %v228, 4294901760
  %395 = vmatpush.msra.mxu0 %v394
  %v396 = vand.u32 %v216, 4294901760
  %397 = vmatpush.msra.mxu0 %v396
  %v398 = vand.u32 %v204, 4294901760
  %399 = vmatpush.msra.mxu0 %v398
  %v400 = vand.u32 %v192, 4294901760
  %401 = vmatpush.msra.mxu0 %v400
  %v402 = vand.u32 %v180, 4294901760
  %403 = vmatpush.msra.mxu0 %v402
  %v404 = vand.u32 %v168, 4294901760
  %405 = vmatpush.msra.mxu0 %v404
  %v406 = vand.u32 %v156, 4294901760
  %407 = vmatpush.msra.mxu0 %v406
  %v408 = vand.u32 %v144, 4294901760
  %409 = vmatpush.msra.mxu0 %v408
  %v410 = vand.u32 %v131, 4294901760
  %411 = vmatpush.msra.mxu0 %v410
  %v412 = vand.u32 %v236, 4294901760
  %v413 = vsub.f32 %v236, %v412
  %v414 = vand.u32 %v413, 4294901760
  %415 = vmatmul.f32.gmra.mxu0 %v414
  %v416 = vpop.f32.mrf.mxu0
  %v417 = vadd.f32 %v384, %v416
  %418 = vdwg.mxu0
  %419 = vmatpush.msra.mxu0 0.0
  %420 = vmatpush.msra.mxu0 0.0
  %421 = vmatpush.msra.mxu0 0.0
  %422 = vmatpush.msra.mxu0 0.0
  %423 = vmatpush.msra.mxu0 0.0
  %424 = vmatpush.msra.mxu0 0.0
  %v425 = vand.u32 %v130, 4294901760
  %v426 = vsub.f32 %v130, %v425
  %v427 = vand.u32 %v426, 4294901760
  %428 = vmatpush.msra.mxu0 %v427
  %v429 = vand.u32 %v228, 4294901760
  %v430 = vsub.f32 %v228, %v429
  %v431 = vand.u32 %v430, 4294901760
  %432 = vmatpush.msra.mxu0 %v431
  %v433 = vand.u32 %v216, 4294901760
  %v434 = vsub.f32 %v216, %v433
  %v435 = vand.u32 %v434, 4294901760
  %436 = vmatpush.msra.mxu0 %v435
  %v437 = vand.u32 %v204, 4294901760
  %v438 = vsub.f32 %v204, %v437
  %v439 = vand.u32 %v438, 4294901760
  %440 = vmatpush.msra.mxu0 %v439
  %v441 = vand.u32 %v192, 4294901760
  %v442 = vsub.f32 %v192, %v441
  %v443 = vand.u32 %v442, 4294901760
  %444 = vmatpush.msra.mxu0 %v443
  %v445 = vand.u32 %v180, 4294901760
  %v446 = vsub.f32 %v180, %v445
  %v447 = vand.u32 %v446, 4294901760
  %448 = vmatpush.msra.mxu0 %v447
  %v449 = vand.u32 %v168, 4294901760
  %v450 = vsub.f32 %v168, %v449
  %v451 = vand.u32 %v450, 4294901760
  %452 = vmatpush.msra.mxu0 %v451
  %v453 = vand.u32 %v156, 4294901760
  %v454 = vsub.f32 %v156, %v453
  %v455 = vand.u32 %v454, 4294901760
  %456 = vmatpush.msra.mxu0 %v455
  %v457 = vand.u32 %v144, 4294901760
  %v458 = vsub.f32 %v144, %v457
  %v459 = vand.u32 %v458, 4294901760
  %460 = vmatpush.msra.mxu0 %v459
  %v461 = vand.u32 %v131, 4294901760
  %v462 = vsub.f32 %v131, %v461
  %v463 = vand.u32 %v462, 4294901760
  %464 = vmatpush.msra.mxu0 %v463
  %v465 = vand.u32 %v236, 4294901760
  %466 = vmatmul.f32.gmra.mxu0 %v465
  %v467 = vpop.f32.mrf.mxu0
  %v468 = vadd.f32 %v417, %v467
  %469 = vdwg.mxu0
  %470 = vmatpush.msra.mxu0 0.0
  %471 = vmatpush.msra.mxu0 0.0
  %472 = vmatpush.msra.mxu0 0.0
  %473 = vmatpush.msra.mxu0 0.0
  %474 = vmatpush.msra.mxu0 0.0
  %475 = vmatpush.msra.mxu0 0.0
  %v476 = vand.u32 %v130, 4294901760
  %477 = vmatpush.msra.mxu0 %v476
  %v478 = vand.u32 %v228, 4294901760
  %479 = vmatpush.msra.mxu0 %v478
  %v480 = vand.u32 %v216, 4294901760
  %481 = vmatpush.msra.mxu0 %v480
  %v482 = vand.u32 %v204, 4294901760
  %483 = vmatpush.msra.mxu0 %v482
  %v484 = vand.u32 %v192, 4294901760
  %485 = vmatpush.msra.mxu0 %v484
  %v486 = vand.u32 %v180, 4294901760
  %487 = vmatpush.msra.mxu0 %v486
  %v488 = vand.u32 %v168, 4294901760
  %489 = vmatpush.msra.mxu0 %v488
  %v490 = vand.u32 %v156, 4294901760
  %491 = vmatpush.msra.mxu0 %v490
  %v492 = vand.u32 %v144, 4294901760
  %493 = vmatpush.msra.mxu0 %v492
  %v494 = vand.u32 %v131, 4294901760
  %495 = vmatpush.msra.mxu0 %v494
  %v496 = vand.u32 %v236, 4294901760
  %497 = vmatmul.f32.gmra.mxu0 %v496
  %v498 = vpop.f32.mrf.mxu0
  %v499 = vadd.f32 %v468, %v498
  %500 = vdwg.mxu0
  %501 = vmatpush.msra.mxu0 0.0
  %502 = vmatpush.msra.mxu0 0.0
  %503 = vmatpush.msra.mxu0 0.0
  %504 = vmatpush.msra.mxu0 0.0
  %505 = vmatpush.msra.mxu0 0.0
  %506 = vmatpush.msra.mxu0 0.0
  %v507 = vand.u32 %v130, 4294901760
  %508 = vmatpush.msra.mxu0 %v507
  %v509 = vand.u32 %v229, 4294901760
  %510 = vmatpush.msra.mxu0 %v509
  %v511 = vand.u32 %v217, 4294901760
  %512 = vmatpush.msra.mxu0 %v511
  %v513 = vand.u32 %v205, 4294901760
  %514 = vmatpush.msra.mxu0 %v513
  %v515 = vand.u32 %v193, 4294901760
  %516 = vmatpush.msra.mxu0 %v515
  %v517 = vand.u32 %v181, 4294901760
  %518 = vmatpush.msra.mxu0 %v517
  %v519 = vand.u32 %v169, 4294901760
  %520 = vmatpush.msra.mxu0 %v519
  %v521 = vand.u32 %v157, 4294901760
  %522 = vmatpush.msra.mxu0 %v521
  %v523 = vand.u32 %v145, 4294901760
  %524 = vmatpush.msra.mxu0 %v523
  %v525 = vand.u32 %v132, 4294901760
  %526 = vmatpush.msra.mxu0 %v525
  %v527 = vand.u32 %v236, 4294901760
  %v528 = vsub.f32 %v236, %v527
  %v529 = vand.u32 %v528, 4294901760
  %v530 = vsub.f32 %v528, %v529
  %v531 = vand.u32 %v530, 4294901760
  %532 = vmatmul.f32.gmra.mxu0 %v531
  %v533 = vpop.f32.mrf.mxu0
  %v534 = vadd.f32 0.0, %v533
  %535 = vdwg.mxu0
  %536 = vmatpush.msra.mxu0 0.0
  %537 = vmatpush.msra.mxu0 0.0
  %538 = vmatpush.msra.mxu0 0.0
  %539 = vmatpush.msra.mxu0 0.0
  %540 = vmatpush.msra.mxu0 0.0
  %541 = vmatpush.msra.mxu0 0.0
  %v542 = vand.u32 %v130, 4294901760
  %v543 = vsub.f32 %v130, %v542
  %v544 = vand.u32 %v543, 4294901760
  %v545 = vsub.f32 %v543, %v544
  %v546 = vand.u32 %v545, 4294901760
  %547 = vmatpush.msra.mxu0 %v546
  %v548 = vand.u32 %v229, 4294901760
  %v549 = vsub.f32 %v229, %v548
  %v550 = vand.u32 %v549, 4294901760
  %v551 = vsub.f32 %v549, %v550
  %v552 = vand.u32 %v551, 4294901760
  %553 = vmatpush.msra.mxu0 %v552
  %v554 = vand.u32 %v217, 4294901760
  %v555 = vsub.f32 %v217, %v554
  %v556 = vand.u32 %v555, 4294901760
  %v557 = vsub.f32 %v555, %v556
  %v558 = vand.u32 %v557, 4294901760
  %559 = vmatpush.msra.mxu0 %v558
  %v560 = vand.u32 %v205, 4294901760
  %v561 = vsub.f32 %v205, %v560
  %v562 = vand.u32 %v561, 4294901760
  %v563 = vsub.f32 %v561, %v562
  %v564 = vand.u32 %v563, 4294901760
  %565 = vmatpush.msra.mxu0 %v564
  %v566 = vand.u32 %v193, 4294901760
  %v567 = vsub.f32 %v193, %v566
  %v568 = vand.u32 %v567, 4294901760
  %v569 = vsub.f32 %v567, %v568
  %v570 = vand.u32 %v569, 4294901760
  %571 = vmatpush.msra.mxu0 %v570
  %v572 = vand.u32 %v181, 4294901760
  %v573 = vsub.f32 %v181, %v572
  %v574 = vand.u32 %v573, 4294901760
  %v575 = vsub.f32 %v573, %v574
  %v576 = vand.u32 %v575, 4294901760
  %577 = vmatpush.msra.mxu0 %v576
  %v578 = vand.u32 %v169, 4294901760
  %v579 = vsub.f32 %v169, %v578
  %v580 = vand.u32 %v579, 4294901760
  %v581 = vsub.f32 %v579, %v580
  %v582 = vand.u32 %v581, 4294901760
  %583 = vmatpush.msra.mxu0 %v582
  %v584 = vand.u32 %v157, 4294901760
  %v585 = vsub.f32 %v157, %v584
  %v586 = vand.u32 %v585, 4294901760
  %v587 = vsub.f32 %v585, %v586
  %v588 = vand.u32 %v587, 4294901760
  %589 = vmatpush.msra.mxu0 %v588
  %v590 = vand.u32 %v145, 4294901760
  %v591 = vsub.f32 %v145, %v590
  %v592 = vand.u32 %v591, 4294901760
  %v593 = vsub.f32 %v591, %v592
  %v594 = vand.u32 %v593, 4294901760
  %595 = vmatpush.msra.mxu0 %v594
  %v596 = vand.u32 %v132, 4294901760
  %v597 = vsub.f32 %v132, %v596
  %v598 = vand.u32 %v597, 4294901760
  %v599 = vsub.f32 %v597, %v598
  %v600 = vand.u32 %v599, 4294901760
  %601 = vmatpush.msra.mxu0 %v600
  %v602 = vand.u32 %v236, 4294901760
  %603 = vmatmul.f32.gmra.mxu0 %v602
  %v604 = vpop.f32.mrf.mxu0
  %v605 = vadd.f32 %v534, %v604
  %606 = vdwg.mxu0
  %607 = vmatpush.msra.mxu0 0.0
  %608 = vmatpush.msra.mxu0 0.0
  %609 = vmatpush.msra.mxu0 0.0
  %610 = vmatpush.msra.mxu0 0.0
  %611 = vmatpush.msra.mxu0 0.0
  %612 = vmatpush.msra.mxu0 0.0
  %v613 = vand.u32 %v130, 4294901760
  %v614 = vsub.f32 %v130, %v613
  %615 = vmatpush.msra.mxu0 %v614
  %v616 = vand.u32 %v229, 4294901760
  %v617 = vsub.f32 %v229, %v616
  %618 = vmatpush.msra.mxu0 %v617
  %v619 = vand.u32 %v217, 4294901760
  %v620 = vsub.f32 %v217, %v619
  %621 = vmatpush.msra.mxu0 %v620
  %v622 = vand.u32 %v205, 4294901760
  %v623 = vsub.f32 %v205, %v622
  %624 = vmatpush.msra.mxu0 %v623
  %v625 = vand.u32 %v193, 4294901760
  %v626 = vsub.f32 %v193, %v625
  %627 = vmatpush.msra.mxu0 %v626
  %v628 = vand.u32 %v181, 4294901760
  %v629 = vsub.f32 %v181, %v628
  %630 = vmatpush.msra.mxu0 %v629
  %v631 = vand.u32 %v169, 4294901760
  %v632 = vsub.f32 %v169, %v631
  %633 = vmatpush.msra.mxu0 %v632
  %v634 = vand.u32 %v157, 4294901760
  %v635 = vsub.f32 %v157, %v634
  %636 = vmatpush.msra.mxu0 %v635
  %v637 = vand.u32 %v145, 4294901760
  %v638 = vsub.f32 %v145, %v637
  %639 = vmatpush.msra.mxu0 %v638
  %v640 = vand.u32 %v132, 4294901760
  %v641 = vsub.f32 %v132, %v640
  %642 = vmatpush.msra.mxu0 %v641
  %v643 = vand.u32 %v236, 4294901760
  %v644 = vsub.f32 %v236, %v643
  %645 = vmatmul.f32.gmra.mxu0 %v644
  %v646 = vpop.f32.mrf.mxu0
  %v647 = vadd.f32 %v605, %v646
  %648 = vdwg.mxu0
  %649 = vmatpush.msra.mxu0 0.0
  %650 = vmatpush.msra.mxu0 0.0
  %651 = vmatpush.msra.mxu0 0.0
  %652 = vmatpush.msra.mxu0 0.0
  %653 = vmatpush.msra.mxu0 0.0
  %654 = vmatpush.msra.mxu0 0.0
  %v655 = vand.u32 %v130, 4294901760
  %656 = vmatpush.msra.mxu0 %v655
  %v657 = vand.u32 %v229, 4294901760
  %658 = vmatpush.msra.mxu0 %v657
  %v659 = vand.u32 %v217, 4294901760
  %660 = vmatpush.msra.mxu0 %v659
  %v661 = vand.u32 %v205, 4294901760
  %662 = vmatpush.msra.mxu0 %v661
  %v663 = vand.u32 %v193, 4294901760
  %664 = vmatpush.msra.mxu0 %v663
  %v665 = vand.u32 %v181, 4294901760
  %666 = vmatpush.msra.mxu0 %v665
  %v667 = vand.u32 %v169, 4294901760
  %668 = vmatpush.msra.mxu0 %v667
  %v669 = vand.u32 %v157, 4294901760
  %670 = vmatpush.msra.mxu0 %v669
  %v671 = vand.u32 %v145, 4294901760
  %672 = vmatpush.msra.mxu0 %v671
  %v673 = vand.u32 %v132, 4294901760
  %674 = vmatpush.msra.mxu0 %v673
  %v675 = vand.u32 %v236, 4294901760
  %v676 = vsub.f32 %v236, %v675
  %v677 = vand.u32 %v676, 4294901760
  %678 = vmatmul.f32.gmra.mxu0 %v677
  %v679 = vpop.f32.mrf.mxu0
  %v680 = vadd.f32 %v647, %v679
  %681 = vdwg.mxu0
  %682 = vmatpush.msra.mxu0 0.0
  %683 = vmatpush.msra.mxu0 0.0
  %684 = vmatpush.msra.mxu0 0.0
  %685 = vmatpush.msra.mxu0 0.0
  %686 = vmatpush.msra.mxu0 0.0
  %687 = vmatpush.msra.mxu0 0.0
  %v688 = vand.u32 %v130, 4294901760
  %v689 = vsub.f32 %v130, %v688
  %v690 = vand.u32 %v689, 4294901760
  %691 = vmatpush.msra.mxu0 %v690
  %v692 = vand.u32 %v229, 4294901760
  %v693 = vsub.f32 %v229, %v692
  %v694 = vand.u32 %v693, 4294901760
  %695 = vmatpush.msra.mxu0 %v694
  %v696 = vand.u32 %v217, 4294901760
  %v697 = vsub.f32 %v217, %v696
  %v698 = vand.u32 %v697, 4294901760
  %699 = vmatpush.msra.mxu0 %v698
  %v700 = vand.u32 %v205, 4294901760
  %v701 = vsub.f32 %v205, %v700
  %v702 = vand.u32 %v701, 4294901760
  %703 = vmatpush.msra.mxu0 %v702
  %v704 = vand.u32 %v193, 4294901760
  %v705 = vsub.f32 %v193, %v704
  %v706 = vand.u32 %v705, 4294901760
  %707 = vmatpush.msra.mxu0 %v706
  %v708 = vand.u32 %v181, 4294901760
  %v709 = vsub.f32 %v181, %v708
  %v710 = vand.u32 %v709, 4294901760
  %711 = vmatpush.msra.mxu0 %v710
  %v712 = vand.u32 %v169, 4294901760
  %v713 = vsub.f32 %v169, %v712
  %v714 = vand.u32 %v713, 4294901760
  %715 = vmatpush.msra.mxu0 %v714
  %v716 = vand.u32 %v157, 4294901760
  %v717 = vsub.f32 %v157, %v716
  %v718 = vand.u32 %v717, 4294901760
  %719 = vmatpush.msra.mxu0 %v718
  %v720 = vand.u32 %v145, 4294901760
  %v721 = vsub.f32 %v145, %v720
  %v722 = vand.u32 %v721, 4294901760
  %723 = vmatpush.msra.mxu0 %v722
  %v724 = vand.u32 %v132, 4294901760
  %v725 = vsub.f32 %v132, %v724
  %v726 = vand.u32 %v725, 4294901760
  %727 = vmatpush.msra.mxu0 %v726
  %v728 = vand.u32 %v236, 4294901760
  %729 = vmatmul.f32.gmra.mxu0 %v728
  %v730 = vpop.f32.mrf.mxu0
  %v731 = vadd.f32 %v680, %v730
  %732 = vdwg.mxu0
  %733 = vmatpush.msra.mxu0 0.0
  %734 = vmatpush.msra.mxu0 0.0
  %735 = vmatpush.msra.mxu0 0.0
  %736 = vmatpush.msra.mxu0 0.0
  %737 = vmatpush.msra.mxu0 0.0
  %738 = vmatpush.msra.mxu0 0.0
  %v739 = vand.u32 %v130, 4294901760
  %740 = vmatpush.msra.mxu0 %v739
  %v741 = vand.u32 %v229, 4294901760
  %742 = vmatpush.msra.mxu0 %v741
  %v743 = vand.u32 %v217, 4294901760
  %744 = vmatpush.msra.mxu0 %v743
  %v745 = vand.u32 %v205, 4294901760
  %746 = vmatpush.msra.mxu0 %v745
  %v747 = vand.u32 %v193, 4294901760
  %748 = vmatpush.msra.mxu0 %v747
  %v749 = vand.u32 %v181, 4294901760
  %750 = vmatpush.msra.mxu0 %v749
  %v751 = vand.u32 %v169, 4294901760
  %752 = vmatpush.msra.mxu0 %v751
  %v753 = vand.u32 %v157, 4294901760
  %754 = vmatpush.msra.mxu0 %v753
  %v755 = vand.u32 %v145, 4294901760
  %756 = vmatpush.msra.mxu0 %v755
  %v757 = vand.u32 %v132, 4294901760
  %758 = vmatpush.msra.mxu0 %v757
  %v759 = vand.u32 %v236, 4294901760
  %760 = vmatmul.f32.gmra.mxu0 %v759
  %v761 = vpop.f32.mrf.mxu0
  %v762 = vadd.f32 %v731, %v761
  %763 = vdwg.mxu0
  %764 = vmatpush.msra.mxu0 0.0
  %765 = vmatpush.msra.mxu0 0.0
  %766 = vmatpush.msra.mxu0 0.0
  %767 = vmatpush.msra.mxu0 0.0
  %768 = vmatpush.msra.mxu0 0.0
  %769 = vmatpush.msra.mxu0 0.0
  %v770 = vand.u32 %v130, 4294901760
  %771 = vmatpush.msra.mxu0 %v770
  %v772 = vand.u32 %v226, 4294901760
  %773 = vmatpush.msra.mxu0 %v772
  %v774 = vand.u32 %v214, 4294901760
  %775 = vmatpush.msra.mxu0 %v774
  %v776 = vand.u32 %v202, 4294901760
  %777 = vmatpush.msra.mxu0 %v776
  %v778 = vand.u32 %v190, 4294901760
  %779 = vmatpush.msra.mxu0 %v778
  %v780 = vand.u32 %v178, 4294901760
  %781 = vmatpush.msra.mxu0 %v780
  %v782 = vand.u32 %v166, 4294901760
  %783 = vmatpush.msra.mxu0 %v782
  %v784 = vand.u32 %v154, 4294901760
  %785 = vmatpush.msra.mxu0 %v784
  %v786 = vand.u32 %v142, 4294901760
  %787 = vmatpush.msra.mxu0 %v786
  %v788 = vand.u32 %v133, 4294901760
  %789 = vmatpush.msra.mxu0 %v788
  %v790 = vand.u32 %v236, 4294901760
  %v791 = vsub.f32 %v236, %v790
  %v792 = vand.u32 %v791, 4294901760
  %v793 = vsub.f32 %v791, %v792
  %v794 = vand.u32 %v793, 4294901760
  %795 = vmatmul.f32.gmra.mxu0 %v794
  %v796 = vpop.f32.mrf.mxu0
  %v797 = vadd.f32 0.0, %v796
  %798 = vdwg.mxu0
  %799 = vmatpush.msra.mxu0 0.0
  %800 = vmatpush.msra.mxu0 0.0
  %801 = vmatpush.msra.mxu0 0.0
  %802 = vmatpush.msra.mxu0 0.0
  %803 = vmatpush.msra.mxu0 0.0
  %804 = vmatpush.msra.mxu0 0.0
  %v805 = vand.u32 %v130, 4294901760
  %v806 = vsub.f32 %v130, %v805
  %v807 = vand.u32 %v806, 4294901760
  %v808 = vsub.f32 %v806, %v807
  %v809 = vand.u32 %v808, 4294901760
  %810 = vmatpush.msra.mxu0 %v809
  %v811 = vand.u32 %v226, 4294901760
  %v812 = vsub.f32 %v226, %v811
  %v813 = vand.u32 %v812, 4294901760
  %v814 = vsub.f32 %v812, %v813
  %v815 = vand.u32 %v814, 4294901760
  %816 = vmatpush.msra.mxu0 %v815
  %v817 = vand.u32 %v214, 4294901760
  %v818 = vsub.f32 %v214, %v817
  %v819 = vand.u32 %v818, 4294901760
  %v820 = vsub.f32 %v818, %v819
  %v821 = vand.u32 %v820, 4294901760
  %822 = vmatpush.msra.mxu0 %v821
  %v823 = vand.u32 %v202, 4294901760
  %v824 = vsub.f32 %v202, %v823
  %v825 = vand.u32 %v824, 4294901760
  %v826 = vsub.f32 %v824, %v825
  %v827 = vand.u32 %v826, 4294901760
  %828 = vmatpush.msra.mxu0 %v827
  %v829 = vand.u32 %v190, 4294901760
  %v830 = vsub.f32 %v190, %v829
  %v831 = vand.u32 %v830, 4294901760
  %v832 = vsub.f32 %v830, %v831
  %v833 = vand.u32 %v832, 4294901760
  %834 = vmatpush.msra.mxu0 %v833
  %v835 = vand.u32 %v178, 4294901760
  %v836 = vsub.f32 %v178, %v835
  %v837 = vand.u32 %v836, 4294901760
  %v838 = vsub.f32 %v836, %v837
  %v839 = vand.u32 %v838, 4294901760
  %840 = vmatpush.msra.mxu0 %v839
  %v841 = vand.u32 %v166, 4294901760
  %v842 = vsub.f32 %v166, %v841
  %v843 = vand.u32 %v842, 4294901760
  %v844 = vsub.f32 %v842, %v843
  %v845 = vand.u32 %v844, 4294901760
  %846 = vmatpush.msra.mxu0 %v845
  %v847 = vand.u32 %v154, 4294901760
  %v848 = vsub.f32 %v154, %v847
  %v849 = vand.u32 %v848, 4294901760
  %v850 = vsub.f32 %v848, %v849
  %v851 = vand.u32 %v850, 4294901760
  %852 = vmatpush.msra.mxu0 %v851
  %v853 = vand.u32 %v142, 4294901760
  %v854 = vsub.f32 %v142, %v853
  %v855 = vand.u32 %v854, 4294901760
  %v856 = vsub.f32 %v854, %v855
  %v857 = vand.u32 %v856, 4294901760
  %858 = vmatpush.msra.mxu0 %v857
  %v859 = vand.u32 %v133, 4294901760
  %v860 = vsub.f32 %v133, %v859
  %v861 = vand.u32 %v860, 4294901760
  %v862 = vsub.f32 %v860, %v861
  %v863 = vand.u32 %v862, 4294901760
  %864 = vmatpush.msra.mxu0 %v863
  %v865 = vand.u32 %v236, 4294901760
  %866 = vmatmul.f32.gmra.mxu0 %v865
  %v867 = vpop.f32.mrf.mxu0
  %v868 = vadd.f32 %v797, %v867
  %869 = vdwg.mxu0
  %870 = vmatpush.msra.mxu0 0.0
  %871 = vmatpush.msra.mxu0 0.0
  %872 = vmatpush.msra.mxu0 0.0
  %873 = vmatpush.msra.mxu0 0.0
  %874 = vmatpush.msra.mxu0 0.0
  %875 = vmatpush.msra.mxu0 0.0
  %v876 = vand.u32 %v130, 4294901760
  %v877 = vsub.f32 %v130, %v876
  %878 = vmatpush.msra.mxu0 %v877
  %v879 = vand.u32 %v226, 4294901760
  %v880 = vsub.f32 %v226, %v879
  %881 = vmatpush.msra.mxu0 %v880
  %v882 = vand.u32 %v214, 4294901760
  %v883 = vsub.f32 %v214, %v882
  %884 = vmatpush.msra.mxu0 %v883
  %v885 = vand.u32 %v202, 4294901760
  %v886 = vsub.f32 %v202, %v885
  %887 = vmatpush.msra.mxu0 %v886
  %v888 = vand.u32 %v190, 4294901760
  %v889 = vsub.f32 %v190, %v888
  %890 = vmatpush.msra.mxu0 %v889
  %v891 = vand.u32 %v178, 4294901760
  %v892 = vsub.f32 %v178, %v891
  %893 = vmatpush.msra.mxu0 %v892
  %v894 = vand.u32 %v166, 4294901760
  %v895 = vsub.f32 %v166, %v894
  %896 = vmatpush.msra.mxu0 %v895
  %v897 = vand.u32 %v154, 4294901760
  %v898 = vsub.f32 %v154, %v897
  %899 = vmatpush.msra.mxu0 %v898
  %v900 = vand.u32 %v142, 4294901760
  %v901 = vsub.f32 %v142, %v900
  %902 = vmatpush.msra.mxu0 %v901
  %v903 = vand.u32 %v133, 4294901760
  %v904 = vsub.f32 %v133, %v903
  %905 = vmatpush.msra.mxu0 %v904
  %v906 = vand.u32 %v236, 4294901760
  %v907 = vsub.f32 %v236, %v906
  %908 = vmatmul.f32.gmra.mxu0 %v907
  %v909 = vpop.f32.mrf.mxu0
  %v910 = vadd.f32 %v868, %v909
  %911 = vdwg.mxu0
  %912 = vmatpush.msra.mxu0 0.0
  %913 = vmatpush.msra.mxu0 0.0
  %914 = vmatpush.msra.mxu0 0.0
  %915 = vmatpush.msra.mxu0 0.0
  %916 = vmatpush.msra.mxu0 0.0
  %917 = vmatpush.msra.mxu0 0.0
  %v918 = vand.u32 %v130, 4294901760
  %919 = vmatpush.msra.mxu0 %v918
  %v920 = vand.u32 %v226, 4294901760
  %921 = vmatpush.msra.mxu0 %v920
  %v922 = vand.u32 %v214, 4294901760
  %923 = vmatpush.msra.mxu0 %v922
  %v924 = vand.u32 %v202, 4294901760
  %925 = vmatpush.msra.mxu0 %v924
  %v926 = vand.u32 %v190, 4294901760
  %927 = vmatpush.msra.mxu0 %v926
  %v928 = vand.u32 %v178, 4294901760
  %929 = vmatpush.msra.mxu0 %v928
  %v930 = vand.u32 %v166, 4294901760
  %931 = vmatpush.msra.mxu0 %v930
  %v932 = vand.u32 %v154, 4294901760
  %933 = vmatpush.msra.mxu0 %v932
  %v934 = vand.u32 %v142, 4294901760
  %935 = vmatpush.msra.mxu0 %v934
  %v936 = vand.u32 %v133, 4294901760
  %937 = vmatpush.msra.mxu0 %v936
  %v938 = vand.u32 %v236, 4294901760
  %v939 = vsub.f32 %v236, %v938
  %v940 = vand.u32 %v939, 4294901760
  %941 = vmatmul.f32.gmra.mxu0 %v940
  %v942 = vpop.f32.mrf.mxu0
  %v943 = vadd.f32 %v910, %v942
  %944 = vdwg.mxu0
  %945 = vmatpush.msra.mxu0 0.0
  %946 = vmatpush.msra.mxu0 0.0
  %947 = vmatpush.msra.mxu0 0.0
  %948 = vmatpush.msra.mxu0 0.0
  %949 = vmatpush.msra.mxu0 0.0
  %950 = vmatpush.msra.mxu0 0.0
  %v951 = vand.u32 %v130, 4294901760
  %v952 = vsub.f32 %v130, %v951
  %v953 = vand.u32 %v952, 4294901760
  %954 = vmatpush.msra.mxu0 %v953
  %v955 = vand.u32 %v226, 4294901760
  %v956 = vsub.f32 %v226, %v955
  %v957 = vand.u32 %v956, 4294901760
  %958 = vmatpush.msra.mxu0 %v957
  %v959 = vand.u32 %v214, 4294901760
  %v960 = vsub.f32 %v214, %v959
  %v961 = vand.u32 %v960, 4294901760
  %962 = vmatpush.msra.mxu0 %v961
  %v963 = vand.u32 %v202, 4294901760
  %v964 = vsub.f32 %v202, %v963
  %v965 = vand.u32 %v964, 4294901760
  %966 = vmatpush.msra.mxu0 %v965
  %v967 = vand.u32 %v190, 4294901760
  %v968 = vsub.f32 %v190, %v967
  %v969 = vand.u32 %v968, 4294901760
  %970 = vmatpush.msra.mxu0 %v969
  %v971 = vand.u32 %v178, 4294901760
  %v972 = vsub.f32 %v178, %v971
  %v973 = vand.u32 %v972, 4294901760
  %974 = vmatpush.msra.mxu0 %v973
  %v975 = vand.u32 %v166, 4294901760
  %v976 = vsub.f32 %v166, %v975
  %v977 = vand.u32 %v976, 4294901760
  %978 = vmatpush.msra.mxu0 %v977
  %v979 = vand.u32 %v154, 4294901760
  %v980 = vsub.f32 %v154, %v979
  %v981 = vand.u32 %v980, 4294901760
  %982 = vmatpush.msra.mxu0 %v981
  %v983 = vand.u32 %v142, 4294901760
  %v984 = vsub.f32 %v142, %v983
  %v985 = vand.u32 %v984, 4294901760
  %986 = vmatpush.msra.mxu0 %v985
  %v987 = vand.u32 %v133, 4294901760
  %v988 = vsub.f32 %v133, %v987
  %v989 = vand.u32 %v988, 4294901760
  %990 = vmatpush.msra.mxu0 %v989
  %v991 = vand.u32 %v236, 4294901760
  %992 = vmatmul.f32.gmra.mxu0 %v991
  %v993 = vpop.f32.mrf.mxu0
  %v994 = vadd.f32 %v943, %v993
  %995 = vdwg.mxu0
  %996 = vmatpush.msra.mxu0 0.0
  %997 = vmatpush.msra.mxu0 0.0
  %998 = vmatpush.msra.mxu0 0.0
  %999 = vmatpush.msra.mxu0 0.0
  %1000 = vmatpush.msra.mxu0 0.0
  %1001 = vmatpush.msra.mxu0 0.0
  %v1002 = vand.u32 %v130, 4294901760
  %1003 = vmatpush.msra.mxu0 %v1002
  %v1004 = vand.u32 %v226, 4294901760
  %1005 = vmatpush.msra.mxu0 %v1004
  %v1006 = vand.u32 %v214, 4294901760
  %1007 = vmatpush.msra.mxu0 %v1006
  %v1008 = vand.u32 %v202, 4294901760
  %1009 = vmatpush.msra.mxu0 %v1008
  %v1010 = vand.u32 %v190, 4294901760
  %1011 = vmatpush.msra.mxu0 %v1010
  %v1012 = vand.u32 %v178, 4294901760
  %1013 = vmatpush.msra.mxu0 %v1012
  %v1014 = vand.u32 %v166, 4294901760
  %1015 = vmatpush.msra.mxu0 %v1014
  %v1016 = vand.u32 %v154, 4294901760
  %1017 = vmatpush.msra.mxu0 %v1016
  %v1018 = vand.u32 %v142, 4294901760
  %1019 = vmatpush.msra.mxu0 %v1018
  %v1020 = vand.u32 %v133, 4294901760
  %1021 = vmatpush.msra.mxu0 %v1020
  %v1022 = vand.u32 %v236, 4294901760
  %1023 = vmatmul.f32.gmra.mxu0 %v1022
  %v1024 = vpop.f32.mrf.mxu0
  %v1025 = vadd.f32 %v994, %v1024
  %1026 = vdwg.mxu0
  %v1027 = vmax.f32 %v499, 0.0
  %v1028 = vmax.f32 %v762, 0.0
  %v1029 = vmax.f32 %v1025, 0.0
  %v1030 = vsel %vm123, %v1027, 0.0
  %v1031 = vsel %vm124, %v1028, 0.0
  %v1032 = vsel %vm125, %v1029, 0.0
  %1036 = vrot.lane.b32.xlu0 %v1030, 19
  %v1037 = vpop.permute.xlu0 %1036
  %1038 = vrot.lane.b32.xlu0 %v1031, 19
  %v1039 = vpop.permute.xlu0 %1038
  %1040 = vrot.lane.b32.xlu0 %v1032, 19
  %v1041 = vpop.permute.xlu0 %1040
  %vm1042 = vcmask 154624
  %v1043 = vsel %vm1042, %v1037, %v1039
  %v1044 = vsel %vm1042, %v1039, %v1041
  %vm1048 = vcmask 1047704
  %1049 = vst.msk [vmem:[#allocation2] sm:$0xff] %vm1048, %v1037
  %1050 = vst [vmem:[#allocation2 + $0x8] sm:$0xff] %v1043
  %vm1051 = vcmask 416768
  %1052 = vst.msk [vmem:[#allocation2 + $0x10] sm:$0xff] %vm1051, %v1044
  %v1053 = vld [vmem:[#allocation2] sm:$0xff]
  %v1054 = vld [vmem:[#allocation2 + $0x8] sm:$0xff]
  %v1055 = vld [vmem:[#allocation2 + $0x10] sm:$0xff]
  %1059 = vrot.lane.b32.xlu0 %v1053, 127
  %v1060 = vpop.permute.xlu0 %1059
  %1061 = vrot.lane.b32.xlu0 %v1054, 127
  %v1062 = vpop.permute.xlu0 %1061
  %1063 = vrot.lane.b32.xlu0 %v1055, 127
  %v1064 = vpop.permute.xlu0 %1063
  %v1065 = vsel %vm143, %v1060, %v1062
  %v1066 = vsel %vm143, %v1062, %v1064
  %1070 = vrot.lane.b32.xlu0 %v1053, 126
  %v1071 = vpop.permute.xlu0 %1070
  %1072 = vrot.lane.b32.xlu0 %v1054, 126
  %v1073 = vpop.permute.xlu0 %1072
  %1074 = vrot.lane.b32.xlu0 %v1055, 126
  %v1075 = vpop.permute.xlu0 %1074
  %v1076 = vsel %vm155, %v1071, %v1073
  %v1077 = vsel %vm155, %v1073, %v1075
  %1081 = vrot.lane.b32.xlu0 %v1053, 110
  %v1082 = vpop.permute.xlu0 %1081
  %1083 = vrot.lane.b32.xlu0 %v1054, 110
  %v1084 = vpop.permute.xlu0 %1083
  %1085 = vrot.lane.b32.xlu0 %v1055, 110
  %v1086 = vpop.permute.xlu0 %1085
  %v1087 = vsel %vm167, %v1082, %v1084
  %v1088 = vsel %vm167, %v1084, %v1086
  %1092 = vrot.lane.b32.xlu0 %v1053, 109
  %v1093 = vpop.permute.xlu0 %1092
  %1094 = vrot.lane.b32.xlu0 %v1054, 109
  %v1095 = vpop.permute.xlu0 %1094
  %1096 = vrot.lane.b32.xlu0 %v1055, 109
  %v1097 = vpop.permute.xlu0 %1096
  %v1098 = vsel %vm179, %v1093, %v1095
  %v1099 = vsel %vm179, %v1095, %v1097
  %1103 = vrot.lane.b32.xlu0 %v1053, 108
  %v1104 = vpop.permute.xlu0 %1103
  %1105 = vrot.lane.b32.xlu0 %v1054, 108
  %v1106 = vpop.permute.xlu0 %1105
  %1107 = vrot.lane.b32.xlu0 %v1055, 108
  %v1108 = vpop.permute.xlu0 %1107
  %v1109 = vsel %vm191, %v1104, %v1106
  %v1110 = vsel %vm191, %v1106, %v1108
  %1114 = vrot.lane.b32.xlu0 %v1053, 92
  %v1115 = vpop.permute.xlu0 %1114
  %1116 = vrot.lane.b32.xlu0 %v1054, 92
  %v1117 = vpop.permute.xlu0 %1116
  %1118 = vrot.lane.b32.xlu0 %v1055, 92
  %v1119 = vpop.permute.xlu0 %1118
  %v1120 = vsel %vm203, %v1115, %v1117
  %v1121 = vsel %vm203, %v1117, %v1119
  %1125 = vrot.lane.b32.xlu0 %v1053, 91
  %v1126 = vpop.permute.xlu0 %1125
  %1127 = vrot.lane.b32.xlu0 %v1054, 91
  %v1128 = vpop.permute.xlu0 %1127
  %1129 = vrot.lane.b32.xlu0 %v1055, 91
  %v1130 = vpop.permute.xlu0 %1129
  %v1131 = vsel %vm215, %v1126, %v1128
  %v1132 = vsel %vm215, %v1128, %v1130
  %1136 = vrot.lane.b32.xlu0 %v1053, 90
  %v1137 = vpop.permute.xlu0 %1136
  %1138 = vrot.lane.b32.xlu0 %v1054, 90
  %v1139 = vpop.permute.xlu0 %1138
  %1140 = vrot.lane.b32.xlu0 %v1055, 90
  %v1141 = vpop.permute.xlu0 %1140
  %v1142 = vsel %vm227, %v1137, %v1139
  %v1143 = vsel %vm227, %v1139, %v1141
  %s1147 = scalar_lea.vmem %s1, 8
  %v1148 = vld [vmem:[%s1147] sm:$0xff]
  %v1150 = vsel %vm234, %v1148, 0
  %1152 = vmatpush.msra.mxu0 0.0
  %1153 = vmatpush.msra.mxu0 0.0
  %1154 = vmatpush.msra.mxu0 0.0
  %1155 = vmatpush.msra.mxu0 0.0
  %1156 = vmatpush.msra.mxu0 0.0
  %1157 = vmatpush.msra.mxu0 0.0
  %v1158 = vand.u32 %v130, 4294901760
  %1159 = vmatpush.msra.mxu0 %v1158
  %v1160 = vand.u32 %v1142, 4294901760
  %1161 = vmatpush.msra.mxu0 %v1160
  %v1162 = vand.u32 %v1131, 4294901760
  %1163 = vmatpush.msra.mxu0 %v1162
  %v1164 = vand.u32 %v1120, 4294901760
  %1165 = vmatpush.msra.mxu0 %v1164
  %v1166 = vand.u32 %v1109, 4294901760
  %1167 = vmatpush.msra.mxu0 %v1166
  %v1168 = vand.u32 %v1098, 4294901760
  %1169 = vmatpush.msra.mxu0 %v1168
  %v1170 = vand.u32 %v1087, 4294901760
  %1171 = vmatpush.msra.mxu0 %v1170
  %v1172 = vand.u32 %v1076, 4294901760
  %1173 = vmatpush.msra.mxu0 %v1172
  %v1174 = vand.u32 %v1065, 4294901760
  %1175 = vmatpush.msra.mxu0 %v1174
  %v1176 = vand.u32 %v1053, 4294901760
  %1177 = vmatpush.msra.mxu0 %v1176
  %v1178 = vand.u32 %v1150, 4294901760
  %v1179 = vsub.f32 %v1150, %v1178
  %v1180 = vand.u32 %v1179, 4294901760
  %v1181 = vsub.f32 %v1179, %v1180
  %v1182 = vand.u32 %v1181, 4294901760
  %1183 = vmatmul.f32.gmra.mxu0 %v1182
  %v1184 = vpop.f32.mrf.mxu0
  %v1185 = vadd.f32 %v180, %v1184
  %1186 = vdwg.mxu0
  %1187 = vmatpush.msra.mxu0 0.0
  %1188 = vmatpush.msra.mxu0 0.0
  %1189 = vmatpush.msra.mxu0 0.0
  %1190 = vmatpush.msra.mxu0 0.0
  %1191 = vmatpush.msra.mxu0 0.0
  %1192 = vmatpush.msra.mxu0 0.0
  %v1193 = vand.u32 %v130, 4294901760
  %v1194 = vsub.f32 %v130, %v1193
  %v1195 = vand.u32 %v1194, 4294901760
  %v1196 = vsub.f32 %v1194, %v1195
  %v1197 = vand.u32 %v1196, 4294901760
  %1198 = vmatpush.msra.mxu0 %v1197
  %v1199 = vand.u32 %v1142, 4294901760
  %v1200 = vsub.f32 %v1142, %v1199
  %v1201 = vand.u32 %v1200, 4294901760
  %v1202 = vsub.f32 %v1200, %v1201
  %v1203 = vand.u32 %v1202, 4294901760
  %1204 = vmatpush.msra.mxu0 %v1203
  %v1205 = vand.u32 %v1131, 4294901760
  %v1206 = vsub.f32 %v1131, %v1205
  %v1207 = vand.u32 %v1206, 4294901760
  %v1208 = vsub.f32 %v1206, %v1207
  %v1209 = vand.u32 %v1208, 4294901760
  %1210 = vmatpush.msra.mxu0 %v1209
  %v1211 = vand.u32 %v1120, 4294901760
  %v1212 = vsub.f32 %v1120, %v1211
  %v1213 = vand.u32 %v1212, 4294901760
  %v1214 = vsub.f32 %v1212, %v1213
  %v1215 = vand.u32 %v1214, 4294901760
  %1216 = vmatpush.msra.mxu0 %v1215
  %v1217 = vand.u32 %v1109, 4294901760
  %v1218 = vsub.f32 %v1109, %v1217
  %v1219 = vand.u32 %v1218, 4294901760
  %v1220 = vsub.f32 %v1218, %v1219
  %v1221 = vand.u32 %v1220, 4294901760
  %1222 = vmatpush.msra.mxu0 %v1221
  %v1223 = vand.u32 %v1098, 4294901760
  %v1224 = vsub.f32 %v1098, %v1223
  %v1225 = vand.u32 %v1224, 4294901760
  %v1226 = vsub.f32 %v1224, %v1225
  %v1227 = vand.u32 %v1226, 4294901760
  %1228 = vmatpush.msra.mxu0 %v1227
  %v1229 = vand.u32 %v1087, 4294901760
  %v1230 = vsub.f32 %v1087, %v1229
  %v1231 = vand.u32 %v1230, 4294901760
  %v1232 = vsub.f32 %v1230, %v1231
  %v1233 = vand.u32 %v1232, 4294901760
  %1234 = vmatpush.msra.mxu0 %v1233
  %v1235 = vand.u32 %v1076, 4294901760
  %v1236 = vsub.f32 %v1076, %v1235
  %v1237 = vand.u32 %v1236, 4294901760
  %v1238 = vsub.f32 %v1236, %v1237
  %v1239 = vand.u32 %v1238, 4294901760
  %1240 = vmatpush.msra.mxu0 %v1239
  %v1241 = vand.u32 %v1065, 4294901760
  %v1242 = vsub.f32 %v1065, %v1241
  %v1243 = vand.u32 %v1242, 4294901760
  %v1244 = vsub.f32 %v1242, %v1243
  %v1245 = vand.u32 %v1244, 4294901760
  %1246 = vmatpush.msra.mxu0 %v1245
  %v1247 = vand.u32 %v1053, 4294901760
  %v1248 = vsub.f32 %v1053, %v1247
  %v1249 = vand.u32 %v1248, 4294901760
  %v1250 = vsub.f32 %v1248, %v1249
  %v1251 = vand.u32 %v1250, 4294901760
  %1252 = vmatpush.msra.mxu0 %v1251
  %v1253 = vand.u32 %v1150, 4294901760
  %1254 = vmatmul.f32.gmra.mxu0 %v1253
  %v1255 = vpop.f32.mrf.mxu0
  %v1256 = vadd.f32 %v1185, %v1255
  %1257 = vdwg.mxu0
  %1258 = vmatpush.msra.mxu0 0.0
  %1259 = vmatpush.msra.mxu0 0.0
  %1260 = vmatpush.msra.mxu0 0.0
  %1261 = vmatpush.msra.mxu0 0.0
  %1262 = vmatpush.msra.mxu0 0.0
  %1263 = vmatpush.msra.mxu0 0.0
  %v1264 = vand.u32 %v130, 4294901760
  %v1265 = vsub.f32 %v130, %v1264
  %1266 = vmatpush.msra.mxu0 %v1265
  %v1267 = vand.u32 %v1142, 4294901760
  %v1268 = vsub.f32 %v1142, %v1267
  %1269 = vmatpush.msra.mxu0 %v1268
  %v1270 = vand.u32 %v1131, 4294901760
  %v1271 = vsub.f32 %v1131, %v1270
  %1272 = vmatpush.msra.mxu0 %v1271
  %v1273 = vand.u32 %v1120, 4294901760
  %v1274 = vsub.f32 %v1120, %v1273
  %1275 = vmatpush.msra.mxu0 %v1274
  %v1276 = vand.u32 %v1109, 4294901760
  %v1277 = vsub.f32 %v1109, %v1276
  %1278 = vmatpush.msra.mxu0 %v1277
  %v1279 = vand.u32 %v1098, 4294901760
  %v1280 = vsub.f32 %v1098, %v1279
  %1281 = vmatpush.msra.mxu0 %v1280
  %v1282 = vand.u32 %v1087, 4294901760
  %v1283 = vsub.f32 %v1087, %v1282
  %1284 = vmatpush.msra.mxu0 %v1283
  %v1285 = vand.u32 %v1076, 4294901760
  %v1286 = vsub.f32 %v1076, %v1285
  %1287 = vmatpush.msra.mxu0 %v1286
  %v1288 = vand.u32 %v1065, 4294901760
  %v1289 = vsub.f32 %v1065, %v1288
  %1290 = vmatpush.msra.mxu0 %v1289
  %v1291 = vand.u32 %v1053, 4294901760
  %v1292 = vsub.f32 %v1053, %v1291
  %1293 = vmatpush.msra.mxu0 %v1292
  %v1294 = vand.u32 %v1150, 4294901760
  %v1295 = vsub.f32 %v1150, %v1294
  %1296 = vmatmul.f32.gmra.mxu0 %v1295
  %v1297 = vpop.f32.mrf.mxu0
  %v1298 = vadd.f32 %v1256, %v1297
  %1299 = vdwg.mxu0
  %1300 = vmatpush.msra.mxu0 0.0
  %1301 = vmatpush.msra.mxu0 0.0
  %1302 = vmatpush.msra.mxu0 0.0
  %1303 = vmatpush.msra.mxu0 0.0
  %1304 = vmatpush.msra.mxu0 0.0
  %1305 = vmatpush.msra.mxu0 0.0
  %v1306 = vand.u32 %v130, 4294901760
  %1307 = vmatpush.msra.mxu0 %v1306
  %v1308 = vand.u32 %v1142, 4294901760
  %1309 = vmatpush.msra.mxu0 %v1308
  %v1310 = vand.u32 %v1131, 4294901760
  %1311 = vmatpush.msra.mxu0 %v1310
  %v1312 = vand.u32 %v1120, 4294901760
  %1313 = vmatpush.msra.mxu0 %v1312
  %v1314 = vand.u32 %v1109, 4294901760
  %1315 = vmatpush.msra.mxu0 %v1314
  %v1316 = vand.u32 %v1098, 4294901760
  %1317 = vmatpush.msra.mxu0 %v1316
  %v1318 = vand.u32 %v1087, 4294901760
  %1319 = vmatpush.msra.mxu0 %v1318
  %v1320 = vand.u32 %v1076, 4294901760
  %1321 = vmatpush.msra.mxu0 %v1320
  %v1322 = vand.u32 %v1065, 4294901760
  %1323 = vmatpush.msra.mxu0 %v1322
  %v1324 = vand.u32 %v1053, 4294901760
  %1325 = vmatpush.msra.mxu0 %v1324
  %v1326 = vand.u32 %v1150, 4294901760
  %v1327 = vsub.f32 %v1150, %v1326
  %v1328 = vand.u32 %v1327, 4294901760
  %1329 = vmatmul.f32.gmra.mxu0 %v1328
  %v1330 = vpop.f32.mrf.mxu0
  %v1331 = vadd.f32 %v1298, %v1330
  %1332 = vdwg.mxu0
  %1333 = vmatpush.msra.mxu0 0.0
  %1334 = vmatpush.msra.mxu0 0.0
  %1335 = vmatpush.msra.mxu0 0.0
  %1336 = vmatpush.msra.mxu0 0.0
  %1337 = vmatpush.msra.mxu0 0.0
  %1338 = vmatpush.msra.mxu0 0.0
  %v1339 = vand.u32 %v130, 4294901760
  %v1340 = vsub.f32 %v130, %v1339
  %v1341 = vand.u32 %v1340, 4294901760
  %1342 = vmatpush.msra.mxu0 %v1341
  %v1343 = vand.u32 %v1142, 4294901760
  %v1344 = vsub.f32 %v1142, %v1343
  %v1345 = vand.u32 %v1344, 4294901760
  %1346 = vmatpush.msra.mxu0 %v1345
  %v1347 = vand.u32 %v1131, 4294901760
  %v1348 = vsub.f32 %v1131, %v1347
  %v1349 = vand.u32 %v1348, 4294901760
  %1350 = vmatpush.msra.mxu0 %v1349
  %v1351 = vand.u32 %v1120, 4294901760
  %v1352 = vsub.f32 %v1120, %v1351
  %v1353 = vand.u32 %v1352, 4294901760
  %1354 = vmatpush.msra.mxu0 %v1353
  %v1355 = vand.u32 %v1109, 4294901760
  %v1356 = vsub.f32 %v1109, %v1355
  %v1357 = vand.u32 %v1356, 4294901760
  %1358 = vmatpush.msra.mxu0 %v1357
  %v1359 = vand.u32 %v1098, 4294901760
  %v1360 = vsub.f32 %v1098, %v1359
  %v1361 = vand.u32 %v1360, 4294901760
  %1362 = vmatpush.msra.mxu0 %v1361
  %v1363 = vand.u32 %v1087, 4294901760
  %v1364 = vsub.f32 %v1087, %v1363
  %v1365 = vand.u32 %v1364, 4294901760
  %1366 = vmatpush.msra.mxu0 %v1365
  %v1367 = vand.u32 %v1076, 4294901760
  %v1368 = vsub.f32 %v1076, %v1367
  %v1369 = vand.u32 %v1368, 4294901760
  %1370 = vmatpush.msra.mxu0 %v1369
  %v1371 = vand.u32 %v1065, 4294901760
  %v1372 = vsub.f32 %v1065, %v1371
  %v1373 = vand.u32 %v1372, 4294901760
  %1374 = vmatpush.msra.mxu0 %v1373
  %v1375 = vand.u32 %v1053, 4294901760
  %v1376 = vsub.f32 %v1053, %v1375
  %v1377 = vand.u32 %v1376, 4294901760
  %1378 = vmatpush.msra.mxu0 %v1377
  %v1379 = vand.u32 %v1150, 4294901760
  %1380 = vmatmul.f32.gmra.mxu0 %v1379
  %v1381 = vpop.f32.mrf.mxu0
  %v1382 = vadd.f32 %v1331, %v1381
  %1383 = vdwg.mxu0
  %1384 = vmatpush.msra.mxu0 0.0
  %1385 = vmatpush.msra.mxu0 0.0
  %1386 = vmatpush.msra.mxu0 0.0
  %1387 = vmatpush.msra.mxu0 0.0
  %1388 = vmatpush.msra.mxu0 0.0
  %1389 = vmatpush.msra.mxu0 0.0
  %v1390 = vand.u32 %v130, 4294901760
  %1391 = vmatpush.msra.mxu0 %v1390
  %v1392 = vand.u32 %v1142, 4294901760
  %1393 = vmatpush.msra.mxu0 %v1392
  %v1394 = vand.u32 %v1131, 4294901760
  %1395 = vmatpush.msra.mxu0 %v1394
  %v1396 = vand.u32 %v1120, 4294901760
  %1397 = vmatpush.msra.mxu0 %v1396
  %v1398 = vand.u32 %v1109, 4294901760
  %1399 = vmatpush.msra.mxu0 %v1398
  %v1400 = vand.u32 %v1098, 4294901760
  %1401 = vmatpush.msra.mxu0 %v1400
  %v1402 = vand.u32 %v1087, 4294901760
  %1403 = vmatpush.msra.mxu0 %v1402
  %v1404 = vand.u32 %v1076, 4294901760
  %1405 = vmatpush.msra.mxu0 %v1404
  %v1406 = vand.u32 %v1065, 4294901760
  %1407 = vmatpush.msra.mxu0 %v1406
  %v1408 = vand.u32 %v1053, 4294901760
  %1409 = vmatpush.msra.mxu0 %v1408
  %v1410 = vand.u32 %v1150, 4294901760
  %1411 = vmatmul.f32.gmra.mxu0 %v1410
  %v1412 = vpop.f32.mrf.mxu0
  %v1413 = vadd.f32 %v1382, %v1412
  %1414 = vdwg.mxu0
  %1415 = vmatpush.msra.mxu0 0.0
  %1416 = vmatpush.msra.mxu0 0.0
  %1417 = vmatpush.msra.mxu0 0.0
  %1418 = vmatpush.msra.mxu0 0.0
  %1419 = vmatpush.msra.mxu0 0.0
  %1420 = vmatpush.msra.mxu0 0.0
  %v1421 = vand.u32 %v130, 4294901760
  %1422 = vmatpush.msra.mxu0 %v1421
  %v1423 = vand.u32 %v1143, 4294901760
  %1424 = vmatpush.msra.mxu0 %v1423
  %v1425 = vand.u32 %v1132, 4294901760
  %1426 = vmatpush.msra.mxu0 %v1425
  %v1427 = vand.u32 %v1121, 4294901760
  %1428 = vmatpush.msra.mxu0 %v1427
  %v1429 = vand.u32 %v1110, 4294901760
  %1430 = vmatpush.msra.mxu0 %v1429
  %v1431 = vand.u32 %v1099, 4294901760
  %1432 = vmatpush.msra.mxu0 %v1431
  %v1433 = vand.u32 %v1088, 4294901760
  %1434 = vmatpush.msra.mxu0 %v1433
  %v1435 = vand.u32 %v1077, 4294901760
  %1436 = vmatpush.msra.mxu0 %v1435
  %v1437 = vand.u32 %v1066, 4294901760
  %1438 = vmatpush.msra.mxu0 %v1437
  %v1439 = vand.u32 %v1054, 4294901760
  %1440 = vmatpush.msra.mxu0 %v1439
  %v1441 = vand.u32 %v1150, 4294901760
  %v1442 = vsub.f32 %v1150, %v1441
  %v1443 = vand.u32 %v1442, 4294901760
  %v1444 = vsub.f32 %v1442, %v1443
  %v1445 = vand.u32 %v1444, 4294901760
  %1446 = vmatmul.f32.gmra.mxu0 %v1445
  %v1447 = vpop.f32.mrf.mxu0
  %v1448 = vadd.f32 %v181, %v1447
  %1449 = vdwg.mxu0
  %1450 = vmatpush.msra.mxu0 0.0
  %1451 = vmatpush.msra.mxu0 0.0
  %1452 = vmatpush.msra.mxu0 0.0
  %1453 = vmatpush.msra.mxu0 0.0
  %1454 = vmatpush.msra.mxu0 0.0
  %1455 = vmatpush.msra.mxu0 0.0
  %v1456 = vand.u32 %v130, 4294901760
  %v1457 = vsub.f32 %v130, %v1456
  %v1458 = vand.u32 %v1457, 4294901760
  %v1459 = vsub.f32 %v1457, %v1458
  %v1460 = vand.u32 %v1459, 4294901760
  %1461 = vmatpush.msra.mxu0 %v1460
  %v1462 = vand.u32 %v1143, 4294901760
  %v1463 = vsub.f32 %v1143, %v1462
  %v1464 = vand.u32 %v1463, 4294901760
  %v1465 = vsub.f32 %v1463, %v1464
  %v1466 = vand.u32 %v1465, 4294901760
  %1467 = vmatpush.msra.mxu0 %v1466
  %v1468 = vand.u32 %v1132, 4294901760
  %v1469 = vsub.f32 %v1132, %v1468
  %v1470 = vand.u32 %v1469, 4294901760
  %v1471 = vsub.f32 %v1469, %v1470
  %v1472 = vand.u32 %v1471, 4294901760
  %1473 = vmatpush.msra.mxu0 %v1472
  %v1474 = vand.u32 %v1121, 4294901760
  %v1475 = vsub.f32 %v1121, %v1474
  %v1476 = vand.u32 %v1475, 4294901760
  %v1477 = vsub.f32 %v1475, %v1476
  %v1478 = vand.u32 %v1477, 4294901760
  %1479 = vmatpush.msra.mxu0 %v1478
  %v1480 = vand.u32 %v1110, 4294901760
  %v1481 = vsub.f32 %v1110, %v1480
  %v1482 = vand.u32 %v1481, 4294901760
  %v1483 = vsub.f32 %v1481, %v1482
  %v1484 = vand.u32 %v1483, 4294901760
  %1485 = vmatpush.msra.mxu0 %v1484
  %v1486 = vand.u32 %v1099, 4294901760
  %v1487 = vsub.f32 %v1099, %v1486
  %v1488 = vand.u32 %v1487, 4294901760
  %v1489 = vsub.f32 %v1487, %v1488
  %v1490 = vand.u32 %v1489, 4294901760
  %1491 = vmatpush.msra.mxu0 %v1490
  %v1492 = vand.u32 %v1088, 4294901760
  %v1493 = vsub.f32 %v1088, %v1492
  %v1494 = vand.u32 %v1493, 4294901760
  %v1495 = vsub.f32 %v1493, %v1494
  %v1496 = vand.u32 %v1495, 4294901760
  %1497 = vmatpush.msra.mxu0 %v1496
  %v1498 = vand.u32 %v1077, 4294901760
  %v1499 = vsub.f32 %v1077, %v1498
  %v1500 = vand.u32 %v1499, 4294901760
  %v1501 = vsub.f32 %v1499, %v1500
  %v1502 = vand.u32 %v1501, 4294901760
  %1503 = vmatpush.msra.mxu0 %v1502
  %v1504 = vand.u32 %v1066, 4294901760
  %v1505 = vsub.f32 %v1066, %v1504
  %v1506 = vand.u32 %v1505, 4294901760
  %v1507 = vsub.f32 %v1505, %v1506
  %v1508 = vand.u32 %v1507, 4294901760
  %1509 = vmatpush.msra.mxu0 %v1508
  %v1510 = vand.u32 %v1054, 4294901760
  %v1511 = vsub.f32 %v1054, %v1510
  %v1512 = vand.u32 %v1511, 4294901760
  %v1513 = vsub.f32 %v1511, %v1512
  %v1514 = vand.u32 %v1513, 4294901760
  %1515 = vmatpush.msra.mxu0 %v1514
  %v1516 = vand.u32 %v1150, 4294901760
  %1517 = vmatmul.f32.gmra.mxu0 %v1516
  %v1518 = vpop.f32.mrf.mxu0
  %v1519 = vadd.f32 %v1448, %v1518
  %1520 = vdwg.mxu0
  %1521 = vmatpush.msra.mxu0 0.0
  %1522 = vmatpush.msra.mxu0 0.0
  %1523 = vmatpush.msra.mxu0 0.0
  %1524 = vmatpush.msra.mxu0 0.0
  %1525 = vmatpush.msra.mxu0 0.0
  %1526 = vmatpush.msra.mxu0 0.0
  %v1527 = vand.u32 %v130, 4294901760
  %v1528 = vsub.f32 %v130, %v1527
  %1529 = vmatpush.msra.mxu0 %v1528
  %v1530 = vand.u32 %v1143, 4294901760
  %v1531 = vsub.f32 %v1143, %v1530
  %1532 = vmatpush.msra.mxu0 %v1531
  %v1533 = vand.u32 %v1132, 4294901760
  %v1534 = vsub.f32 %v1132, %v1533
  %1535 = vmatpush.msra.mxu0 %v1534
  %v1536 = vand.u32 %v1121, 4294901760
  %v1537 = vsub.f32 %v1121, %v1536
  %1538 = vmatpush.msra.mxu0 %v1537
  %v1539 = vand.u32 %v1110, 4294901760
  %v1540 = vsub.f32 %v1110, %v1539
  %1541 = vmatpush.msra.mxu0 %v1540
  %v1542 = vand.u32 %v1099, 4294901760
  %v1543 = vsub.f32 %v1099, %v1542
  %1544 = vmatpush.msra.mxu0 %v1543
  %v1545 = vand.u32 %v1088, 4294901760
  %v1546 = vsub.f32 %v1088, %v1545
  %1547 = vmatpush.msra.mxu0 %v1546
  %v1548 = vand.u32 %v1077, 4294901760
  %v1549 = vsub.f32 %v1077, %v1548
  %1550 = vmatpush.msra.mxu0 %v1549
  %v1551 = vand.u32 %v1066, 4294901760
  %v1552 = vsub.f32 %v1066, %v1551
  %1553 = vmatpush.msra.mxu0 %v1552
  %v1554 = vand.u32 %v1054, 4294901760
  %v1555 = vsub.f32 %v1054, %v1554
  %1556 = vmatpush.msra.mxu0 %v1555
  %v1557 = vand.u32 %v1150, 4294901760
  %v1558 = vsub.f32 %v1150, %v1557
  %1559 = vmatmul.f32.gmra.mxu0 %v1558
  %v1560 = vpop.f32.mrf.mxu0
  %v1561 = vadd.f32 %v1519, %v1560
  %1562 = vdwg.mxu0
  %1563 = vmatpush.msra.mxu0 0.0
  %1564 = vmatpush.msra.mxu0 0.0
  %1565 = vmatpush.msra.mxu0 0.0
  %1566 = vmatpush.msra.mxu0 0.0
  %1567 = vmatpush.msra.mxu0 0.0
  %1568 = vmatpush.msra.mxu0 0.0
  %v1569 = vand.u32 %v130, 4294901760
  %1570 = vmatpush.msra.mxu0 %v1569
  %v1571 = vand.u32 %v1143, 4294901760
  %1572 = vmatpush.msra.mxu0 %v1571
  %v1573 = vand.u32 %v1132, 4294901760
  %1574 = vmatpush.msra.mxu0 %v1573
  %v1575 = vand.u32 %v1121, 4294901760
  %1576 = vmatpush.msra.mxu0 %v1575
  %v1577 = vand.u32 %v1110, 4294901760
  %1578 = vmatpush.msra.mxu0 %v1577
  %v1579 = vand.u32 %v1099, 4294901760
  %1580 = vmatpush.msra.mxu0 %v1579
  %v1581 = vand.u32 %v1088, 4294901760
  %1582 = vmatpush.msra.mxu0 %v1581
  %v1583 = vand.u32 %v1077, 4294901760
  %1584 = vmatpush.msra.mxu0 %v1583
  %v1585 = vand.u32 %v1066, 4294901760
  %1586 = vmatpush.msra.mxu0 %v1585
  %v1587 = vand.u32 %v1054, 4294901760
  %1588 = vmatpush.msra.mxu0 %v1587
  %v1589 = vand.u32 %v1150, 4294901760
  %v1590 = vsub.f32 %v1150, %v1589
  %v1591 = vand.u32 %v1590, 4294901760
  %1592 = vmatmul.f32.gmra.mxu0 %v1591
  %v1593 = vpop.f32.mrf.mxu0
  %v1594 = vadd.f32 %v1561, %v1593
  %1595 = vdwg.mxu0
  %1596 = vmatpush.msra.mxu0 0.0
  %1597 = vmatpush.msra.mxu0 0.0
  %1598 = vmatpush.msra.mxu0 0.0
  %1599 = vmatpush.msra.mxu0 0.0
  %1600 = vmatpush.msra.mxu0 0.0
  %1601 = vmatpush.msra.mxu0 0.0
  %v1602 = vand.u32 %v130, 4294901760
  %v1603 = vsub.f32 %v130, %v1602
  %v1604 = vand.u32 %v1603, 4294901760
  %1605 = vmatpush.msra.mxu0 %v1604
  %v1606 = vand.u32 %v1143, 4294901760
  %v1607 = vsub.f32 %v1143, %v1606
  %v1608 = vand.u32 %v1607, 4294901760
  %1609 = vmatpush.msra.mxu0 %v1608
  %v1610 = vand.u32 %v1132, 4294901760
  %v1611 = vsub.f32 %v1132, %v1610
  %v1612 = vand.u32 %v1611, 4294901760
  %1613 = vmatpush.msra.mxu0 %v1612
  %v1614 = vand.u32 %v1121, 4294901760
  %v1615 = vsub.f32 %v1121, %v1614
  %v1616 = vand.u32 %v1615, 4294901760
  %1617 = vmatpush.msra.mxu0 %v1616
  %v1618 = vand.u32 %v1110, 4294901760
  %v1619 = vsub.f32 %v1110, %v1618
  %v1620 = vand.u32 %v1619, 4294901760
  %1621 = vmatpush.msra.mxu0 %v1620
  %v1622 = vand.u32 %v1099, 4294901760
  %v1623 = vsub.f32 %v1099, %v1622
  %v1624 = vand.u32 %v1623, 4294901760
  %1625 = vmatpush.msra.mxu0 %v1624
  %v1626 = vand.u32 %v1088, 4294901760
  %v1627 = vsub.f32 %v1088, %v1626
  %v1628 = vand.u32 %v1627, 4294901760
  %1629 = vmatpush.msra.mxu0 %v1628
  %v1630 = vand.u32 %v1077, 4294901760
  %v1631 = vsub.f32 %v1077, %v1630
  %v1632 = vand.u32 %v1631, 4294901760
  %1633 = vmatpush.msra.mxu0 %v1632
  %v1634 = vand.u32 %v1066, 4294901760
  %v1635 = vsub.f32 %v1066, %v1634
  %v1636 = vand.u32 %v1635, 4294901760
  %1637 = vmatpush.msra.mxu0 %v1636
  %v1638 = vand.u32 %v1054, 4294901760
  %v1639 = vsub.f32 %v1054, %v1638
  %v1640 = vand.u32 %v1639, 4294901760
  %1641 = vmatpush.msra.mxu0 %v1640
  %v1642 = vand.u32 %v1150, 4294901760
  %1643 = vmatmul.f32.gmra.mxu0 %v1642
  %v1644 = vpop.f32.mrf.mxu0
  %v1645 = vadd.f32 %v1594, %v1644
  %1646 = vdwg.mxu0
  %1647 = vmatpush.msra.mxu0 0.0
  %1648 = vmatpush.msra.mxu0 0.0
  %1649 = vmatpush.msra.mxu0 0.0
  %1650 = vmatpush.msra.mxu0 0.0
  %1651 = vmatpush.msra.mxu0 0.0
  %1652 = vmatpush.msra.mxu0 0.0
  %v1653 = vand.u32 %v130, 4294901760
  %1654 = vmatpush.msra.mxu0 %v1653
  %v1655 = vand.u32 %v1143, 4294901760
  %1656 = vmatpush.msra.mxu0 %v1655
  %v1657 = vand.u32 %v1132, 4294901760
  %1658 = vmatpush.msra.mxu0 %v1657
  %v1659 = vand.u32 %v1121, 4294901760
  %1660 = vmatpush.msra.mxu0 %v1659
  %v1661 = vand.u32 %v1110, 4294901760
  %1662 = vmatpush.msra.mxu0 %v1661
  %v1663 = vand.u32 %v1099, 4294901760
  %1664 = vmatpush.msra.mxu0 %v1663
  %v1665 = vand.u32 %v1088, 4294901760
  %1666 = vmatpush.msra.mxu0 %v1665
  %v1667 = vand.u32 %v1077, 4294901760
  %1668 = vmatpush.msra.mxu0 %v1667
  %v1669 = vand.u32 %v1066, 4294901760
  %1670 = vmatpush.msra.mxu0 %v1669
  %v1671 = vand.u32 %v1054, 4294901760
  %1672 = vmatpush.msra.mxu0 %v1671
  %v1673 = vand.u32 %v1150, 4294901760
  %1674 = vmatmul.f32.gmra.mxu0 %v1673
  %v1675 = vpop.f32.mrf.mxu0
  %v1676 = vadd.f32 %v1645, %v1675
  %1677 = vdwg.mxu0
  %1678 = vmatpush.msra.mxu0 0.0
  %1679 = vmatpush.msra.mxu0 0.0
  %1680 = vmatpush.msra.mxu0 0.0
  %1681 = vmatpush.msra.mxu0 0.0
  %1682 = vmatpush.msra.mxu0 0.0
  %1683 = vmatpush.msra.mxu0 0.0
  %v1684 = vand.u32 %v130, 4294901760
  %1685 = vmatpush.msra.mxu0 %v1684
  %v1686 = vand.u32 %v1141, 4294901760
  %1687 = vmatpush.msra.mxu0 %v1686
  %v1688 = vand.u32 %v1130, 4294901760
  %1689 = vmatpush.msra.mxu0 %v1688
  %v1690 = vand.u32 %v1119, 4294901760
  %1691 = vmatpush.msra.mxu0 %v1690
  %v1692 = vand.u32 %v1108, 4294901760
  %1693 = vmatpush.msra.mxu0 %v1692
  %v1694 = vand.u32 %v1097, 4294901760
  %1695 = vmatpush.msra.mxu0 %v1694
  %v1696 = vand.u32 %v1086, 4294901760
  %1697 = vmatpush.msra.mxu0 %v1696
  %v1698 = vand.u32 %v1075, 4294901760
  %1699 = vmatpush.msra.mxu0 %v1698
  %v1700 = vand.u32 %v1064, 4294901760
  %1701 = vmatpush.msra.mxu0 %v1700
  %v1702 = vand.u32 %v1055, 4294901760
  %1703 = vmatpush.msra.mxu0 %v1702
  %v1704 = vand.u32 %v1150, 4294901760
  %v1705 = vsub.f32 %v1150, %v1704
  %v1706 = vand.u32 %v1705, 4294901760
  %v1707 = vsub.f32 %v1705, %v1706
  %v1708 = vand.u32 %v1707, 4294901760
  %1709 = vmatmul.f32.gmra.mxu0 %v1708
  %v1710 = vpop.f32.mrf.mxu0
  %v1711 = vadd.f32 %v178, %v1710
  %1712 = vdwg.mxu0
  %1713 = vmatpush.msra.mxu0 0.0
  %1714 = vmatpush.msra.mxu0 0.0
  %1715 = vmatpush.msra.mxu0 0.0
  %1716 = vmatpush.msra.mxu0 0.0
  %1717 = vmatpush.msra.mxu0 0.0
  %1718 = vmatpush.msra.mxu0 0.0
  %v1719 = vand.u32 %v130, 4294901760
  %v1720 = vsub.f32 %v130, %v1719
  %v1721 = vand.u32 %v1720, 4294901760
  %v1722 = vsub.f32 %v1720, %v1721
  %v1723 = vand.u32 %v1722, 4294901760
  %1724 = vmatpush.msra.mxu0 %v1723
  %v1725 = vand.u32 %v1141, 4294901760
  %v1726 = vsub.f32 %v1141, %v1725
  %v1727 = vand.u32 %v1726, 4294901760
  %v1728 = vsub.f32 %v1726, %v1727
  %v1729 = vand.u32 %v1728, 4294901760
  %1730 = vmatpush.msra.mxu0 %v1729
  %v1731 = vand.u32 %v1130, 4294901760
  %v1732 = vsub.f32 %v1130, %v1731
  %v1733 = vand.u32 %v1732, 4294901760
  %v1734 = vsub.f32 %v1732, %v1733
  %v1735 = vand.u32 %v1734, 4294901760
  %1736 = vmatpush.msra.mxu0 %v1735
  %v1737 = vand.u32 %v1119, 4294901760
  %v1738 = vsub.f32 %v1119, %v1737
  %v1739 = vand.u32 %v1738, 4294901760
  %v1740 = vsub.f32 %v1738, %v1739
  %v1741 = vand.u32 %v1740, 4294901760
  %1742 = vmatpush.msra.mxu0 %v1741
  %v1743 = vand.u32 %v1108, 4294901760
  %v1744 = vsub.f32 %v1108, %v1743
  %v1745 = vand.u32 %v1744, 4294901760
  %v1746 = vsub.f32 %v1744, %v1745
  %v1747 = vand.u32 %v1746, 4294901760
  %1748 = vmatpush.msra.mxu0 %v1747
  %v1749 = vand.u32 %v1097, 4294901760
  %v1750 = vsub.f32 %v1097, %v1749
  %v1751 = vand.u32 %v1750, 4294901760
  %v1752 = vsub.f32 %v1750, %v1751
  %v1753 = vand.u32 %v1752, 4294901760
  %1754 = vmatpush.msra.mxu0 %v1753
  %v1755 = vand.u32 %v1086, 4294901760
  %v1756 = vsub.f32 %v1086, %v1755
  %v1757 = vand.u32 %v1756, 4294901760
  %v1758 = vsub.f32 %v1756, %v1757
  %v1759 = vand.u32 %v1758, 4294901760
  %1760 = vmatpush.msra.mxu0 %v1759
  %v1761 = vand.u32 %v1075, 4294901760
  %v1762 = vsub.f32 %v1075, %v1761
  %v1763 = vand.u32 %v1762, 4294901760
  %v1764 = vsub.f32 %v1762, %v1763
  %v1765 = vand.u32 %v1764, 4294901760
  %1766 = vmatpush.msra.mxu0 %v1765
  %v1767 = vand.u32 %v1064, 4294901760
  %v1768 = vsub.f32 %v1064, %v1767
  %v1769 = vand.u32 %v1768, 4294901760
  %v1770 = vsub.f32 %v1768, %v1769
  %v1771 = vand.u32 %v1770, 4294901760
  %1772 = vmatpush.msra.mxu0 %v1771
  %v1773 = vand.u32 %v1055, 4294901760
  %v1774 = vsub.f32 %v1055, %v1773
  %v1775 = vand.u32 %v1774, 4294901760
  %v1776 = vsub.f32 %v1774, %v1775
  %v1777 = vand.u32 %v1776, 4294901760
  %1778 = vmatpush.msra.mxu0 %v1777
  %v1779 = vand.u32 %v1150, 4294901760
  %1780 = vmatmul.f32.gmra.mxu0 %v1779
  %v1781 = vpop.f32.mrf.mxu0
  %v1782 = vadd.f32 %v1711, %v1781
  %1783 = vdwg.mxu0
  %1784 = vmatpush.msra.mxu0 0.0
  %1785 = vmatpush.msra.mxu0 0.0
  %1786 = vmatpush.msra.mxu0 0.0
  %1787 = vmatpush.msra.mxu0 0.0
  %1788 = vmatpush.msra.mxu0 0.0
  %1789 = vmatpush.msra.mxu0 0.0
  %v1790 = vand.u32 %v130, 4294901760
  %v1791 = vsub.f32 %v130, %v1790
  %1792 = vmatpush.msra.mxu0 %v1791
  %v1793 = vand.u32 %v1141, 4294901760
  %v1794 = vsub.f32 %v1141, %v1793
  %1795 = vmatpush.msra.mxu0 %v1794
  %v1796 = vand.u32 %v1130, 4294901760
  %v1797 = vsub.f32 %v1130, %v1796
  %1798 = vmatpush.msra.mxu0 %v1797
  %v1799 = vand.u32 %v1119, 4294901760
  %v1800 = vsub.f32 %v1119, %v1799
  %1801 = vmatpush.msra.mxu0 %v1800
  %v1802 = vand.u32 %v1108, 4294901760
  %v1803 = vsub.f32 %v1108, %v1802
  %1804 = vmatpush.msra.mxu0 %v1803
  %v1805 = vand.u32 %v1097, 4294901760
  %v1806 = vsub.f32 %v1097, %v1805
  %1807 = vmatpush.msra.mxu0 %v1806
  %v1808 = vand.u32 %v1086, 4294901760
  %v1809 = vsub.f32 %v1086, %v1808
  %1810 = vmatpush.msra.mxu0 %v1809
  %v1811 = vand.u32 %v1075, 4294901760
  %v1812 = vsub.f32 %v1075, %v1811
  %1813 = vmatpush.msra.mxu0 %v1812
  %v1814 = vand.u32 %v1064, 4294901760
  %v1815 = vsub.f32 %v1064, %v1814
  %1816 = vmatpush.msra.mxu0 %v1815
  %v1817 = vand.u32 %v1055, 4294901760
  %v1818 = vsub.f32 %v1055, %v1817
  %1819 = vmatpush.msra.mxu0 %v1818
  %v1820 = vand.u32 %v1150, 4294901760
  %v1821 = vsub.f32 %v1150, %v1820
  %1822 = vmatmul.f32.gmra.mxu0 %v1821
  %v1823 = vpop.f32.mrf.mxu0
  %v1824 = vadd.f32 %v1782, %v1823
  %1825 = vdwg.mxu0
  %1826 = vmatpush.msra.mxu0 0.0
  %1827 = vmatpush.msra.mxu0 0.0
  %1828 = vmatpush.msra.mxu0 0.0
  %1829 = vmatpush.msra.mxu0 0.0
  %1830 = vmatpush.msra.mxu0 0.0
  %1831 = vmatpush.msra.mxu0 0.0
  %v1832 = vand.u32 %v130, 4294901760
  %1833 = vmatpush.msra.mxu0 %v1832
  %v1834 = vand.u32 %v1141, 4294901760
  %1835 = vmatpush.msra.mxu0 %v1834
  %v1836 = vand.u32 %v1130, 4294901760
  %1837 = vmatpush.msra.mxu0 %v1836
  %v1838 = vand.u32 %v1119, 4294901760
  %1839 = vmatpush.msra.mxu0 %v1838
  %v1840 = vand.u32 %v1108, 4294901760
  %1841 = vmatpush.msra.mxu0 %v1840
  %v1842 = vand.u32 %v1097, 4294901760
  %1843 = vmatpush.msra.mxu0 %v1842
  %v1844 = vand.u32 %v1086, 4294901760
  %1845 = vmatpush.msra.mxu0 %v1844
  %v1846 = vand.u32 %v1075, 4294901760
  %1847 = vmatpush.msra.mxu0 %v1846
  %v1848 = vand.u32 %v1064, 4294901760
  %1849 = vmatpush.msra.mxu0 %v1848
  %v1850 = vand.u32 %v1055, 4294901760
  %1851 = vmatpush.msra.mxu0 %v1850
  %v1852 = vand.u32 %v1150, 4294901760
  %v1853 = vsub.f32 %v1150, %v1852
  %v1854 = vand.u32 %v1853, 4294901760
  %1855 = vmatmul.f32.gmra.mxu0 %v1854
  %v1856 = vpop.f32.mrf.mxu0
  %v1857 = vadd.f32 %v1824, %v1856
  %1858 = vdwg.mxu0
  %1859 = vmatpush.msra.mxu0 0.0
  %1860 = vmatpush.msra.mxu0 0.0
  %1861 = vmatpush.msra.mxu0 0.0
  %1862 = vmatpush.msra.mxu0 0.0
  %1863 = vmatpush.msra.mxu0 0.0
  %1864 = vmatpush.msra.mxu0 0.0
  %v1865 = vand.u32 %v130, 4294901760
  %v1866 = vsub.f32 %v130, %v1865
  %v1867 = vand.u32 %v1866, 4294901760
  %1868 = vmatpush.msra.mxu0 %v1867
  %v1869 = vand.u32 %v1141, 4294901760
  %v1870 = vsub.f32 %v1141, %v1869
  %v1871 = vand.u32 %v1870, 4294901760
  %1872 = vmatpush.msra.mxu0 %v1871
  %v1873 = vand.u32 %v1130, 4294901760
  %v1874 = vsub.f32 %v1130, %v1873
  %v1875 = vand.u32 %v1874, 4294901760
  %1876 = vmatpush.msra.mxu0 %v1875
  %v1877 = vand.u32 %v1119, 4294901760
  %v1878 = vsub.f32 %v1119, %v1877
  %v1879 = vand.u32 %v1878, 4294901760
  %1880 = vmatpush.msra.mxu0 %v1879
  %v1881 = vand.u32 %v1108, 4294901760
  %v1882 = vsub.f32 %v1108, %v1881
  %v1883 = vand.u32 %v1882, 4294901760
  %1884 = vmatpush.msra.mxu0 %v1883
  %v1885 = vand.u32 %v1097, 4294901760
  %v1886 = vsub.f32 %v1097, %v1885
  %v1887 = vand.u32 %v1886, 4294901760
  %1888 = vmatpush.msra.mxu0 %v1887
  %v1889 = vand.u32 %v1086, 4294901760
  %v1890 = vsub.f32 %v1086, %v1889
  %v1891 = vand.u32 %v1890, 4294901760
  %1892 = vmatpush.msra.mxu0 %v1891
  %v1893 = vand.u32 %v1075, 4294901760
  %v1894 = vsub.f32 %v1075, %v1893
  %v1895 = vand.u32 %v1894, 4294901760
  %1896 = vmatpush.msra.mxu0 %v1895
  %v1897 = vand.u32 %v1064, 4294901760
  %v1898 = vsub.f32 %v1064, %v1897
  %v1899 = vand.u32 %v1898, 4294901760
  %1900 = vmatpush.msra.mxu0 %v1899
  %v1901 = vand.u32 %v1055, 4294901760
  %v1902 = vsub.f32 %v1055, %v1901
  %v1903 = vand.u32 %v1902, 4294901760
  %1904 = vmatpush.msra.mxu0 %v1903
  %v1905 = vand.u32 %v1150, 4294901760
  %1906 = vmatmul.f32.gmra.mxu0 %v1905
  %v1907 = vpop.f32.mrf.mxu0
  %v1908 = vadd.f32 %v1857, %v1907
  %1909 = vdwg.mxu0
  %1910 = vmatpush.msra.mxu0 0.0
  %1911 = vmatpush.msra.mxu0 0.0
  %1912 = vmatpush.msra.mxu0 0.0
  %1913 = vmatpush.msra.mxu0 0.0
  %1914 = vmatpush.msra.mxu0 0.0
  %1915 = vmatpush.msra.mxu0 0.0
  %v1916 = vand.u32 %v130, 4294901760
  %1917 = vmatpush.msra.mxu0 %v1916
  %v1918 = vand.u32 %v1141, 4294901760
  %1919 = vmatpush.msra.mxu0 %v1918
  %v1920 = vand.u32 %v1130, 4294901760
  %1921 = vmatpush.msra.mxu0 %v1920
  %v1922 = vand.u32 %v1119, 4294901760
  %1923 = vmatpush.msra.mxu0 %v1922
  %v1924 = vand.u32 %v1108, 4294901760
  %1925 = vmatpush.msra.mxu0 %v1924
  %v1926 = vand.u32 %v1097, 4294901760
  %1927 = vmatpush.msra.mxu0 %v1926
  %v1928 = vand.u32 %v1086, 4294901760
  %1929 = vmatpush.msra.mxu0 %v1928
  %v1930 = vand.u32 %v1075, 4294901760
  %1931 = vmatpush.msra.mxu0 %v1930
  %v1932 = vand.u32 %v1064, 4294901760
  %1933 = vmatpush.msra.mxu0 %v1932
  %v1934 = vand.u32 %v1055, 4294901760
  %1935 = vmatpush.msra.mxu0 %v1934
  %v1936 = vand.u32 %v1150, 4294901760
  %1937 = vmatmul.f32.gmra.mxu0 %v1936
  %v1938 = vpop.f32.mrf.mxu0
  %v1939 = vadd.f32 %v1908, %v1938
  %1940 = vdwg.mxu0
  %v1941 = vsel %vm123, %v1413, 0.0
  %v1942 = vsel %vm124, %v1676, 0.0
  %v1943 = vsel %vm125, %v1939, 0.0
  %1947 = vrot.lane.b32.xlu0 %v1941, 19
  %v1948 = vpop.permute.xlu0 %1947
  %1949 = vrot.lane.b32.xlu0 %v1942, 19
  %v1950 = vpop.permute.xlu0 %1949
  %1951 = vrot.lane.b32.xlu0 %v1943, 19
  %v1952 = vpop.permute.xlu0 %1951
  %v1953 = vsel %vm1042, %v1948, %v1950
  %v1954 = vsel %vm1042, %v1950, %v1952
  %1958 = vst.msk [vmem:[#allocation2] sm:$0xff] %vm1048, %v1948
  %1959 = vst [vmem:[#allocation2 + $0x8] sm:$0xff] %v1953
  %1960 = vst.msk [vmem:[#allocation2 + $0x10] sm:$0xff] %vm1051, %v1954
  %v1961 = vld [vmem:[#allocation2] sm:$0xff]
  %v1962 = vld [vmem:[#allocation2 + $0x8] sm:$0xff]
  %v1963 = vld [vmem:[#allocation2 + $0x10] sm:$0xff]
  %1967 = vrot.lane.b32.xlu0 %v1961, 127
  %v1968 = vpop.permute.xlu0 %1967
  %1969 = vrot.lane.b32.xlu0 %v1962, 127
  %v1970 = vpop.permute.xlu0 %1969
  %1971 = vrot.lane.b32.xlu0 %v1963, 127
  %v1972 = vpop.permute.xlu0 %1971
  %v1973 = vsel %vm143, %v1968, %v1970
  %v1974 = vsel %vm143, %v1970, %v1972
  %1978 = vrot.lane.b32.xlu0 %v1961, 126
  %v1979 = vpop.permute.xlu0 %1978
  %1980 = vrot.lane.b32.xlu0 %v1962, 126
  %v1981 = vpop.permute.xlu0 %1980
  %1982 = vrot.lane.b32.xlu0 %v1963, 126
  %v1983 = vpop.permute.xlu0 %1982
  %v1984 = vsel %vm155, %v1979, %v1981
  %v1985 = vsel %vm155, %v1981, %v1983
  %1989 = vrot.lane.b32.xlu0 %v1961, 110
  %v1990 = vpop.permute.xlu0 %1989
  %1991 = vrot.lane.b32.xlu0 %v1962, 110
  %v1992 = vpop.permute.xlu0 %1991
  %1993 = vrot.lane.b32.xlu0 %v1963, 110
  %v1994 = vpop.permute.xlu0 %1993
  %v1995 = vsel %vm167, %v1990, %v1992
  %v1996 = vsel %vm167, %v1992, %v1994
  %2000 = vrot.lane.b32.xlu0 %v1961, 109
  %v2001 = vpop.permute.xlu0 %2000
  %2002 = vrot.lane.b32.xlu0 %v1962, 109
  %v2003 = vpop.permute.xlu0 %2002
  %2004 = vrot.lane.b32.xlu0 %v1963, 109
  %v2005 = vpop.permute.xlu0 %2004
  %v2006 = vsel %vm179, %v2001, %v2003
  %v2007 = vsel %vm179, %v2003, %v2005
  %2011 = vrot.lane.b32.xlu0 %v1961, 108
  %v2012 = vpop.permute.xlu0 %2011
  %2013 = vrot.lane.b32.xlu0 %v1962, 108
  %v2014 = vpop.permute.xlu0 %2013
  %2015 = vrot.lane.b32.xlu0 %v1963, 108
  %v2016 = vpop.permute.xlu0 %2015
  %v2017 = vsel %vm191, %v2012, %v2014
  %v2018 = vsel %vm191, %v2014, %v2016
  %2022 = vrot.lane.b32.xlu0 %v1961, 92
  %v2023 = vpop.permute.xlu0 %2022
  %2024 = vrot.lane.b32.xlu0 %v1962, 92
  %v2025 = vpop.permute.xlu0 %2024
  %2026 = vrot.lane.b32.xlu0 %v1963, 92
  %v2027 = vpop.permute.xlu0 %2026
  %v2028 = vsel %vm203, %v2023, %v2025
  %v2029 = vsel %vm203, %v2025, %v2027
  %2033 = vrot.lane.b32.xlu0 %v1961, 91
  %v2034 = vpop.permute.xlu0 %2033
  %2035 = vrot.lane.b32.xlu0 %v1962, 91
  %v2036 = vpop.permute.xlu0 %2035
  %2037 = vrot.lane.b32.xlu0 %v1963, 91
  %v2038 = vpop.permute.xlu0 %2037
  %v2039 = vsel %vm215, %v2034, %v2036
  %v2040 = vsel %vm215, %v2036, %v2038
  %2044 = vrot.lane.b32.xlu0 %v1961, 90
  %v2045 = vpop.permute.xlu0 %2044
  %2046 = vrot.lane.b32.xlu0 %v1962, 90
  %v2047 = vpop.permute.xlu0 %2046
  %2048 = vrot.lane.b32.xlu0 %v1963, 90
  %v2049 = vpop.permute.xlu0 %2048
  %v2050 = vsel %vm227, %v2045, %v2047
  %v2051 = vsel %vm227, %v2047, %v2049
  %s2055 = scalar_lea.vmem %s1, 16
  %v2056 = vld [vmem:[%s2055] sm:$0xff]
  %v2058 = vsel %vm234, %v2056, 0
  %2060 = vmatpush.msra.mxu0 0.0
  %2061 = vmatpush.msra.mxu0 0.0
  %2062 = vmatpush.msra.mxu0 0.0
  %2063 = vmatpush.msra.mxu0 0.0
  %2064 = vmatpush.msra.mxu0 0.0
  %2065 = vmatpush.msra.mxu0 0.0
  %v2066 = vand.u32 %v130, 4294901760
  %2067 = vmatpush.msra.mxu0 %v2066
  %v2068 = vand.u32 %v2050, 4294901760
  %2069 = vmatpush.msra.mxu0 %v2068
  %v2070 = vand.u32 %v2039, 4294901760
  %2071 = vmatpush.msra.mxu0 %v2070
  %v2072 = vand.u32 %v2028, 4294901760
  %2073 = vmatpush.msra.mxu0 %v2072
  %v2074 = vand.u32 %v2017, 4294901760
  %2075 = vmatpush.msra.mxu0 %v2074
  %v2076 = vand.u32 %v2006, 4294901760
  %2077 = vmatpush.msra.mxu0 %v2076
  %v2078 = vand.u32 %v1995, 4294901760
  %2079 = vmatpush.msra.mxu0 %v2078
  %v2080 = vand.u32 %v1984, 4294901760
  %2081 = vmatpush.msra.mxu0 %v2080
  %v2082 = vand.u32 %v1973, 4294901760
  %2083 = vmatpush.msra.mxu0 %v2082
  %v2084 = vand.u32 %v1961, 4294901760
  %2085 = vmatpush.msra.mxu0 %v2084
  %v2086 = vand.u32 %v2058, 4294901760
  %v2087 = vsub.f32 %v2058, %v2086
  %v2088 = vand.u32 %v2087, 4294901760
  %v2089 = vsub.f32 %v2087, %v2088
  %v2090 = vand.u32 %v2089, 4294901760
  %2091 = vmatmul.f32.gmra.mxu0 %v2090
  %v2092 = vpop.f32.mrf.mxu0
  %v2093 = vadd.f32 0.0, %v2092
  %2094 = vdwg.mxu0
  %2095 = vmatpush.msra.mxu0 0.0
  %2096 = vmatpush.msra.mxu0 0.0
  %2097 = vmatpush.msra.mxu0 0.0
  %2098 = vmatpush.msra.mxu0 0.0
  %2099 = vmatpush.msra.mxu0 0.0
  %2100 = vmatpush.msra.mxu0 0.0
  %v2101 = vand.u32 %v130, 4294901760
  %v2102 = vsub.f32 %v130, %v2101
  %v2103 = vand.u32 %v2102, 4294901760
  %v2104 = vsub.f32 %v2102, %v2103
  %v2105 = vand.u32 %v2104, 4294901760
  %2106 = vmatpush.msra.mxu0 %v2105
  %v2107 = vand.u32 %v2050, 4294901760
  %v2108 = vsub.f32 %v2050, %v2107
  %v2109 = vand.u32 %v2108, 4294901760
  %v2110 = vsub.f32 %v2108, %v2109
  %v2111 = vand.u32 %v2110, 4294901760
  %2112 = vmatpush.msra.mxu0 %v2111
  %v2113 = vand.u32 %v2039, 4294901760
  %v2114 = vsub.f32 %v2039, %v2113
  %v2115 = vand.u32 %v2114, 4294901760
  %v2116 = vsub.f32 %v2114, %v2115
  %v2117 = vand.u32 %v2116, 4294901760
  %2118 = vmatpush.msra.mxu0 %v2117
  %v2119 = vand.u32 %v2028, 4294901760
  %v2120 = vsub.f32 %v2028, %v2119
  %v2121 = vand.u32 %v2120, 4294901760
  %v2122 = vsub.f32 %v2120, %v2121
  %v2123 = vand.u32 %v2122, 4294901760
  %2124 = vmatpush.msra.mxu0 %v2123
  %v2125 = vand.u32 %v2017, 4294901760
  %v2126 = vsub.f32 %v2017, %v2125
  %v2127 = vand.u32 %v2126, 4294901760
  %v2128 = vsub.f32 %v2126, %v2127
  %v2129 = vand.u32 %v2128, 4294901760
  %2130 = vmatpush.msra.mxu0 %v2129
  %v2131 = vand.u32 %v2006, 4294901760
  %v2132 = vsub.f32 %v2006, %v2131
  %v2133 = vand.u32 %v2132, 4294901760
  %v2134 = vsub.f32 %v2132, %v2133
  %v2135 = vand.u32 %v2134, 4294901760
  %2136 = vmatpush.msra.mxu0 %v2135
  %v2137 = vand.u32 %v1995, 4294901760
  %v2138 = vsub.f32 %v1995, %v2137
  %v2139 = vand.u32 %v2138, 4294901760
  %v2140 = vsub.f32 %v2138, %v2139
  %v2141 = vand.u32 %v2140, 4294901760
  %2142 = vmatpush.msra.mxu0 %v2141
  %v2143 = vand.u32 %v1984, 4294901760
  %v2144 = vsub.f32 %v1984, %v2143
  %v2145 = vand.u32 %v2144, 4294901760
  %v2146 = vsub.f32 %v2144, %v2145
  %v2147 = vand.u32 %v2146, 4294901760
  %2148 = vmatpush.msra.mxu0 %v2147
  %v2149 = vand.u32 %v1973, 4294901760
  %v2150 = vsub.f32 %v1973, %v2149
  %v2151 = vand.u32 %v2150, 4294901760
  %v2152 = vsub.f32 %v2150, %v2151
  %v2153 = vand.u32 %v2152, 4294901760
  %2154 = vmatpush.msra.mxu0 %v2153
  %v2155 = vand.u32 %v1961, 4294901760
  %v2156 = vsub.f32 %v1961, %v2155
  %v2157 = vand.u32 %v2156, 4294901760
  %v2158 = vsub.f32 %v2156, %v2157
  %v2159 = vand.u32 %v2158, 4294901760
  %2160 = vmatpush.msra.mxu0 %v2159
  %v2161 = vand.u32 %v2058, 4294901760
  %2162 = vmatmul.f32.gmra.mxu0 %v2161
  %v2163 = vpop.f32.mrf.mxu0
  %v2164 = vadd.f32 %v2093, %v2163
  %2165 = vdwg.mxu0
  %2166 = vmatpush.msra.mxu0 0.0
  %2167 = vmatpush.msra.mxu0 0.0
  %2168 = vmatpush.msra.mxu0 0.0
  %2169 = vmatpush.msra.mxu0 0.0
  %2170 = vmatpush.msra.mxu0 0.0
  %2171 = vmatpush.msra.mxu0 0.0
  %v2172 = vand.u32 %v130, 4294901760
  %v2173 = vsub.f32 %v130, %v2172
  %2174 = vmatpush.msra.mxu0 %v2173
  %v2175 = vand.u32 %v2050, 4294901760
  %v2176 = vsub.f32 %v2050, %v2175
  %2177 = vmatpush.msra.mxu0 %v2176
  %v2178 = vand.u32 %v2039, 4294901760
  %v2179 = vsub.f32 %v2039, %v2178
  %2180 = vmatpush.msra.mxu0 %v2179
  %v2181 = vand.u32 %v2028, 4294901760
  %v2182 = vsub.f32 %v2028, %v2181
  %2183 = vmatpush.msra.mxu0 %v2182
  %v2184 = vand.u32 %v2017, 4294901760
  %v2185 = vsub.f32 %v2017, %v2184
  %2186 = vmatpush.msra.mxu0 %v2185
  %v2187 = vand.u32 %v2006, 4294901760
  %v2188 = vsub.f32 %v2006, %v2187
  %2189 = vmatpush.msra.mxu0 %v2188
  %v2190 = vand.u32 %v1995, 4294901760
  %v2191 = vsub.f32 %v1995, %v2190
  %2192 = vmatpush.msra.mxu0 %v2191
  %v2193 = vand.u32 %v1984, 4294901760
  %v2194 = vsub.f32 %v1984, %v2193
  %2195 = vmatpush.msra.mxu0 %v2194
  %v2196 = vand.u32 %v1973, 4294901760
  %v2197 = vsub.f32 %v1973, %v2196
  %2198 = vmatpush.msra.mxu0 %v2197
  %v2199 = vand.u32 %v1961, 4294901760
  %v2200 = vsub.f32 %v1961, %v2199
  %2201 = vmatpush.msra.mxu0 %v2200
  %v2202 = vand.u32 %v2058, 4294901760
  %v2203 = vsub.f32 %v2058, %v2202
  %2204 = vmatmul.f32.gmra.mxu0 %v2203
  %v2205 = vpop.f32.mrf.mxu0
  %v2206 = vadd.f32 %v2164, %v2205
  %2207 = vdwg.mxu0
  %2208 = vmatpush.msra.mxu0 0.0
  %2209 = vmatpush.msra.mxu0 0.0
  %2210 = vmatpush.msra.mxu0 0.0
  %2211 = vmatpush.msra.mxu0 0.0
  %2212 = vmatpush.msra.mxu0 0.0
  %2213 = vmatpush.msra.mxu0 0.0
  %v2214 = vand.u32 %v130, 4294901760
  %2215 = vmatpush.msra.mxu0 %v2214
  %v2216 = vand.u32 %v2050, 4294901760
  %2217 = vmatpush.msra.mxu0 %v2216
  %v2218 = vand.u32 %v2039, 4294901760
  %2219 = vmatpush.msra.mxu0 %v2218
  %v2220 = vand.u32 %v2028, 4294901760
  %2221 = vmatpush.msra.mxu0 %v2220
  %v2222 = vand.u32 %v2017, 4294901760
  %2223 = vmatpush.msra.mxu0 %v2222
  %v2224 = vand.u32 %v2006, 4294901760
  %2225 = vmatpush.msra.mxu0 %v2224
  %v2226 = vand.u32 %v1995, 4294901760
  %2227 = vmatpush.msra.mxu0 %v2226
  %v2228 = vand.u32 %v1984, 4294901760
  %2229 = vmatpush.msra.mxu0 %v2228
  %v2230 = vand.u32 %v1973, 4294901760
  %2231 = vmatpush.msra.mxu0 %v2230
  %v2232 = vand.u32 %v1961, 4294901760
  %2233 = vmatpush.msra.mxu0 %v2232
  %v2234 = vand.u32 %v2058, 4294901760
  %v2235 = vsub.f32 %v2058, %v2234
  %v2236 = vand.u32 %v2235, 4294901760
  %2237 = vmatmul.f32.gmra.mxu0 %v2236
  %v2238 = vpop.f32.mrf.mxu0
  %v2239 = vadd.f32 %v2206, %v2238
  %2240 = vdwg.mxu0
  %2241 = vmatpush.msra.mxu0 0.0
  %2242 = vmatpush.msra.mxu0 0.0
  %2243 = vmatpush.msra.mxu0 0.0
  %2244 = vmatpush.msra.mxu0 0.0
  %2245 = vmatpush.msra.mxu0 0.0
  %2246 = vmatpush.msra.mxu0 0.0
  %v2247 = vand.u32 %v130, 4294901760
  %v2248 = vsub.f32 %v130, %v2247
  %v2249 = vand.u32 %v2248, 4294901760
  %2250 = vmatpush.msra.mxu0 %v2249
  %v2251 = vand.u32 %v2050, 4294901760
  %v2252 = vsub.f32 %v2050, %v2251
  %v2253 = vand.u32 %v2252, 4294901760
  %2254 = vmatpush.msra.mxu0 %v2253
  %v2255 = vand.u32 %v2039, 4294901760
  %v2256 = vsub.f32 %v2039, %v2255
  %v2257 = vand.u32 %v2256, 4294901760
  %2258 = vmatpush.msra.mxu0 %v2257
  %v2259 = vand.u32 %v2028, 4294901760
  %v2260 = vsub.f32 %v2028, %v2259
  %v2261 = vand.u32 %v2260, 4294901760
  %2262 = vmatpush.msra.mxu0 %v2261
  %v2263 = vand.u32 %v2017, 4294901760
  %v2264 = vsub.f32 %v2017, %v2263
  %v2265 = vand.u32 %v2264, 4294901760
  %2266 = vmatpush.msra.mxu0 %v2265
  %v2267 = vand.u32 %v2006, 4294901760
  %v2268 = vsub.f32 %v2006, %v2267
  %v2269 = vand.u32 %v2268, 4294901760
  %2270 = vmatpush.msra.mxu0 %v2269
  %v2271 = vand.u32 %v1995, 4294901760
  %v2272 = vsub.f32 %v1995, %v2271
  %v2273 = vand.u32 %v2272, 4294901760
  %2274 = vmatpush.msra.mxu0 %v2273
  %v2275 = vand.u32 %v1984, 4294901760
  %v2276 = vsub.f32 %v1984, %v2275
  %v2277 = vand.u32 %v2276, 4294901760
  %2278 = vmatpush.msra.mxu0 %v2277
  %v2279 = vand.u32 %v1973, 4294901760
  %v2280 = vsub.f32 %v1973, %v2279
  %v2281 = vand.u32 %v2280, 4294901760
  %2282 = vmatpush.msra.mxu0 %v2281
  %v2283 = vand.u32 %v1961, 4294901760
  %v2284 = vsub.f32 %v1961, %v2283
  %v2285 = vand.u32 %v2284, 4294901760
  %2286 = vmatpush.msra.mxu0 %v2285
  %v2287 = vand.u32 %v2058, 4294901760
  %2288 = vmatmul.f32.gmra.mxu0 %v2287
  %v2289 = vpop.f32.mrf.mxu0
  %v2290 = vadd.f32 %v2239, %v2289
  %2291 = vdwg.mxu0
  %2292 = vmatpush.msra.mxu0 0.0
  %2293 = vmatpush.msra.mxu0 0.0
  %2294 = vmatpush.msra.mxu0 0.0
  %2295 = vmatpush.msra.mxu0 0.0
  %2296 = vmatpush.msra.mxu0 0.0
  %2297 = vmatpush.msra.mxu0 0.0
  %v2298 = vand.u32 %v130, 4294901760
  %2299 = vmatpush.msra.mxu0 %v2298
  %v2300 = vand.u32 %v2050, 4294901760
  %2301 = vmatpush.msra.mxu0 %v2300
  %v2302 = vand.u32 %v2039, 4294901760
  %2303 = vmatpush.msra.mxu0 %v2302
  %v2304 = vand.u32 %v2028, 4294901760
  %2305 = vmatpush.msra.mxu0 %v2304
  %v2306 = vand.u32 %v2017, 4294901760
  %2307 = vmatpush.msra.mxu0 %v2306
  %v2308 = vand.u32 %v2006, 4294901760
  %2309 = vmatpush.msra.mxu0 %v2308
  %v2310 = vand.u32 %v1995, 4294901760
  %2311 = vmatpush.msra.mxu0 %v2310
  %v2312 = vand.u32 %v1984, 4294901760
  %2313 = vmatpush.msra.mxu0 %v2312
  %v2314 = vand.u32 %v1973, 4294901760
  %2315 = vmatpush.msra.mxu0 %v2314
  %v2316 = vand.u32 %v1961, 4294901760
  %2317 = vmatpush.msra.mxu0 %v2316
  %v2318 = vand.u32 %v2058, 4294901760
  %2319 = vmatmul.f32.gmra.mxu0 %v2318
  %v2320 = vpop.f32.mrf.mxu0
  %v2321 = vadd.f32 %v2290, %v2320
  %2322 = vdwg.mxu0
  %2323 = vmatpush.msra.mxu0 0.0
  %2324 = vmatpush.msra.mxu0 0.0
  %2325 = vmatpush.msra.mxu0 0.0
  %2326 = vmatpush.msra.mxu0 0.0
  %2327 = vmatpush.msra.mxu0 0.0
  %2328 = vmatpush.msra.mxu0 0.0
  %v2329 = vand.u32 %v130, 4294901760
  %2330 = vmatpush.msra.mxu0 %v2329
  %v2331 = vand.u32 %v2051, 4294901760
  %2332 = vmatpush.msra.mxu0 %v2331
  %v2333 = vand.u32 %v2040, 4294901760
  %2334 = vmatpush.msra.mxu0 %v2333
  %v2335 = vand.u32 %v2029, 4294901760
  %2336 = vmatpush.msra.mxu0 %v2335
  %v2337 = vand.u32 %v2018, 4294901760
  %2338 = vmatpush.msra.mxu0 %v2337
  %v2339 = vand.u32 %v2007, 4294901760
  %2340 = vmatpush.msra.mxu0 %v2339
  %v2341 = vand.u32 %v1996, 4294901760
  %2342 = vmatpush.msra.mxu0 %v2341
  %v2343 = vand.u32 %v1985, 4294901760
  %2344 = vmatpush.msra.mxu0 %v2343
  %v2345 = vand.u32 %v1974, 4294901760
  %2346 = vmatpush.msra.mxu0 %v2345
  %v2347 = vand.u32 %v1962, 4294901760
  %2348 = vmatpush.msra.mxu0 %v2347
  %v2349 = vand.u32 %v2058, 4294901760
  %v2350 = vsub.f32 %v2058, %v2349
  %v2351 = vand.u32 %v2350, 4294901760
  %v2352 = vsub.f32 %v2350, %v2351
  %v2353 = vand.u32 %v2352, 4294901760
  %2354 = vmatmul.f32.gmra.mxu0 %v2353
  %v2355 = vpop.f32.mrf.mxu0
  %v2356 = vadd.f32 0.0, %v2355
  %2357 = vdwg.mxu0
  %2358 = vmatpush.msra.mxu0 0.0
  %2359 = vmatpush.msra.mxu0 0.0
  %2360 = vmatpush.msra.mxu0 0.0
  %2361 = vmatpush.msra.mxu0 0.0
  %2362 = vmatpush.msra.mxu0 0.0
  %2363 = vmatpush.msra.mxu0 0.0
  %v2364 = vand.u32 %v130, 4294901760
  %v2365 = vsub.f32 %v130, %v2364
  %v2366 = vand.u32 %v2365, 4294901760
  %v2367 = vsub.f32 %v2365, %v2366
  %v2368 = vand.u32 %v2367, 4294901760
  %2369 = vmatpush.msra.mxu0 %v2368
  %v2370 = vand.u32 %v2051, 4294901760
  %v2371 = vsub.f32 %v2051, %v2370
  %v2372 = vand.u32 %v2371, 4294901760
  %v2373 = vsub.f32 %v2371, %v2372
  %v2374 = vand.u32 %v2373, 4294901760
  %2375 = vmatpush.msra.mxu0 %v2374
  %v2376 = vand.u32 %v2040, 4294901760
  %v2377 = vsub.f32 %v2040, %v2376
  %v2378 = vand.u32 %v2377, 4294901760
  %v2379 = vsub.f32 %v2377, %v2378
  %v2380 = vand.u32 %v2379, 4294901760
  %2381 = vmatpush.msra.mxu0 %v2380
  %v2382 = vand.u32 %v2029, 4294901760
  %v2383 = vsub.f32 %v2029, %v2382
  %v2384 = vand.u32 %v2383, 4294901760
  %v2385 = vsub.f32 %v2383, %v2384
  %v2386 = vand.u32 %v2385, 4294901760
  %2387 = vmatpush.msra.mxu0 %v2386
  %v2388 = vand.u32 %v2018, 4294901760
  %v2389 = vsub.f32 %v2018, %v2388
  %v2390 = vand.u32 %v2389, 4294901760
  %v2391 = vsub.f32 %v2389, %v2390
  %v2392 = vand.u32 %v2391, 4294901760
  %2393 = vmatpush.msra.mxu0 %v2392
  %v2394 = vand.u32 %v2007, 4294901760
  %v2395 = vsub.f32 %v2007, %v2394
  %v2396 = vand.u32 %v2395, 4294901760
  %v2397 = vsub.f32 %v2395, %v2396
  %v2398 = vand.u32 %v2397, 4294901760
  %2399 = vmatpush.msra.mxu0 %v2398
  %v2400 = vand.u32 %v1996, 4294901760
  %v2401 = vsub.f32 %v1996, %v2400
  %v2402 = vand.u32 %v2401, 4294901760
  %v2403 = vsub.f32 %v2401, %v2402
  %v2404 = vand.u32 %v2403, 4294901760
  %2405 = vmatpush.msra.mxu0 %v2404
  %v2406 = vand.u32 %v1985, 4294901760
  %v2407 = vsub.f32 %v1985, %v2406
  %v2408 = vand.u32 %v2407, 4294901760
  %v2409 = vsub.f32 %v2407, %v2408
  %v2410 = vand.u32 %v2409, 4294901760
  %2411 = vmatpush.msra.mxu0 %v2410
  %v2412 = vand.u32 %v1974, 4294901760
  %v2413 = vsub.f32 %v1974, %v2412
  %v2414 = vand.u32 %v2413, 4294901760
  %v2415 = vsub.f32 %v2413, %v2414
  %v2416 = vand.u32 %v2415, 4294901760
  %2417 = vmatpush.msra.mxu0 %v2416
  %v2418 = vand.u32 %v1962, 4294901760
  %v2419 = vsub.f32 %v1962, %v2418
  %v2420 = vand.u32 %v2419, 4294901760
  %v2421 = vsub.f32 %v2419, %v2420
  %v2422 = vand.u32 %v2421, 4294901760
  %2423 = vmatpush.msra.mxu0 %v2422
  %v2424 = vand.u32 %v2058, 4294901760
  %2425 = vmatmul.f32.gmra.mxu0 %v2424
  %v2426 = vpop.f32.mrf.mxu0
  %v2427 = vadd.f32 %v2356, %v2426
  %2428 = vdwg.mxu0
  %2429 = vmatpush.msra.mxu0 0.0
  %2430 = vmatpush.msra.mxu0 0.0
  %2431 = vmatpush.msra.mxu0 0.0
  %2432 = vmatpush.msra.mxu0 0.0
  %2433 = vmatpush.msra.mxu0 0.0
  %2434 = vmatpush.msra.mxu0 0.0
  %v2435 = vand.u32 %v130, 4294901760
  %v2436 = vsub.f32 %v130, %v2435
  %2437 = vmatpush.msra.mxu0 %v2436
  %v2438 = vand.u32 %v2051, 4294901760
  %v2439 = vsub.f32 %v2051, %v2438
  %2440 = vmatpush.msra.mxu0 %v2439
  %v2441 = vand.u32 %v2040, 4294901760
  %v2442 = vsub.f32 %v2040, %v2441
  %2443 = vmatpush.msra.mxu0 %v2442
  %v2444 = vand.u32 %v2029, 4294901760
  %v2445 = vsub.f32 %v2029, %v2444
  %2446 = vmatpush.msra.mxu0 %v2445
  %v2447 = vand.u32 %v2018, 4294901760
  %v2448 = vsub.f32 %v2018, %v2447
  %2449 = vmatpush.msra.mxu0 %v2448
  %v2450 = vand.u32 %v2007, 4294901760
  %v2451 = vsub.f32 %v2007, %v2450
  %2452 = vmatpush.msra.mxu0 %v2451
  %v2453 = vand.u32 %v1996, 4294901760
  %v2454 = vsub.f32 %v1996, %v2453
  %2455 = vmatpush.msra.mxu0 %v2454
  %v2456 = vand.u32 %v1985, 4294901760
  %v2457 = vsub.f32 %v1985, %v2456
  %2458 = vmatpush.msra.mxu0 %v2457
  %v2459 = vand.u32 %v1974, 4294901760
  %v2460 = vsub.f32 %v1974, %v2459
  %2461 = vmatpush.msra.mxu0 %v2460
  %v2462 = vand.u32 %v1962, 4294901760
  %v2463 = vsub.f32 %v1962, %v2462
  %2464 = vmatpush.msra.mxu0 %v2463
  %v2465 = vand.u32 %v2058, 4294901760
  %v2466 = vsub.f32 %v2058, %v2465
  %2467 = vmatmul.f32.gmra.mxu0 %v2466
  %v2468 = vpop.f32.mrf.mxu0
  %v2469 = vadd.f32 %v2427, %v2468
  %2470 = vdwg.mxu0
  %2471 = vmatpush.msra.mxu0 0.0
  %2472 = vmatpush.msra.mxu0 0.0
  %2473 = vmatpush.msra.mxu0 0.0
  %2474 = vmatpush.msra.mxu0 0.0
  %2475 = vmatpush.msra.mxu0 0.0
  %2476 = vmatpush.msra.mxu0 0.0
  %v2477 = vand.u32 %v130, 4294901760
  %2478 = vmatpush.msra.mxu0 %v2477
  %v2479 = vand.u32 %v2051, 4294901760
  %2480 = vmatpush.msra.mxu0 %v2479
  %v2481 = vand.u32 %v2040, 4294901760
  %2482 = vmatpush.msra.mxu0 %v2481
  %v2483 = vand.u32 %v2029, 4294901760
  %2484 = vmatpush.msra.mxu0 %v2483
  %v2485 = vand.u32 %v2018, 4294901760
  %2486 = vmatpush.msra.mxu0 %v2485
  %v2487 = vand.u32 %v2007, 4294901760
  %2488 = vmatpush.msra.mxu0 %v2487
  %v2489 = vand.u32 %v1996, 4294901760
  %2490 = vmatpush.msra.mxu0 %v2489
  %v2491 = vand.u32 %v1985, 4294901760
  %2492 = vmatpush.msra.mxu0 %v2491
  %v2493 = vand.u32 %v1974, 4294901760
  %2494 = vmatpush.msra.mxu0 %v2493
  %v2495 = vand.u32 %v1962, 4294901760
  %2496 = vmatpush.msra.mxu0 %v2495
  %v2497 = vand.u32 %v2058, 4294901760
  %v2498 = vsub.f32 %v2058, %v2497
  %v2499 = vand.u32 %v2498, 4294901760
  %2500 = vmatmul.f32.gmra.mxu0 %v2499
  %v2501 = vpop.f32.mrf.mxu0
  %v2502 = vadd.f32 %v2469, %v2501
  %2503 = vdwg.mxu0
  %2504 = vmatpush.msra.mxu0 0.0
  %2505 = vmatpush.msra.mxu0 0.0
  %2506 = vmatpush.msra.mxu0 0.0
  %2507 = vmatpush.msra.mxu0 0.0
  %2508 = vmatpush.msra.mxu0 0.0
  %2509 = vmatpush.msra.mxu0 0.0
  %v2510 = vand.u32 %v130, 4294901760
  %v2511 = vsub.f32 %v130, %v2510
  %v2512 = vand.u32 %v2511, 4294901760
  %2513 = vmatpush.msra.mxu0 %v2512
  %v2514 = vand.u32 %v2051, 4294901760
  %v2515 = vsub.f32 %v2051, %v2514
  %v2516 = vand.u32 %v2515, 4294901760
  %2517 = vmatpush.msra.mxu0 %v2516
  %v2518 = vand.u32 %v2040, 4294901760
  %v2519 = vsub.f32 %v2040, %v2518
  %v2520 = vand.u32 %v2519, 4294901760
  %2521 = vmatpush.msra.mxu0 %v2520
  %v2522 = vand.u32 %v2029, 4294901760
  %v2523 = vsub.f32 %v2029, %v2522
  %v2524 = vand.u32 %v2523, 4294901760
  %2525 = vmatpush.msra.mxu0 %v2524
  %v2526 = vand.u32 %v2018, 4294901760
  %v2527 = vsub.f32 %v2018, %v2526
  %v2528 = vand.u32 %v2527, 4294901760
  %2529 = vmatpush.msra.mxu0 %v2528
  %v2530 = vand.u32 %v2007, 4294901760
  %v2531 = vsub.f32 %v2007, %v2530
  %v2532 = vand.u32 %v2531, 4294901760
  %2533 = vmatpush.msra.mxu0 %v2532
  %v2534 = vand.u32 %v1996, 4294901760
  %v2535 = vsub.f32 %v1996, %v2534
  %v2536 = vand.u32 %v2535, 4294901760
  %2537 = vmatpush.msra.mxu0 %v2536
  %v2538 = vand.u32 %v1985, 4294901760
  %v2539 = vsub.f32 %v1985, %v2538
  %v2540 = vand.u32 %v2539, 4294901760
  %2541 = vmatpush.msra.mxu0 %v2540
  %v2542 = vand.u32 %v1974, 4294901760
  %v2543 = vsub.f32 %v1974, %v2542
  %v2544 = vand.u32 %v2543, 4294901760
  %2545 = vmatpush.msra.mxu0 %v2544
  %v2546 = vand.u32 %v1962, 4294901760
  %v2547 = vsub.f32 %v1962, %v2546
  %v2548 = vand.u32 %v2547, 4294901760
  %2549 = vmatpush.msra.mxu0 %v2548
  %v2550 = vand.u32 %v2058, 4294901760
  %2551 = vmatmul.f32.gmra.mxu0 %v2550
  %v2552 = vpop.f32.mrf.mxu0
  %v2553 = vadd.f32 %v2502, %v2552
  %2554 = vdwg.mxu0
  %2555 = vmatpush.msra.mxu0 0.0
  %2556 = vmatpush.msra.mxu0 0.0
  %2557 = vmatpush.msra.mxu0 0.0
  %2558 = vmatpush.msra.mxu0 0.0
  %2559 = vmatpush.msra.mxu0 0.0
  %2560 = vmatpush.msra.mxu0 0.0
  %v2561 = vand.u32 %v130, 4294901760
  %2562 = vmatpush.msra.mxu0 %v2561
  %v2563 = vand.u32 %v2051, 4294901760
  %2564 = vmatpush.msra.mxu0 %v2563
  %v2565 = vand.u32 %v2040, 4294901760
  %2566 = vmatpush.msra.mxu0 %v2565
  %v2567 = vand.u32 %v2029, 4294901760
  %2568 = vmatpush.msra.mxu0 %v2567
  %v2569 = vand.u32 %v2018, 4294901760
  %2570 = vmatpush.msra.mxu0 %v2569
  %v2571 = vand.u32 %v2007, 4294901760
  %2572 = vmatpush.msra.mxu0 %v2571
  %v2573 = vand.u32 %v1996, 4294901760
  %2574 = vmatpush.msra.mxu0 %v2573
  %v2575 = vand.u32 %v1985, 4294901760
  %2576 = vmatpush.msra.mxu0 %v2575
  %v2577 = vand.u32 %v1974, 4294901760
  %2578 = vmatpush.msra.mxu0 %v2577
  %v2579 = vand.u32 %v1962, 4294901760
  %2580 = vmatpush.msra.mxu0 %v2579
  %v2581 = vand.u32 %v2058, 4294901760
  %2582 = vmatmul.f32.gmra.mxu0 %v2581
  %v2583 = vpop.f32.mrf.mxu0
  %v2584 = vadd.f32 %v2553, %v2583
  %2585 = vdwg.mxu0
  %2586 = vmatpush.msra.mxu0 0.0
  %2587 = vmatpush.msra.mxu0 0.0
  %2588 = vmatpush.msra.mxu0 0.0
  %2589 = vmatpush.msra.mxu0 0.0
  %2590 = vmatpush.msra.mxu0 0.0
  %2591 = vmatpush.msra.mxu0 0.0
  %v2592 = vand.u32 %v130, 4294901760
  %2593 = vmatpush.msra.mxu0 %v2592
  %v2594 = vand.u32 %v2049, 4294901760
  %2595 = vmatpush.msra.mxu0 %v2594
  %v2596 = vand.u32 %v2038, 4294901760
  %2597 = vmatpush.msra.mxu0 %v2596
  %v2598 = vand.u32 %v2027, 4294901760
  %2599 = vmatpush.msra.mxu0 %v2598
  %v2600 = vand.u32 %v2016, 4294901760
  %2601 = vmatpush.msra.mxu0 %v2600
  %v2602 = vand.u32 %v2005, 4294901760
  %2603 = vmatpush.msra.mxu0 %v2602
  %v2604 = vand.u32 %v1994, 4294901760
  %2605 = vmatpush.msra.mxu0 %v2604
  %v2606 = vand.u32 %v1983, 4294901760
  %2607 = vmatpush.msra.mxu0 %v2606
  %v2608 = vand.u32 %v1972, 4294901760
  %2609 = vmatpush.msra.mxu0 %v2608
  %v2610 = vand.u32 %v1963, 4294901760
  %2611 = vmatpush.msra.mxu0 %v2610
  %v2612 = vand.u32 %v2058, 4294901760
  %v2613 = vsub.f32 %v2058, %v2612
  %v2614 = vand.u32 %v2613, 4294901760
  %v2615 = vsub.f32 %v2613, %v2614
  %v2616 = vand.u32 %v2615, 4294901760
  %2617 = vmatmul.f32.gmra.mxu0 %v2616
  %v2618 = vpop.f32.mrf.mxu0
  %v2619 = vadd.f32 0.0, %v2618
  %2620 = vdwg.mxu0
  %2621 = vmatpush.msra.mxu0 0.0
  %2622 = vmatpush.msra.mxu0 0.0
  %2623 = vmatpush.msra.mxu0 0.0
  %2624 = vmatpush.msra.mxu0 0.0
  %2625 = vmatpush.msra.mxu0 0.0
  %2626 = vmatpush.msra.mxu0 0.0
  %v2627 = vand.u32 %v130, 4294901760
  %v2628 = vsub.f32 %v130, %v2627
  %v2629 = vand.u32 %v2628, 4294901760
  %v2630 = vsub.f32 %v2628, %v2629
  %v2631 = vand.u32 %v2630, 4294901760
  %2632 = vmatpush.msra.mxu0 %v2631
  %v2633 = vand.u32 %v2049, 4294901760
  %v2634 = vsub.f32 %v2049, %v2633
  %v2635 = vand.u32 %v2634, 4294901760
  %v2636 = vsub.f32 %v2634, %v2635
  %v2637 = vand.u32 %v2636, 4294901760
  %2638 = vmatpush.msra.mxu0 %v2637
  %v2639 = vand.u32 %v2038, 4294901760
  %v2640 = vsub.f32 %v2038, %v2639
  %v2641 = vand.u32 %v2640, 4294901760
  %v2642 = vsub.f32 %v2640, %v2641
  %v2643 = vand.u32 %v2642, 4294901760
  %2644 = vmatpush.msra.mxu0 %v2643
  %v2645 = vand.u32 %v2027, 4294901760
  %v2646 = vsub.f32 %v2027, %v2645
  %v2647 = vand.u32 %v2646, 4294901760
  %v2648 = vsub.f32 %v2646, %v2647
  %v2649 = vand.u32 %v2648, 4294901760
  %2650 = vmatpush.msra.mxu0 %v2649
  %v2651 = vand.u32 %v2016, 4294901760
  %v2652 = vsub.f32 %v2016, %v2651
  %v2653 = vand.u32 %v2652, 4294901760
  %v2654 = vsub.f32 %v2652, %v2653
  %v2655 = vand.u32 %v2654, 4294901760
  %2656 = vmatpush.msra.mxu0 %v2655
  %v2657 = vand.u32 %v2005, 4294901760
  %v2658 = vsub.f32 %v2005, %v2657
  %v2659 = vand.u32 %v2658, 4294901760
  %v2660 = vsub.f32 %v2658, %v2659
  %v2661 = vand.u32 %v2660, 4294901760
  %2662 = vmatpush.msra.mxu0 %v2661
  %v2663 = vand.u32 %v1994, 4294901760
  %v2664 = vsub.f32 %v1994, %v2663
  %v2665 = vand.u32 %v2664, 4294901760
  %v2666 = vsub.f32 %v2664, %v2665
  %v2667 = vand.u32 %v2666, 4294901760
  %2668 = vmatpush.msra.mxu0 %v2667
  %v2669 = vand.u32 %v1983, 4294901760
  %v2670 = vsub.f32 %v1983, %v2669
  %v2671 = vand.u32 %v2670, 4294901760
  %v2672 = vsub.f32 %v2670, %v2671
  %v2673 = vand.u32 %v2672, 4294901760
  %2674 = vmatpush.msra.mxu0 %v2673
  %v2675 = vand.u32 %v1972, 4294901760
  %v2676 = vsub.f32 %v1972, %v2675
  %v2677 = vand.u32 %v2676, 4294901760
  %v2678 = vsub.f32 %v2676, %v2677
  %v2679 = vand.u32 %v2678, 4294901760
  %2680 = vmatpush.msra.mxu0 %v2679
  %v2681 = vand.u32 %v1963, 4294901760
  %v2682 = vsub.f32 %v1963, %v2681
  %v2683 = vand.u32 %v2682, 4294901760
  %v2684 = vsub.f32 %v2682, %v2683
  %v2685 = vand.u32 %v2684, 4294901760
  %2686 = vmatpush.msra.mxu0 %v2685
  %v2687 = vand.u32 %v2058, 4294901760
  %2688 = vmatmul.f32.gmra.mxu0 %v2687
  %v2689 = vpop.f32.mrf.mxu0
  %v2690 = vadd.f32 %v2619, %v2689
  %2691 = vdwg.mxu0
  %2692 = vmatpush.msra.mxu0 0.0
  %2693 = vmatpush.msra.mxu0 0.0
  %2694 = vmatpush.msra.mxu0 0.0
  %2695 = vmatpush.msra.mxu0 0.0
  %2696 = vmatpush.msra.mxu0 0.0
  %2697 = vmatpush.msra.mxu0 0.0
  %v2698 = vand.u32 %v130, 4294901760
  %v2699 = vsub.f32 %v130, %v2698
  %2700 = vmatpush.msra.mxu0 %v2699
  %v2701 = vand.u32 %v2049, 4294901760
  %v2702 = vsub.f32 %v2049, %v2701
  %2703 = vmatpush.msra.mxu0 %v2702
  %v2704 = vand.u32 %v2038, 4294901760
  %v2705 = vsub.f32 %v2038, %v2704
  %2706 = vmatpush.msra.mxu0 %v2705
  %v2707 = vand.u32 %v2027, 4294901760
  %v2708 = vsub.f32 %v2027, %v2707
  %2709 = vmatpush.msra.mxu0 %v2708
  %v2710 = vand.u32 %v2016, 4294901760
  %v2711 = vsub.f32 %v2016, %v2710
  %2712 = vmatpush.msra.mxu0 %v2711
  %v2713 = vand.u32 %v2005, 4294901760
  %v2714 = vsub.f32 %v2005, %v2713
  %2715 = vmatpush.msra.mxu0 %v2714
  %v2716 = vand.u32 %v1994, 4294901760
  %v2717 = vsub.f32 %v1994, %v2716
  %2718 = vmatpush.msra.mxu0 %v2717
  %v2719 = vand.u32 %v1983, 4294901760
  %v2720 = vsub.f32 %v1983, %v2719
  %2721 = vmatpush.msra.mxu0 %v2720
  %v2722 = vand.u32 %v1972, 4294901760
  %v2723 = vsub.f32 %v1972, %v2722
  %2724 = vmatpush.msra.mxu0 %v2723
  %v2725 = vand.u32 %v1963, 4294901760
  %v2726 = vsub.f32 %v1963, %v2725
  %2727 = vmatpush.msra.mxu0 %v2726
  %v2728 = vand.u32 %v2058, 4294901760
  %v2729 = vsub.f32 %v2058, %v2728
  %2730 = vmatmul.f32.gmra.mxu0 %v2729
  %v2731 = vpop.f32.mrf.mxu0
  %v2732 = vadd.f32 %v2690, %v2731
  %2733 = vdwg.mxu0
  %2734 = vmatpush.msra.mxu0 0.0
  %2735 = vmatpush.msra.mxu0 0.0
  %2736 = vmatpush.msra.mxu0 0.0
  %2737 = vmatpush.msra.mxu0 0.0
  %2738 = vmatpush.msra.mxu0 0.0
  %2739 = vmatpush.msra.mxu0 0.0
  %v2740 = vand.u32 %v130, 4294901760
  %2741 = vmatpush.msra.mxu0 %v2740
  %v2742 = vand.u32 %v2049, 4294901760
  %2743 = vmatpush.msra.mxu0 %v2742
  %v2744 = vand.u32 %v2038, 4294901760
  %2745 = vmatpush.msra.mxu0 %v2744
  %v2746 = vand.u32 %v2027, 4294901760
  %2747 = vmatpush.msra.mxu0 %v2746
  %v2748 = vand.u32 %v2016, 4294901760
  %2749 = vmatpush.msra.mxu0 %v2748
  %v2750 = vand.u32 %v2005, 4294901760
  %2751 = vmatpush.msra.mxu0 %v2750
  %v2752 = vand.u32 %v1994, 4294901760
  %2753 = vmatpush.msra.mxu0 %v2752
  %v2754 = vand.u32 %v1983, 4294901760
  %2755 = vmatpush.msra.mxu0 %v2754
  %v2756 = vand.u32 %v1972, 4294901760
  %2757 = vmatpush.msra.mxu0 %v2756
  %v2758 = vand.u32 %v1963, 4294901760
  %2759 = vmatpush.msra.mxu0 %v2758
  %v2760 = vand.u32 %v2058, 4294901760
  %v2761 = vsub.f32 %v2058, %v2760
  %v2762 = vand.u32 %v2761, 4294901760
  %2763 = vmatmul.f32.gmra.mxu0 %v2762
  %v2764 = vpop.f32.mrf.mxu0
  %v2765 = vadd.f32 %v2732, %v2764
  %2766 = vdwg.mxu0
  %2767 = vmatpush.msra.mxu0 0.0
  %2768 = vmatpush.msra.mxu0 0.0
  %2769 = vmatpush.msra.mxu0 0.0
  %2770 = vmatpush.msra.mxu0 0.0
  %2771 = vmatpush.msra.mxu0 0.0
  %2772 = vmatpush.msra.mxu0 0.0
  %v2773 = vand.u32 %v130, 4294901760
  %v2774 = vsub.f32 %v130, %v2773
  %v2775 = vand.u32 %v2774, 4294901760
  %2776 = vmatpush.msra.mxu0 %v2775
  %v2777 = vand.u32 %v2049, 4294901760
  %v2778 = vsub.f32 %v2049, %v2777
  %v2779 = vand.u32 %v2778, 4294901760
  %2780 = vmatpush.msra.mxu0 %v2779
  %v2781 = vand.u32 %v2038, 4294901760
  %v2782 = vsub.f32 %v2038, %v2781
  %v2783 = vand.u32 %v2782, 4294901760
  %2784 = vmatpush.msra.mxu0 %v2783
  %v2785 = vand.u32 %v2027, 4294901760
  %v2786 = vsub.f32 %v2027, %v2785
  %v2787 = vand.u32 %v2786, 4294901760
  %2788 = vmatpush.msra.mxu0 %v2787
  %v2789 = vand.u32 %v2016, 4294901760
  %v2790 = vsub.f32 %v2016, %v2789
  %v2791 = vand.u32 %v2790, 4294901760
  %2792 = vmatpush.msra.mxu0 %v2791
  %v2793 = vand.u32 %v2005, 4294901760
  %v2794 = vsub.f32 %v2005, %v2793
  %v2795 = vand.u32 %v2794, 4294901760
  %2796 = vmatpush.msra.mxu0 %v2795
  %v2797 = vand.u32 %v1994, 4294901760
  %v2798 = vsub.f32 %v1994, %v2797
  %v2799 = vand.u32 %v2798, 4294901760
  %2800 = vmatpush.msra.mxu0 %v2799
  %v2801 = vand.u32 %v1983, 4294901760
  %v2802 = vsub.f32 %v1983, %v2801
  %v2803 = vand.u32 %v2802, 4294901760
  %2804 = vmatpush.msra.mxu0 %v2803
  %v2805 = vand.u32 %v1972, 4294901760
  %v2806 = vsub.f32 %v1972, %v2805
  %v2807 = vand.u32 %v2806, 4294901760
  %2808 = vmatpush.msra.mxu0 %v2807
  %v2809 = vand.u32 %v1963, 4294901760
  %v2810 = vsub.f32 %v1963, %v2809
  %v2811 = vand.u32 %v2810, 4294901760
  %2812 = vmatpush.msra.mxu0 %v2811
  %v2813 = vand.u32 %v2058, 4294901760
  %2814 = vmatmul.f32.gmra.mxu0 %v2813
  %v2815 = vpop.f32.mrf.mxu0
  %v2816 = vadd.f32 %v2765, %v2815
  %2817 = vdwg.mxu0
  %2818 = vmatpush.msra.mxu0 0.0
  %2819 = vmatpush.msra.mxu0 0.0
  %2820 = vmatpush.msra.mxu0 0.0
  %2821 = vmatpush.msra.mxu0 0.0
  %2822 = vmatpush.msra.mxu0 0.0
  %2823 = vmatpush.msra.mxu0 0.0
  %v2824 = vand.u32 %v130, 4294901760
  %2825 = vmatpush.msra.mxu0 %v2824
  %v2826 = vand.u32 %v2049, 4294901760
  %2827 = vmatpush.msra.mxu0 %v2826
  %v2828 = vand.u32 %v2038, 4294901760
  %2829 = vmatpush.msra.mxu0 %v2828
  %v2830 = vand.u32 %v2027, 4294901760
  %2831 = vmatpush.msra.mxu0 %v2830
  %v2832 = vand.u32 %v2016, 4294901760
  %2833 = vmatpush.msra.mxu0 %v2832
  %v2834 = vand.u32 %v2005, 4294901760
  %2835 = vmatpush.msra.mxu0 %v2834
  %v2836 = vand.u32 %v1994, 4294901760
  %2837 = vmatpush.msra.mxu0 %v2836
  %v2838 = vand.u32 %v1983, 4294901760
  %2839 = vmatpush.msra.mxu0 %v2838
  %v2840 = vand.u32 %v1972, 4294901760
  %2841 = vmatpush.msra.mxu0 %v2840
  %v2842 = vand.u32 %v1963, 4294901760
  %2843 = vmatpush.msra.mxu0 %v2842
  %v2844 = vand.u32 %v2058, 4294901760
  %2845 = vmatmul.f32.gmra.mxu0 %v2844
  %v2846 = vpop.f32.mrf.mxu0
  %v2847 = vadd.f32 %v2816, %v2846
  %2848 = vdwg.mxu0
  %v2849 = vmax.f32 %v2321, 0.0
  %v2850 = vmax.f32 %v2584, 0.0
  %v2851 = vmax.f32 %v2847, 0.0
  %v2852 = vsel %vm123, %v2849, 0.0
  %v2853 = vsel %vm124, %v2850, 0.0
  %v2854 = vsel %vm125, %v2851, 0.0
  %2858 = vrot.lane.b32.xlu0 %v2852, 19
  %v2859 = vpop.permute.xlu0 %2858
  %2860 = vrot.lane.b32.xlu0 %v2853, 19
  %v2861 = vpop.permute.xlu0 %2860
  %2862 = vrot.lane.b32.xlu0 %v2854, 19
  %v2863 = vpop.permute.xlu0 %2862
  %v2864 = vsel %vm1042, %v2859, %v2861
  %v2865 = vsel %vm1042, %v2861, %v2863
  %2869 = vst.msk [vmem:[#allocation2] sm:$0xff] %vm1048, %v2859
  %2870 = vst [vmem:[#allocation2 + $0x8] sm:$0xff] %v2864
  %2871 = vst.msk [vmem:[#allocation2 + $0x10] sm:$0xff] %vm1051, %v2865
  %v2872 = vld [vmem:[#allocation2] sm:$0xff]
  %v2873 = vld [vmem:[#allocation2 + $0x8] sm:$0xff]
  %v2874 = vld [vmem:[#allocation2 + $0x10] sm:$0xff]
  %2878 = vrot.lane.b32.xlu0 %v2872, 127
  %v2879 = vpop.permute.xlu0 %2878
  %2880 = vrot.lane.b32.xlu0 %v2873, 127
  %v2881 = vpop.permute.xlu0 %2880
  %2882 = vrot.lane.b32.xlu0 %v2874, 127
  %v2883 = vpop.permute.xlu0 %2882
  %v2884 = vsel %vm143, %v2879, %v2881
  %v2885 = vsel %vm143, %v2881, %v2883
  %2889 = vrot.lane.b32.xlu0 %v2872, 126
  %v2890 = vpop.permute.xlu0 %2889
  %2891 = vrot.lane.b32.xlu0 %v2873, 126
  %v2892 = vpop.permute.xlu0 %2891
  %2893 = vrot.lane.b32.xlu0 %v2874, 126
  %v2894 = vpop.permute.xlu0 %2893
  %v2895 = vsel %vm155, %v2890, %v2892
  %v2896 = vsel %vm155, %v2892, %v2894
  %2900 = vrot.lane.b32.xlu0 %v2872, 110
  %v2901 = vpop.permute.xlu0 %2900
  %2902 = vrot.lane.b32.xlu0 %v2873, 110
  %v2903 = vpop.permute.xlu0 %2902
  %2904 = vrot.lane.b32.xlu0 %v2874, 110
  %v2905 = vpop.permute.xlu0 %2904
  %v2906 = vsel %vm167, %v2901, %v2903
  %v2907 = vsel %vm167, %v2903, %v2905
  %2911 = vrot.lane.b32.xlu0 %v2872, 109
  %v2912 = vpop.permute.xlu0 %2911
  %2913 = vrot.lane.b32.xlu0 %v2873, 109
  %v2914 = vpop.permute.xlu0 %2913
  %2915 = vrot.lane.b32.xlu0 %v2874, 109
  %v2916 = vpop.permute.xlu0 %2915
  %v2917 = vsel %vm179, %v2912, %v2914
  %v2918 = vsel %vm179, %v2914, %v2916
  %2922 = vrot.lane.b32.xlu0 %v2872, 108
  %v2923 = vpop.permute.xlu0 %2922
  %2924 = vrot.lane.b32.xlu0 %v2873, 108
  %v2925 = vpop.permute.xlu0 %2924
  %2926 = vrot.lane.b32.xlu0 %v2874, 108
  %v2927 = vpop.permute.xlu0 %2926
  %v2928 = vsel %vm191, %v2923, %v2925
  %v2929 = vsel %vm191, %v2925, %v2927
  %2933 = vrot.lane.b32.xlu0 %v2872, 92
  %v2934 = vpop.permute.xlu0 %2933
  %2935 = vrot.lane.b32.xlu0 %v2873, 92
  %v2936 = vpop.permute.xlu0 %2935
  %2937 = vrot.lane.b32.xlu0 %v2874, 92
  %v2938 = vpop.permute.xlu0 %2937
  %v2939 = vsel %vm203, %v2934, %v2936
  %v2940 = vsel %vm203, %v2936, %v2938
  %2944 = vrot.lane.b32.xlu0 %v2872, 91
  %v2945 = vpop.permute.xlu0 %2944
  %2946 = vrot.lane.b32.xlu0 %v2873, 91
  %v2947 = vpop.permute.xlu0 %2946
  %2948 = vrot.lane.b32.xlu0 %v2874, 91
  %v2949 = vpop.permute.xlu0 %2948
  %v2950 = vsel %vm215, %v2945, %v2947
  %v2951 = vsel %vm215, %v2947, %v2949
  %2955 = vrot.lane.b32.xlu0 %v2872, 90
  %v2956 = vpop.permute.xlu0 %2955
  %2957 = vrot.lane.b32.xlu0 %v2873, 90
  %v2958 = vpop.permute.xlu0 %2957
  %2959 = vrot.lane.b32.xlu0 %v2874, 90
  %v2960 = vpop.permute.xlu0 %2959
  %v2961 = vsel %vm227, %v2956, %v2958
  %v2962 = vsel %vm227, %v2958, %v2960
  %s2966 = scalar_lea.vmem %s1, 24
  %v2967 = vld [vmem:[%s2966] sm:$0xff]
  %v2969 = vsel %vm234, %v2967, 0
  %2971 = vmatpush.msra.mxu0 0.0
  %2972 = vmatpush.msra.mxu0 0.0
  %2973 = vmatpush.msra.mxu0 0.0
  %2974 = vmatpush.msra.mxu0 0.0
  %2975 = vmatpush.msra.mxu0 0.0
  %2976 = vmatpush.msra.mxu0 0.0
  %v2977 = vand.u32 %v130, 4294901760
  %2978 = vmatpush.msra.mxu0 %v2977
  %v2979 = vand.u32 %v2961, 4294901760
  %2980 = vmatpush.msra.mxu0 %v2979
  %v2981 = vand.u32 %v2950, 4294901760
  %2982 = vmatpush.msra.mxu0 %v2981
  %v2983 = vand.u32 %v2939, 4294901760
  %2984 = vmatpush.msra.mxu0 %v2983
  %v2985 = vand.u32 %v2928, 4294901760
  %2986 = vmatpush.msra.mxu0 %v2985
  %v2987 = vand.u32 %v2917, 4294901760
  %2988 = vmatpush.msra.mxu0 %v2987
  %v2989 = vand.u32 %v2906, 4294901760
  %2990 = vmatpush.msra.mxu0 %v2989
  %v2991 = vand.u32 %v2895, 4294901760
  %2992 = vmatpush.msra.mxu0 %v2991
  %v2993 = vand.u32 %v2884, 4294901760
  %2994 = vmatpush.msra.mxu0 %v2993
  %v2995 = vand.u32 %v2872, 4294901760
  %2996 = vmatpush.msra.mxu0 %v2995
  %v2997 = vand.u32 %v2969, 4294901760
  %v2998 = vsub.f32 %v2969, %v2997
  %v2999 = vand.u32 %v2998, 4294901760
  %v3000 = vsub.f32 %v2998, %v2999
  %v3001 = vand.u32 %v3000, 4294901760
  %3002 = vmatmul.f32.gmra.mxu0 %v3001
  %v3003 = vpop.f32.mrf.mxu0
  %v3004 = vadd.f32 %v2006, %v3003
  %3005 = vdwg.mxu0
  %3006 = vmatpush.msra.mxu0 0.0
  %3007 = vmatpush.msra.mxu0 0.0
  %3008 = vmatpush.msra.mxu0 0.0
  %3009 = vmatpush.msra.mxu0 0.0
  %3010 = vmatpush.msra.mxu0 0.0
  %3011 = vmatpush.msra.mxu0 0.0
  %v3012 = vand.u32 %v130, 4294901760
  %v3013 = vsub.f32 %v130, %v3012
  %v3014 = vand.u32 %v3013, 4294901760
  %v3015 = vsub.f32 %v3013, %v3014
  %v3016 = vand.u32 %v3015, 4294901760
  %3017 = vmatpush.msra.mxu0 %v3016
  %v3018 = vand.u32 %v2961, 4294901760
  %v3019 = vsub.f32 %v2961, %v3018
  %v3020 = vand.u32 %v3019, 4294901760
  %v3021 = vsub.f32 %v3019, %v3020
  %v3022 = vand.u32 %v3021, 4294901760
  %3023 = vmatpush.msra.mxu0 %v3022
  %v3024 = vand.u32 %v2950, 4294901760
  %v3025 = vsub.f32 %v2950, %v3024
  %v3026 = vand.u32 %v3025, 4294901760
  %v3027 = vsub.f32 %v3025, %v3026
  %v3028 = vand.u32 %v3027, 4294901760
  %3029 = vmatpush.msra.mxu0 %v3028
  %v3030 = vand.u32 %v2939, 4294901760
  %v3031 = vsub.f32 %v2939, %v3030
  %v3032 = vand.u32 %v3031, 4294901760
  %v3033 = vsub.f32 %v3031, %v3032
  %v3034 = vand.u32 %v3033, 4294901760
  %3035 = vmatpush.msra.mxu0 %v3034
  %v3036 = vand.u32 %v2928, 4294901760
  %v3037 = vsub.f32 %v2928, %v3036
  %v3038 = vand.u32 %v3037, 4294901760
  %v3039 = vsub.f32 %v3037, %v3038
  %v3040 = vand.u32 %v3039, 4294901760
  %3041 = vmatpush.msra.mxu0 %v3040
  %v3042 = vand.u32 %v2917, 4294901760
  %v3043 = vsub.f32 %v2917, %v3042
  %v3044 = vand.u32 %v3043, 4294901760
  %v3045 = vsub.f32 %v3043, %v3044
  %v3046 = vand.u32 %v3045, 4294901760
  %3047 = vmatpush.msra.mxu0 %v3046
  %v3048 = vand.u32 %v2906, 4294901760
  %v3049 = vsub.f32 %v2906, %v3048
  %v3050 = vand.u32 %v3049, 4294901760
  %v3051 = vsub.f32 %v3049, %v3050
  %v3052 = vand.u32 %v3051, 4294901760
  %3053 = vmatpush.msra.mxu0 %v3052
  %v3054 = vand.u32 %v2895, 4294901760
  %v3055 = vsub.f32 %v2895, %v3054
  %v3056 = vand.u32 %v3055, 4294901760
  %v3057 = vsub.f32 %v3055, %v3056
  %v3058 = vand.u32 %v3057, 4294901760
  %3059 = vmatpush.msra.mxu0 %v3058
  %v3060 = vand.u32 %v2884, 4294901760
  %v3061 = vsub.f32 %v2884, %v3060
  %v3062 = vand.u32 %v3061, 4294901760
  %v3063 = vsub.f32 %v3061, %v3062
  %v3064 = vand.u32 %v3063, 4294901760
  %3065 = vmatpush.msra.mxu0 %v3064
  %v3066 = vand.u32 %v2872, 4294901760
  %v3067 = vsub.f32 %v2872, %v3066
  %v3068 = vand.u32 %v3067, 4294901760
  %v3069 = vsub.f32 %v3067, %v3068
  %v3070 = vand.u32 %v3069, 4294901760
  %3071 = vmatpush.msra.mxu0 %v3070
  %v3072 = vand.u32 %v2969, 4294901760
  %3073 = vmatmul.f32.gmra.mxu0 %v3072
  %v3074 = vpop.f32.mrf.mxu0
  %v3075 = vadd.f32 %v3004, %v3074
  %3076 = vdwg.mxu0
  %3077 = vmatpush.msra.mxu0 0.0
  %3078 = vmatpush.msra.mxu0 0.0
  %3079 = vmatpush.msra.mxu0 0.0
  %3080 = vmatpush.msra.mxu0 0.0
  %3081 = vmatpush.msra.mxu0 0.0
  %3082 = vmatpush.msra.mxu0 0.0
  %v3083 = vand.u32 %v130, 4294901760
  %v3084 = vsub.f32 %v130, %v3083
  %3085 = vmatpush.msra.mxu0 %v3084
  %v3086 = vand.u32 %v2961, 4294901760
  %v3087 = vsub.f32 %v2961, %v3086
  %3088 = vmatpush.msra.mxu0 %v3087
  %v3089 = vand.u32 %v2950, 4294901760
  %v3090 = vsub.f32 %v2950, %v3089
  %3091 = vmatpush.msra.mxu0 %v3090
  %v3092 = vand.u32 %v2939, 4294901760
  %v3093 = vsub.f32 %v2939, %v3092
  %3094 = vmatpush.msra.mxu0 %v3093
  %v3095 = vand.u32 %v2928, 4294901760
  %v3096 = vsub.f32 %v2928, %v3095
  %3097 = vmatpush.msra.mxu0 %v3096
  %v3098 = vand.u32 %v2917, 4294901760
  %v3099 = vsub.f32 %v2917, %v3098
  %3100 = vmatpush.msra.mxu0 %v3099
  %v3101 = vand.u32 %v2906, 4294901760
  %v3102 = vsub.f32 %v2906, %v3101
  %3103 = vmatpush.msra.mxu0 %v3102
  %v3104 = vand.u32 %v2895, 4294901760
  %v3105 = vsub.f32 %v2895, %v3104
  %3106 = vmatpush.msra.mxu0 %v3105
  %v3107 = vand.u32 %v2884, 4294901760
  %v3108 = vsub.f32 %v2884, %v3107
  %3109 = vmatpush.msra.mxu0 %v3108
  %v3110 = vand.u32 %v2872, 4294901760
  %v3111 = vsub.f32 %v2872, %v3110
  %3112 = vmatpush.msra.mxu0 %v3111
  %v3113 = vand.u32 %v2969, 4294901760
  %v3114 = vsub.f32 %v2969, %v3113
  %3115 = vmatmul.f32.gmra.mxu0 %v3114
  %v3116 = vpop.f32.mrf.mxu0
  %v3117 = vadd.f32 %v3075, %v3116
  %3118 = vdwg.mxu0
  %3119 = vmatpush.msra.mxu0 0.0
  %3120 = vmatpush.msra.mxu0 0.0
  %3121 = vmatpush.msra.mxu0 0.0
  %3122 = vmatpush.msra.mxu0 0.0
  %3123 = vmatpush.msra.mxu0 0.0
  %3124 = vmatpush.msra.mxu0 0.0
  %v3125 = vand.u32 %v130, 4294901760
  %3126 = vmatpush.msra.mxu0 %v3125
  %v3127 = vand.u32 %v2961, 4294901760
  %3128 = vmatpush.msra.mxu0 %v3127
  %v3129 = vand.u32 %v2950, 4294901760
  %3130 = vmatpush.msra.mxu0 %v3129
  %v3131 = vand.u32 %v2939, 4294901760
  %3132 = vmatpush.msra.mxu0 %v3131
  %v3133 = vand.u32 %v2928, 4294901760
  %3134 = vmatpush.msra.mxu0 %v3133
  %v3135 = vand.u32 %v2917, 4294901760
  %3136 = vmatpush.msra.mxu0 %v3135
  %v3137 = vand.u32 %v2906, 4294901760
  %3138 = vmatpush.msra.mxu0 %v3137
  %v3139 = vand.u32 %v2895, 4294901760
  %3140 = vmatpush.msra.mxu0 %v3139
  %v3141 = vand.u32 %v2884, 4294901760
  %3142 = vmatpush.msra.mxu0 %v3141
  %v3143 = vand.u32 %v2872, 4294901760
  %3144 = vmatpush.msra.mxu0 %v3143
  %v3145 = vand.u32 %v2969, 4294901760
  %v3146 = vsub.f32 %v2969, %v3145
  %v3147 = vand.u32 %v3146, 4294901760
  %3148 = vmatmul.f32.gmra.mxu0 %v3147
  %v3149 = vpop.f32.mrf.mxu0
  %v3150 = vadd.f32 %v3117, %v3149
  %3151 = vdwg.mxu0
  %3152 = vmatpush.msra.mxu0 0.0
  %3153 = vmatpush.msra.mxu0 0.0
  %3154 = vmatpush.msra.mxu0 0.0
  %3155 = vmatpush.msra.mxu0 0.0
  %3156 = vmatpush.msra.mxu0 0.0
  %3157 = vmatpush.msra.mxu0 0.0
  %v3158 = vand.u32 %v130, 4294901760
  %v3159 = vsub.f32 %v130, %v3158
  %v3160 = vand.u32 %v3159, 4294901760
  %3161 = vmatpush.msra.mxu0 %v3160
  %v3162 = vand.u32 %v2961, 4294901760
  %v3163 = vsub.f32 %v2961, %v3162
  %v3164 = vand.u32 %v3163, 4294901760
  %3165 = vmatpush.msra.mxu0 %v3164
  %v3166 = vand.u32 %v2950, 4294901760
  %v3167 = vsub.f32 %v2950, %v3166
  %v3168 = vand.u32 %v3167, 4294901760
  %3169 = vmatpush.msra.mxu0 %v3168
  %v3170 = vand.u32 %v2939, 4294901760
  %v3171 = vsub.f32 %v2939, %v3170
  %v3172 = vand.u32 %v3171, 4294901760
  %3173 = vmatpush.msra.mxu0 %v3172
  %v3174 = vand.u32 %v2928, 4294901760
  %v3175 = vsub.f32 %v2928, %v3174
  %v3176 = vand.u32 %v3175, 4294901760
  %3177 = vmatpush.msra.mxu0 %v3176
  %v3178 = vand.u32 %v2917, 4294901760
  %v3179 = vsub.f32 %v2917, %v3178
  %v3180 = vand.u32 %v3179, 4294901760
  %3181 = vmatpush.msra.mxu0 %v3180
  %v3182 = vand.u32 %v2906, 4294901760
  %v3183 = vsub.f32 %v2906, %v3182
  %v3184 = vand.u32 %v3183, 4294901760
  %3185 = vmatpush.msra.mxu0 %v3184
  %v3186 = vand.u32 %v2895, 4294901760
  %v3187 = vsub.f32 %v2895, %v3186
  %v3188 = vand.u32 %v3187, 4294901760
  %3189 = vmatpush.msra.mxu0 %v3188
  %v3190 = vand.u32 %v2884, 4294901760
  %v3191 = vsub.f32 %v2884, %v3190
  %v3192 = vand.u32 %v3191, 4294901760
  %3193 = vmatpush.msra.mxu0 %v3192
  %v3194 = vand.u32 %v2872, 4294901760
  %v3195 = vsub.f32 %v2872, %v3194
  %v3196 = vand.u32 %v3195, 4294901760
  %3197 = vmatpush.msra.mxu0 %v3196
  %v3198 = vand.u32 %v2969, 4294901760
  %3199 = vmatmul.f32.gmra.mxu0 %v3198
  %v3200 = vpop.f32.mrf.mxu0
  %v3201 = vadd.f32 %v3150, %v3200
  %3202 = vdwg.mxu0
  %3203 = vmatpush.msra.mxu0 0.0
  %3204 = vmatpush.msra.mxu0 0.0
  %3205 = vmatpush.msra.mxu0 0.0
  %3206 = vmatpush.msra.mxu0 0.0
  %3207 = vmatpush.msra.mxu0 0.0
  %3208 = vmatpush.msra.mxu0 0.0
  %v3209 = vand.u32 %v130, 4294901760
  %3210 = vmatpush.msra.mxu0 %v3209
  %v3211 = vand.u32 %v2961, 4294901760
  %3212 = vmatpush.msra.mxu0 %v3211
  %v3213 = vand.u32 %v2950, 4294901760
  %3214 = vmatpush.msra.mxu0 %v3213
  %v3215 = vand.u32 %v2939, 4294901760
  %3216 = vmatpush.msra.mxu0 %v3215
  %v3217 = vand.u32 %v2928, 4294901760
  %3218 = vmatpush.msra.mxu0 %v3217
  %v3219 = vand.u32 %v2917, 4294901760
  %3220 = vmatpush.msra.mxu0 %v3219
  %v3221 = vand.u32 %v2906, 4294901760
  %3222 = vmatpush.msra.mxu0 %v3221
  %v3223 = vand.u32 %v2895, 4294901760
  %3224 = vmatpush.msra.mxu0 %v3223
  %v3225 = vand.u32 %v2884, 4294901760
  %3226 = vmatpush.msra.mxu0 %v3225
  %v3227 = vand.u32 %v2872, 4294901760
  %3228 = vmatpush.msra.mxu0 %v3227
  %v3229 = vand.u32 %v2969, 4294901760
  %3230 = vmatmul.f32.gmra.mxu0 %v3229
  %v3231 = vpop.f32.mrf.mxu0
  %v3232 = vadd.f32 %v3201, %v3231
  %3233 = vdwg.mxu0
  %3234 = vmatpush.msra.mxu0 0.0
  %3235 = vmatpush.msra.mxu0 0.0
  %3236 = vmatpush.msra.mxu0 0.0
  %3237 = vmatpush.msra.mxu0 0.0
  %3238 = vmatpush.msra.mxu0 0.0
  %3239 = vmatpush.msra.mxu0 0.0
  %v3240 = vand.u32 %v130, 4294901760
  %3241 = vmatpush.msra.mxu0 %v3240
  %v3242 = vand.u32 %v2962, 4294901760
  %3243 = vmatpush.msra.mxu0 %v3242
  %v3244 = vand.u32 %v2951, 4294901760
  %3245 = vmatpush.msra.mxu0 %v3244
  %v3246 = vand.u32 %v2940, 4294901760
  %3247 = vmatpush.msra.mxu0 %v3246
  %v3248 = vand.u32 %v2929, 4294901760
  %3249 = vmatpush.msra.mxu0 %v3248
  %v3250 = vand.u32 %v2918, 4294901760
  %3251 = vmatpush.msra.mxu0 %v3250
  %v3252 = vand.u32 %v2907, 4294901760
  %3253 = vmatpush.msra.mxu0 %v3252
  %v3254 = vand.u32 %v2896, 4294901760
  %3255 = vmatpush.msra.mxu0 %v3254
  %v3256 = vand.u32 %v2885, 4294901760
  %3257 = vmatpush.msra.mxu0 %v3256
  %v3258 = vand.u32 %v2873, 4294901760
  %3259 = vmatpush.msra.mxu0 %v3258
  %v3260 = vand.u32 %v2969, 4294901760
  %v3261 = vsub.f32 %v2969, %v3260
  %v3262 = vand.u32 %v3261, 4294901760
  %v3263 = vsub.f32 %v3261, %v3262
  %v3264 = vand.u32 %v3263, 4294901760
  %3265 = vmatmul.f32.gmra.mxu0 %v3264
  %v3266 = vpop.f32.mrf.mxu0
  %v3267 = vadd.f32 %v2007, %v3266
  %3268 = vdwg.mxu0
  %3269 = vmatpush.msra.mxu0 0.0
  %3270 = vmatpush.msra.mxu0 0.0
  %3271 = vmatpush.msra.mxu0 0.0
  %3272 = vmatpush.msra.mxu0 0.0
  %3273 = vmatpush.msra.mxu0 0.0
  %3274 = vmatpush.msra.mxu0 0.0
  %v3275 = vand.u32 %v130, 4294901760
  %v3276 = vsub.f32 %v130, %v3275
  %v3277 = vand.u32 %v3276, 4294901760
  %v3278 = vsub.f32 %v3276, %v3277
  %v3279 = vand.u32 %v3278, 4294901760
  %3280 = vmatpush.msra.mxu0 %v3279
  %v3281 = vand.u32 %v2962, 4294901760
  %v3282 = vsub.f32 %v2962, %v3281
  %v3283 = vand.u32 %v3282, 4294901760
  %v3284 = vsub.f32 %v3282, %v3283
  %v3285 = vand.u32 %v3284, 4294901760
  %3286 = vmatpush.msra.mxu0 %v3285
  %v3287 = vand.u32 %v2951, 4294901760
  %v3288 = vsub.f32 %v2951, %v3287
  %v3289 = vand.u32 %v3288, 4294901760
  %v3290 = vsub.f32 %v3288, %v3289
  %v3291 = vand.u32 %v3290, 4294901760
  %3292 = vmatpush.msra.mxu0 %v3291
  %v3293 = vand.u32 %v2940, 4294901760
  %v3294 = vsub.f32 %v2940, %v3293
  %v3295 = vand.u32 %v3294, 4294901760
  %v3296 = vsub.f32 %v3294, %v3295
  %v3297 = vand.u32 %v3296, 4294901760
  %3298 = vmatpush.msra.mxu0 %v3297
  %v3299 = vand.u32 %v2929, 4294901760
  %v3300 = vsub.f32 %v2929, %v3299
  %v3301 = vand.u32 %v3300, 4294901760
  %v3302 = vsub.f32 %v3300, %v3301
  %v3303 = vand.u32 %v3302, 4294901760
  %3304 = vmatpush.msra.mxu0 %v3303
  %v3305 = vand.u32 %v2918, 4294901760
  %v3306 = vsub.f32 %v2918, %v3305
  %v3307 = vand.u32 %v3306, 4294901760
  %v3308 = vsub.f32 %v3306, %v3307
  %v3309 = vand.u32 %v3308, 4294901760
  %3310 = vmatpush.msra.mxu0 %v3309
  %v3311 = vand.u32 %v2907, 4294901760
  %v3312 = vsub.f32 %v2907, %v3311
  %v3313 = vand.u32 %v3312, 4294901760
  %v3314 = vsub.f32 %v3312, %v3313
  %v3315 = vand.u32 %v3314, 4294901760
  %3316 = vmatpush.msra.mxu0 %v3315
  %v3317 = vand.u32 %v2896, 4294901760
  %v3318 = vsub.f32 %v2896, %v3317
  %v3319 = vand.u32 %v3318, 4294901760
  %v3320 = vsub.f32 %v3318, %v3319
  %v3321 = vand.u32 %v3320, 4294901760
  %3322 = vmatpush.msra.mxu0 %v3321
  %v3323 = vand.u32 %v2885, 4294901760
  %v3324 = vsub.f32 %v2885, %v3323
  %v3325 = vand.u32 %v3324, 4294901760
  %v3326 = vsub.f32 %v3324, %v3325
  %v3327 = vand.u32 %v3326, 4294901760
  %3328 = vmatpush.msra.mxu0 %v3327
  %v3329 = vand.u32 %v2873, 4294901760
  %v3330 = vsub.f32 %v2873, %v3329
  %v3331 = vand.u32 %v3330, 4294901760
  %v3332 = vsub.f32 %v3330, %v3331
  %v3333 = vand.u32 %v3332, 4294901760
  %3334 = vmatpush.msra.mxu0 %v3333
  %v3335 = vand.u32 %v2969, 4294901760
  %3336 = vmatmul.f32.gmra.mxu0 %v3335
  %v3337 = vpop.f32.mrf.mxu0
  %v3338 = vadd.f32 %v3267, %v3337
  %3339 = vdwg.mxu0
  %3340 = vmatpush.msra.mxu0 0.0
  %3341 = vmatpush.msra.mxu0 0.0
  %3342 = vmatpush.msra.mxu0 0.0
  %3343 = vmatpush.msra.mxu0 0.0
  %3344 = vmatpush.msra.mxu0 0.0
  %3345 = vmatpush.msra.mxu0 0.0
  %v3346 = vand.u32 %v130, 4294901760
  %v3347 = vsub.f32 %v130, %v3346
  %3348 = vmatpush.msra.mxu0 %v3347
  %v3349 = vand.u32 %v2962, 4294901760
  %v3350 = vsub.f32 %v2962, %v3349
  %3351 = vmatpush.msra.mxu0 %v3350
  %v3352 = vand.u32 %v2951, 4294901760
  %v3353 = vsub.f32 %v2951, %v3352
  %3354 = vmatpush.msra.mxu0 %v3353
  %v3355 = vand.u32 %v2940, 4294901760
  %v3356 = vsub.f32 %v2940, %v3355
  %3357 = vmatpush.msra.mxu0 %v3356
  %v3358 = vand.u32 %v2929, 4294901760
  %v3359 = vsub.f32 %v2929, %v3358
  %3360 = vmatpush.msra.mxu0 %v3359
  %v3361 = vand.u32 %v2918, 4294901760
  %v3362 = vsub.f32 %v2918, %v3361
  %3363 = vmatpush.msra.mxu0 %v3362
  %v3364 = vand.u32 %v2907, 4294901760
  %v3365 = vsub.f32 %v2907, %v3364
  %3366 = vmatpush.msra.mxu0 %v3365
  %v3367 = vand.u32 %v2896, 4294901760
  %v3368 = vsub.f32 %v2896, %v3367
  %3369 = vmatpush.msra.mxu0 %v3368
  %v3370 = vand.u32 %v2885, 4294901760
  %v3371 = vsub.f32 %v2885, %v3370
  %3372 = vmatpush.msra.mxu0 %v3371
  %v3373 = vand.u32 %v2873, 4294901760
  %v3374 = vsub.f32 %v2873, %v3373
  %3375 = vmatpush.msra.mxu0 %v3374
  %v3376 = vand.u32 %v2969, 4294901760
  %v3377 = vsub.f32 %v2969, %v3376
  %3378 = vmatmul.f32.gmra.mxu0 %v3377
  %v3379 = vpop.f32.mrf.mxu0
  %v3380 = vadd.f32 %v3338, %v3379
  %3381 = vdwg.mxu0
  %3382 = vmatpush.msra.mxu0 0.0
  %3383 = vmatpush.msra.mxu0 0.0
  %3384 = vmatpush.msra.mxu0 0.0
  %3385 = vmatpush.msra.mxu0 0.0
  %3386 = vmatpush.msra.mxu0 0.0
  %3387 = vmatpush.msra.mxu0 0.0
  %v3388 = vand.u32 %v130, 4294901760
  %3389 = vmatpush.msra.mxu0 %v3388
  %v3390 = vand.u32 %v2962, 4294901760
  %3391 = vmatpush.msra.mxu0 %v3390
  %v3392 = vand.u32 %v2951, 4294901760
  %3393 = vmatpush.msra.mxu0 %v3392
  %v3394 = vand.u32 %v2940, 4294901760
  %3395 = vmatpush.msra.mxu0 %v3394
  %v3396 = vand.u32 %v2929, 4294901760
  %3397 = vmatpush.msra.mxu0 %v3396
  %v3398 = vand.u32 %v2918, 4294901760
  %3399 = vmatpush.msra.mxu0 %v3398
  %v3400 = vand.u32 %v2907, 4294901760
  %3401 = vmatpush.msra.mxu0 %v3400
  %v3402 = vand.u32 %v2896, 4294901760
  %3403 = vmatpush.msra.mxu0 %v3402
  %v3404 = vand.u32 %v2885, 4294901760
  %3405 = vmatpush.msra.mxu0 %v3404
  %v3406 = vand.u32 %v2873, 4294901760
  %3407 = vmatpush.msra.mxu0 %v3406
  %v3408 = vand.u32 %v2969, 4294901760
  %v3409 = vsub.f32 %v2969, %v3408
  %v3410 = vand.u32 %v3409, 4294901760
  %3411 = vmatmul.f32.gmra.mxu0 %v3410
  %v3412 = vpop.f32.mrf.mxu0
  %v3413 = vadd.f32 %v3380, %v3412
  %3414 = vdwg.mxu0
  %3415 = vmatpush.msra.mxu0 0.0
  %3416 = vmatpush.msra.mxu0 0.0
  %3417 = vmatpush.msra.mxu0 0.0
  %3418 = vmatpush.msra.mxu0 0.0
  %3419 = vmatpush.msra.mxu0 0.0
  %3420 = vmatpush.msra.mxu0 0.0
  %v3421 = vand.u32 %v130, 4294901760
  %v3422 = vsub.f32 %v130, %v3421
  %v3423 = vand.u32 %v3422, 4294901760
  %3424 = vmatpush.msra.mxu0 %v3423
  %v3425 = vand.u32 %v2962, 4294901760
  %v3426 = vsub.f32 %v2962, %v3425
  %v3427 = vand.u32 %v3426, 4294901760
  %3428 = vmatpush.msra.mxu0 %v3427
  %v3429 = vand.u32 %v2951, 4294901760
  %v3430 = vsub.f32 %v2951, %v3429
  %v3431 = vand.u32 %v3430, 4294901760
  %3432 = vmatpush.msra.mxu0 %v3431
  %v3433 = vand.u32 %v2940, 4294901760
  %v3434 = vsub.f32 %v2940, %v3433
  %v3435 = vand.u32 %v3434, 4294901760
  %3436 = vmatpush.msra.mxu0 %v3435
  %v3437 = vand.u32 %v2929, 4294901760
  %v3438 = vsub.f32 %v2929, %v3437
  %v3439 = vand.u32 %v3438, 4294901760
  %3440 = vmatpush.msra.mxu0 %v3439
  %v3441 = vand.u32 %v2918, 4294901760
  %v3442 = vsub.f32 %v2918, %v3441
  %v3443 = vand.u32 %v3442, 4294901760
  %3444 = vmatpush.msra.mxu0 %v3443
  %v3445 = vand.u32 %v2907, 4294901760
  %v3446 = vsub.f32 %v2907, %v3445
  %v3447 = vand.u32 %v3446, 4294901760
  %3448 = vmatpush.msra.mxu0 %v3447
  %v3449 = vand.u32 %v2896, 4294901760
  %v3450 = vsub.f32 %v2896, %v3449
  %v3451 = vand.u32 %v3450, 4294901760
  %3452 = vmatpush.msra.mxu0 %v3451
  %v3453 = vand.u32 %v2885, 4294901760
  %v3454 = vsub.f32 %v2885, %v3453
  %v3455 = vand.u32 %v3454, 4294901760
  %3456 = vmatpush.msra.mxu0 %v3455
  %v3457 = vand.u32 %v2873, 4294901760
  %v3458 = vsub.f32 %v2873, %v3457
  %v3459 = vand.u32 %v3458, 4294901760
  %3460 = vmatpush.msra.mxu0 %v3459
  %v3461 = vand.u32 %v2969, 4294901760
  %3462 = vmatmul.f32.gmra.mxu0 %v3461
  %v3463 = vpop.f32.mrf.mxu0
  %v3464 = vadd.f32 %v3413, %v3463
  %3465 = vdwg.mxu0
  %3466 = vmatpush.msra.mxu0 0.0
  %3467 = vmatpush.msra.mxu0 0.0
  %3468 = vmatpush.msra.mxu0 0.0
  %3469 = vmatpush.msra.mxu0 0.0
  %3470 = vmatpush.msra.mxu0 0.0
  %3471 = vmatpush.msra.mxu0 0.0
  %v3472 = vand.u32 %v130, 4294901760
  %3473 = vmatpush.msra.mxu0 %v3472
  %v3474 = vand.u32 %v2962, 4294901760
  %3475 = vmatpush.msra.mxu0 %v3474
  %v3476 = vand.u32 %v2951, 4294901760
  %3477 = vmatpush.msra.mxu0 %v3476
  %v3478 = vand.u32 %v2940, 4294901760
  %3479 = vmatpush.msra.mxu0 %v3478
  %v3480 = vand.u32 %v2929, 4294901760
  %3481 = vmatpush.msra.mxu0 %v3480
  %v3482 = vand.u32 %v2918, 4294901760
  %3483 = vmatpush.msra.mxu0 %v3482
  %v3484 = vand.u32 %v2907, 4294901760
  %3485 = vmatpush.msra.mxu0 %v3484
  %v3486 = vand.u32 %v2896, 4294901760
  %3487 = vmatpush.msra.mxu0 %v3486
  %v3488 = vand.u32 %v2885, 4294901760
  %3489 = vmatpush.msra.mxu0 %v3488
  %v3490 = vand.u32 %v2873, 4294901760
  %3491 = vmatpush.msra.mxu0 %v3490
  %v3492 = vand.u32 %v2969, 4294901760
  %3493 = vmatmul.f32.gmra.mxu0 %v3492
  %v3494 = vpop.f32.mrf.mxu0
  %v3495 = vadd.f32 %v3464, %v3494
  %3496 = vdwg.mxu0
  %3497 = vmatpush.msra.mxu0 0.0
  %3498 = vmatpush.msra.mxu0 0.0
  %3499 = vmatpush.msra.mxu0 0.0
  %3500 = vmatpush.msra.mxu0 0.0
  %3501 = vmatpush.msra.mxu0 0.0
  %3502 = vmatpush.msra.mxu0 0.0
  %v3503 = vand.u32 %v130, 4294901760
  %3504 = vmatpush.msra.mxu0 %v3503
  %v3505 = vand.u32 %v2960, 4294901760
  %3506 = vmatpush.msra.mxu0 %v3505
  %v3507 = vand.u32 %v2949, 4294901760
  %3508 = vmatpush.msra.mxu0 %v3507
  %v3509 = vand.u32 %v2938, 4294901760
  %3510 = vmatpush.msra.mxu0 %v3509
  %v3511 = vand.u32 %v2927, 4294901760
  %3512 = vmatpush.msra.mxu0 %v3511
  %v3513 = vand.u32 %v2916, 4294901760
  %3514 = vmatpush.msra.mxu0 %v3513
  %v3515 = vand.u32 %v2905, 4294901760
  %3516 = vmatpush.msra.mxu0 %v3515
  %v3517 = vand.u32 %v2894, 4294901760
  %3518 = vmatpush.msra.mxu0 %v3517
  %v3519 = vand.u32 %v2883, 4294901760
  %3520 = vmatpush.msra.mxu0 %v3519
  %v3521 = vand.u32 %v2874, 4294901760
  %3522 = vmatpush.msra.mxu0 %v3521
  %v3523 = vand.u32 %v2969, 4294901760
  %v3524 = vsub.f32 %v2969, %v3523
  %v3525 = vand.u32 %v3524, 4294901760
  %v3526 = vsub.f32 %v3524, %v3525
  %v3527 = vand.u32 %v3526, 4294901760
  %3528 = vmatmul.f32.gmra.mxu0 %v3527
  %v3529 = vpop.f32.mrf.mxu0
  %v3530 = vadd.f32 %v2005, %v3529
  %3531 = vdwg.mxu0
  %3532 = vmatpush.msra.mxu0 0.0
  %3533 = vmatpush.msra.mxu0 0.0
  %3534 = vmatpush.msra.mxu0 0.0
  %3535 = vmatpush.msra.mxu0 0.0
  %3536 = vmatpush.msra.mxu0 0.0
  %3537 = vmatpush.msra.mxu0 0.0
  %v3538 = vand.u32 %v130, 4294901760
  %v3539 = vsub.f32 %v130, %v3538
  %v3540 = vand.u32 %v3539, 4294901760
  %v3541 = vsub.f32 %v3539, %v3540
  %v3542 = vand.u32 %v3541, 4294901760
  %3543 = vmatpush.msra.mxu0 %v3542
  %v3544 = vand.u32 %v2960, 4294901760
  %v3545 = vsub.f32 %v2960, %v3544
  %v3546 = vand.u32 %v3545, 4294901760
  %v3547 = vsub.f32 %v3545, %v3546
  %v3548 = vand.u32 %v3547, 4294901760
  %3549 = vmatpush.msra.mxu0 %v3548
  %v3550 = vand.u32 %v2949, 4294901760
  %v3551 = vsub.f32 %v2949, %v3550
  %v3552 = vand.u32 %v3551, 4294901760
  %v3553 = vsub.f32 %v3551, %v3552
  %v3554 = vand.u32 %v3553, 4294901760
  %3555 = vmatpush.msra.mxu0 %v3554
  %v3556 = vand.u32 %v2938, 4294901760
  %v3557 = vsub.f32 %v2938, %v3556
  %v3558 = vand.u32 %v3557, 4294901760
  %v3559 = vsub.f32 %v3557, %v3558
  %v3560 = vand.u32 %v3559, 4294901760
  %3561 = vmatpush.msra.mxu0 %v3560
  %v3562 = vand.u32 %v2927, 4294901760
  %v3563 = vsub.f32 %v2927, %v3562
  %v3564 = vand.u32 %v3563, 4294901760
  %v3565 = vsub.f32 %v3563, %v3564
  %v3566 = vand.u32 %v3565, 4294901760
  %3567 = vmatpush.msra.mxu0 %v3566
  %v3568 = vand.u32 %v2916, 4294901760
  %v3569 = vsub.f32 %v2916, %v3568
  %v3570 = vand.u32 %v3569, 4294901760
  %v3571 = vsub.f32 %v3569, %v3570
  %v3572 = vand.u32 %v3571, 4294901760
  %3573 = vmatpush.msra.mxu0 %v3572
  %v3574 = vand.u32 %v2905, 4294901760
  %v3575 = vsub.f32 %v2905, %v3574
  %v3576 = vand.u32 %v3575, 4294901760
  %v3577 = vsub.f32 %v3575, %v3576
  %v3578 = vand.u32 %v3577, 4294901760
  %3579 = vmatpush.msra.mxu0 %v3578
  %v3580 = vand.u32 %v2894, 4294901760
  %v3581 = vsub.f32 %v2894, %v3580
  %v3582 = vand.u32 %v3581, 4294901760
  %v3583 = vsub.f32 %v3581, %v3582
  %v3584 = vand.u32 %v3583, 4294901760
  %3585 = vmatpush.msra.mxu0 %v3584
  %v3586 = vand.u32 %v2883, 4294901760
  %v3587 = vsub.f32 %v2883, %v3586
  %v3588 = vand.u32 %v3587, 4294901760
  %v3589 = vsub.f32 %v3587, %v3588
  %v3590 = vand.u32 %v3589, 4294901760
  %3591 = vmatpush.msra.mxu0 %v3590
  %v3592 = vand.u32 %v2874, 4294901760
  %v3593 = vsub.f32 %v2874, %v3592
  %v3594 = vand.u32 %v3593, 4294901760
  %v3595 = vsub.f32 %v3593, %v3594
  %v3596 = vand.u32 %v3595, 4294901760
  %3597 = vmatpush.msra.mxu0 %v3596
  %v3598 = vand.u32 %v2969, 4294901760
  %3599 = vmatmul.f32.gmra.mxu0 %v3598
  %v3600 = vpop.f32.mrf.mxu0
  %v3601 = vadd.f32 %v3530, %v3600
  %3602 = vdwg.mxu0
  %3603 = vmatpush.msra.mxu0 0.0
  %3604 = vmatpush.msra.mxu0 0.0
  %3605 = vmatpush.msra.mxu0 0.0
  %3606 = vmatpush.msra.mxu0 0.0
  %3607 = vmatpush.msra.mxu0 0.0
  %3608 = vmatpush.msra.mxu0 0.0
  %v3609 = vand.u32 %v130, 4294901760
  %v3610 = vsub.f32 %v130, %v3609
  %3611 = vmatpush.msra.mxu0 %v3610
  %v3612 = vand.u32 %v2960, 4294901760
  %v3613 = vsub.f32 %v2960, %v3612
  %3614 = vmatpush.msra.mxu0 %v3613
  %v3615 = vand.u32 %v2949, 4294901760
  %v3616 = vsub.f32 %v2949, %v3615
  %3617 = vmatpush.msra.mxu0 %v3616
  %v3618 = vand.u32 %v2938, 4294901760
  %v3619 = vsub.f32 %v2938, %v3618
  %3620 = vmatpush.msra.mxu0 %v3619
  %v3621 = vand.u32 %v2927, 4294901760
  %v3622 = vsub.f32 %v2927, %v3621
  %3623 = vmatpush.msra.mxu0 %v3622
  %v3624 = vand.u32 %v2916, 4294901760
  %v3625 = vsub.f32 %v2916, %v3624
  %3626 = vmatpush.msra.mxu0 %v3625
  %v3627 = vand.u32 %v2905, 4294901760
  %v3628 = vsub.f32 %v2905, %v3627
  %3629 = vmatpush.msra.mxu0 %v3628
  %v3630 = vand.u32 %v2894, 4294901760
  %v3631 = vsub.f32 %v2894, %v3630
  %3632 = vmatpush.msra.mxu0 %v3631
  %v3633 = vand.u32 %v2883, 4294901760
  %v3634 = vsub.f32 %v2883, %v3633
  %3635 = vmatpush.msra.mxu0 %v3634
  %v3636 = vand.u32 %v2874, 4294901760
  %v3637 = vsub.f32 %v2874, %v3636
  %3638 = vmatpush.msra.mxu0 %v3637
  %v3639 = vand.u32 %v2969, 4294901760
  %v3640 = vsub.f32 %v2969, %v3639
  %3641 = vmatmul.f32.gmra.mxu0 %v3640
  %v3642 = vpop.f32.mrf.mxu0
  %v3643 = vadd.f32 %v3601, %v3642
  %3644 = vdwg.mxu0
  %3645 = vmatpush.msra.mxu0 0.0
  %3646 = vmatpush.msra.mxu0 0.0
  %3647 = vmatpush.msra.mxu0 0.0
  %3648 = vmatpush.msra.mxu0 0.0
  %3649 = vmatpush.msra.mxu0 0.0
  %3650 = vmatpush.msra.mxu0 0.0
  %v3651 = vand.u32 %v130, 4294901760
  %3652 = vmatpush.msra.mxu0 %v3651
  %v3653 = vand.u32 %v2960, 4294901760
  %3654 = vmatpush.msra.mxu0 %v3653
  %v3655 = vand.u32 %v2949, 4294901760
  %3656 = vmatpush.msra.mxu0 %v3655
  %v3657 = vand.u32 %v2938, 4294901760
  %3658 = vmatpush.msra.mxu0 %v3657
  %v3659 = vand.u32 %v2927, 4294901760
  %3660 = vmatpush.msra.mxu0 %v3659
  %v3661 = vand.u32 %v2916, 4294901760
  %3662 = vmatpush.msra.mxu0 %v3661
  %v3663 = vand.u32 %v2905, 4294901760
  %3664 = vmatpush.msra.mxu0 %v3663
  %v3665 = vand.u32 %v2894, 4294901760
  %3666 = vmatpush.msra.mxu0 %v3665
  %v3667 = vand.u32 %v2883, 4294901760
  %3668 = vmatpush.msra.mxu0 %v3667
  %v3669 = vand.u32 %v2874, 4294901760
  %3670 = vmatpush.msra.mxu0 %v3669
  %v3671 = vand.u32 %v2969, 4294901760
  %v3672 = vsub.f32 %v2969, %v3671
  %v3673 = vand.u32 %v3672, 4294901760
  %3674 = vmatmul.f32.gmra.mxu0 %v3673
  %v3675 = vpop.f32.mrf.mxu0
  %v3676 = vadd.f32 %v3643, %v3675
  %3677 = vdwg.mxu0
  %3678 = vmatpush.msra.mxu0 0.0
  %3679 = vmatpush.msra.mxu0 0.0
  %3680 = vmatpush.msra.mxu0 0.0
  %3681 = vmatpush.msra.mxu0 0.0
  %3682 = vmatpush.msra.mxu0 0.0
  %3683 = vmatpush.msra.mxu0 0.0
  %v3684 = vand.u32 %v130, 4294901760
  %v3685 = vsub.f32 %v130, %v3684
  %v3686 = vand.u32 %v3685, 4294901760
  %3687 = vmatpush.msra.mxu0 %v3686
  %v3688 = vand.u32 %v2960, 4294901760
  %v3689 = vsub.f32 %v2960, %v3688
  %v3690 = vand.u32 %v3689, 4294901760
  %3691 = vmatpush.msra.mxu0 %v3690
  %v3692 = vand.u32 %v2949, 4294901760
  %v3693 = vsub.f32 %v2949, %v3692
  %v3694 = vand.u32 %v3693, 4294901760
  %3695 = vmatpush.msra.mxu0 %v3694
  %v3696 = vand.u32 %v2938, 4294901760
  %v3697 = vsub.f32 %v2938, %v3696
  %v3698 = vand.u32 %v3697, 4294901760
  %3699 = vmatpush.msra.mxu0 %v3698
  %v3700 = vand.u32 %v2927, 4294901760
  %v3701 = vsub.f32 %v2927, %v3700
  %v3702 = vand.u32 %v3701, 4294901760
  %3703 = vmatpush.msra.mxu0 %v3702
  %v3704 = vand.u32 %v2916, 4294901760
  %v3705 = vsub.f32 %v2916, %v3704
  %v3706 = vand.u32 %v3705, 4294901760
  %3707 = vmatpush.msra.mxu0 %v3706
  %v3708 = vand.u32 %v2905, 4294901760
  %v3709 = vsub.f32 %v2905, %v3708
  %v3710 = vand.u32 %v3709, 4294901760
  %3711 = vmatpush.msra.mxu0 %v3710
  %v3712 = vand.u32 %v2894, 4294901760
  %v3713 = vsub.f32 %v2894, %v3712
  %v3714 = vand.u32 %v3713, 4294901760
  %3715 = vmatpush.msra.mxu0 %v3714
  %v3716 = vand.u32 %v2883, 4294901760
  %v3717 = vsub.f32 %v2883, %v3716
  %v3718 = vand.u32 %v3717, 4294901760
  %3719 = vmatpush.msra.mxu0 %v3718
  %v3720 = vand.u32 %v2874, 4294901760
  %v3721 = vsub.f32 %v2874, %v3720
  %v3722 = vand.u32 %v3721, 4294901760
  %3723 = vmatpush.msra.mxu0 %v3722
  %v3724 = vand.u32 %v2969, 4294901760
  %3725 = vmatmul.f32.gmra.mxu0 %v3724
  %v3726 = vpop.f32.mrf.mxu0
  %v3727 = vadd.f32 %v3676, %v3726
  %3728 = vdwg.mxu0
  %3729 = vmatpush.msra.mxu0 0.0
  %3730 = vmatpush.msra.mxu0 0.0
  %3731 = vmatpush.msra.mxu0 0.0
  %3732 = vmatpush.msra.mxu0 0.0
  %3733 = vmatpush.msra.mxu0 0.0
  %3734 = vmatpush.msra.mxu0 0.0
  %v3735 = vand.u32 %v130, 4294901760
  %3736 = vmatpush.msra.mxu0 %v3735
  %v3737 = vand.u32 %v2960, 4294901760
  %3738 = vmatpush.msra.mxu0 %v3737
  %v3739 = vand.u32 %v2949, 4294901760
  %3740 = vmatpush.msra.mxu0 %v3739
  %v3741 = vand.u32 %v2938, 4294901760
  %3742 = vmatpush.msra.mxu0 %v3741
  %v3743 = vand.u32 %v2927, 4294901760
  %3744 = vmatpush.msra.mxu0 %v3743
  %v3745 = vand.u32 %v2916, 4294901760
  %3746 = vmatpush.msra.mxu0 %v3745
  %v3747 = vand.u32 %v2905, 4294901760
  %3748 = vmatpush.msra.mxu0 %v3747
  %v3749 = vand.u32 %v2894, 4294901760
  %3750 = vmatpush.msra.mxu0 %v3749
  %v3751 = vand.u32 %v2883, 4294901760
  %3752 = vmatpush.msra.mxu0 %v3751
  %v3753 = vand.u32 %v2874, 4294901760
  %3754 = vmatpush.msra.mxu0 %v3753
  %v3755 = vand.u32 %v2969, 4294901760
  %3756 = vmatmul.f32.gmra.mxu0 %v3755
  %v3757 = vpop.f32.mrf.mxu0
  %v3758 = vadd.f32 %v3727, %v3757
  %3759 = vdwg.mxu0
  %3760 = vst [vmem:[%s2] sm:$0xff] %v3232
  %3761 = vst [vmem:[%s2 + $0x8] sm:$0xff] %v3495
  %vm3762 = vcmask 261120
  %3763 = vst.msk [vmem:[%s2 + $0x10] sm:$0xff] %vm3762, %v3758
  // Predicated region
  $region10: #{_stacked_blocks_impl.1} parent=0 // pred_check
    _
  $region11: #{_stacked_blocks_impl.1} parent=0 // pred_check_branch
    %3765 = sbr.rel (0) target = $region13
  $region12: #{_stacked_blocks_impl.1} parent=0 // pred_region
    _
  $region13: #{_stacked_blocks_impl.1} parent=0 // pred_fallthru
    _
  // Predicated region
  $region14: #{_stacked_blocks_impl.1} parent=0 // pred_check
    _
  $region15: #{_stacked_blocks_impl.1} parent=0 // pred_check_branch
    %3767 = sbr.rel (0) target = $region17
  $region16: #{_stacked_blocks_impl.1} parent=0 // pred_region
    _
  $region17: #{_stacked_blocks_impl.1} parent=0 // pred_fallthru
    _

</llo_original>
